<compile_context>
chip_gen: v5e
topology: v5e:2x2
jax: 0.10.0
libtpu: 0.0.40
codegen_flags: <defaults>
</compile_context>

<pallas_src>
import functools

import numpy as np
import jax
import jax.numpy as jnp
from jax.experimental import pallas as pl
from jax.experimental.pallas import tpu as pltpu


# ----------------------------------------------------------------------------
# Constant (trace-time) matrices
# ----------------------------------------------------------------------------
def _pool_matrix(L, O):
    """Exact AdaptiveAvgPool1d binning matrix P[l, i] (PyTorch semantics)."""
    P = np.zeros((L, O), np.float32)
    for i in range(O):
        s = (i * L) // O
        e = ((i + 1) * L + O - 1) // O  # ceil
        P[s:e, i] = 1.0 / float(e - s)
    return P


def _build_constants(C, H, W):
    C32 = C // 32
    HW = H * W
    Pw = _pool_matrix(W, 4)     # pool W   -> 4
    Ph = _pool_matrix(H, 4)     # pool H   -> 4
    Pc = _pool_matrix(C32, 4)   # pool C32 -> 4
    P32 = _pool_matrix(32, 4)   # pool 32  -> 4

    # ST: x2 @ ST gives both patch poolings in one matmul.
    #   col f*H + h       -> xp1[c,h,f] = sum_w Pw[w,f] * x[c,h,w]
    #   col 4H + f*W + w  -> xp2[c,f,w] = sum_h Ph[h,f] * x[c,h,w]
    ST = np.zeros((HW, 4 * (H + W)), np.float32)
    for h in range(H):
        for w in range(W):
            p = h * W + w
            for f in range(4):
                ST[p, f * H + h] = Pw[w, f]
                ST[p, 4 * H + f * W + w] = Ph[h, f]

    # EXP: p12 @ EXP -> [C, 8*HW].  Block f (cols f*HW..) broadcasts xp1[:, :, f] over
    # each row's W pixels; block 4+f tiles xp2[:, f, :] over all H rows.  Then
    #   patt = sum_f  EXPblk_f * EXPblk_{4+f}    reproduces  xp1 @ xp2  per (b,c).
    EXP = np.zeros((4 * (H + W), 8 * HW), np.float32)
    for f in range(4):
        for h in range(H):
            for w in range(W):
                p = h * W + w
                EXP[f * H + h, f * HW + p] = 1.0
                EXP[4 * H + f * W + w, (4 + f) * HW + p] = 1.0

    # EE: stacked channel-side expansion matrices for the embdim branch.
    #   emb = sum_f (EE_blk_f @ x2) * (EE_blk_{4+f} @ x2)  reproduces
    #   (x1 @ Pc) @ (P32^T @ x1) per pixel, laid back as channel = k*C32 + c.
    EE = np.zeros((8 * C, C), np.float32)
    for f in range(4):
        for k in range(32):
            for c in range(C32):
                for c2 in range(C32):
                    EE[f * C + k * C32 + c, k * C32 + c2] = Pc[c2, f]
                for k2 in range(32):
                    EE[(4 + f) * C + k * C32 + c, k2 * C32 + c] = P32[k2, f]
    return ST, EXP, EE


# ----------------------------------------------------------------------------
# Kernel helpers
# ----------------------------------------------------------------------------
def _dwconv3x3(y, w9, bias, col, H, W):
    """Depthwise 3x3 conv (padding=1) on y laid out as [Cc, H*W] (pixels on lanes)."""
    Cc, HW = y.shape
    acc = None
    for dy in (-1, 0, 1):
        for dx in (-1, 0, 1):
            s = dy * W + dx
            if s > 0:
                sh = jnp.concatenate(
                    [y[:, s:], jnp.zeros((Cc, s), y.dtype)], axis=1)
            elif s < 0:
                sh = jnp.concatenate(
                    [jnp.zeros((Cc, -s), y.dtype), y[:, :HW + s]], axis=1)
            else:
                sh = y
            # mask pixels whose source column w+dx falls outside [0, W)
            if dx == 1:
                sh = jnp.where(col < (W - 1), sh, 0.0)
            elif dx == -1:
                sh = jnp.where(col >= 1, sh, 0.0)
            t = (dy + 1) * 3 + (dx + 1)
            term = w9[:, t:t + 1] * sh
            acc = term if acc is None else acc + term
    return acc + bias


def _pool_attn_kernel(x_ref, st_ref, exp_ref, ee_ref,
                      w01_ref, b01_ref, w2_ref, b2_ref,
                      g_ref, bt_ref, o_ref, *, C, H, W, eps):
    HW = H * W
    f32 = jnp.float32
    x2 = x_ref[0]                                                  # [C, HW]
    col = jax.lax.broadcasted_iota(jnp.int32, (1, HW), 1) % W      # [1, HW], broadcast

    # ---------------- patch-pooling attention (proj0 branch) ----------------
    p12 = jnp.dot(x2, st_ref[...], preferred_element_type=f32)     # [C, 4H+4W]
    zab = jnp.dot(p12, exp_ref[...], preferred_element_type=f32)   # [C, 8*HW]
    patt = zab[:, 0:HW] * zab[:, 4 * HW:5 * HW]
    for f in range(1, 4):
        patt = patt + (zab[:, f * HW:(f + 1) * HW]
                       * zab[:, (4 + f) * HW:(5 + f) * HW])

    # ---------------- embedding-dim pooling attention (proj1 branch) --------
    z = jnp.dot(ee_ref[...], x2, preferred_element_type=f32)       # [8C, HW]
    emb = z[0:C] * z[4 * C:5 * C]
    for f in range(1, 4):
        emb = emb + z[f * C:(f + 1) * C] * z[(4 + f) * C:(5 + f) * C]

    # ---------------- proj0 + proj1 as ONE stacked depthwise conv -----------
    y2 = jnp.concatenate([patt, emb], axis=0)                      # [2C, HW]
    y2 = _dwconv3x3(y2, w01_ref[...], b01_ref[...], col, H, W)
    y = y2[0:C] + y2[C:2 * C]                                      # proj0(.) + proj1(.)

    # ---------------- GroupNorm (1 group) over the full [C, HW] block -------
    n = float(C * HW)
    s1 = jnp.sum(jnp.sum(y, axis=1, keepdims=True), axis=0, keepdims=True)
    s2 = jnp.sum(jnp.sum(y * y, axis=1, keepdims=True), axis=0, keepdims=True)
    mu = s1 / n
    var = s2 / n - mu * mu
    inv = jax.lax.rsqrt(var + eps)
    yn = (y - mu) * inv * g_ref[...] + bt_ref[...]

    # ---------------- proj2 --------------------------------------------------
    out = _dwconv3x3(yn, w2_ref[...], b2_ref[...], col, H, W)
    o_ref[0] = out.astype(o_ref.dtype)


# ----------------------------------------------------------------------------
# Wrapper
# ----------------------------------------------------------------------------
def pool_attn_pallas(x, w0, b0, w1, b1, w2, b2, gamma, beta, *, eps=1e-5):
    """x: [B, C, H, W]; w*: [C, 3, 3] depthwise conv weights; b*: [C];
    gamma/beta: [C] GroupNorm affine params."""
    B, C, H, W = x.shape
    assert C % 32 == 0, "PoolAttn requires C % 32 == 0 (x.view(B, H*W, 32, -1))"
    HW = H * W
    ST, EXP, EE = _build_constants(C, H, W)

    x_flat = x.reshape(B, C, HW)                        # free reshape (no transpose)
    # Stack proj0 / proj1 weights so the kernel runs them as one conv pass.
    w01 = jnp.concatenate([w0.reshape(C, 9), w1.reshape(C, 9)], axis=0)   # [2C, 9]
    b01 = jnp.concatenate([b0.reshape(C, 1), b1.reshape(C, 1)], axis=0)   # [2C, 1]
    w2_9 = w2.reshape(C, 9)
    b2_2 = b2.reshape(C, 1)
    g_2, bt_2 = gamma.reshape(C, 1), beta.reshape(C, 1)

    def _const(arr):
        nd = arr.ndim
        return pl.BlockSpec(tuple(arr.shape), lambda b: (0,) * nd)

    kernel = functools.partial(_pool_attn_kernel, C=C, H=H, W=W, eps=eps)
    out_flat = pl.pallas_call(
        kernel,
        out_shape=jax.ShapeDtypeStruct((B, C, HW), x.dtype),
        grid=(B,),
        in_specs=[
            pl.BlockSpec((1, C, HW), lambda b: (b, 0, 0)),
            _const(ST), _const(EXP), _const(EE),
            _const(w01), _const(b01),
            _const(w2_9), _const(b2_2),
            _const(g_2), _const(bt_2),
        ],
        out_specs=pl.BlockSpec((1, C, HW), lambda b: (b, 0, 0)),
        compiler_params=pltpu.CompilerParams(
            dimension_semantics=("parallel",),
            vmem_limit_bytes=64 << 20),
    )(x_flat, jnp.asarray(ST), jnp.asarray(EXP), jnp.asarray(EE),
      w01, b01, w2_9, b2_2, g_2, bt_2)
    return out_flat.reshape(B, C, H, W)


# ----------------------------------------------------------------------------
# Plain-JAX reference (same semantics as the PyTorch module)
# ----------------------------------------------------------------------------
def _dwconv_ref(y, w, b):
    B, C, H, W = y.shape
    out = jax.lax.conv_general_dilated(
        y, w[:, None, :, :], window_strides=(1, 1), padding=((1, 1), (1, 1)),
        dimension_numbers=('NCHW', 'OIHW', 'NCHW'), feature_group_count=C,
        precision=jax.lax.Precision.HIGHEST)
    return out + b[None, :, None, None]


def pool_attn_ref(x, w0, b0, w1, b1, w2, b2, gamma, beta, eps=1e-5):
    B, C, H, W = x.shape
    C32 = C // 32
    hp = jax.lax.Precision.HIGHEST
    Pw = jnp.asarray(_pool_matrix(W, 4))
    Ph = jnp.asarray(_pool_matrix(H, 4))
    Pc = jnp.asarray(_pool_matrix(C32, 4))
    P32 = jnp.asarray(_pool_matrix(32, 4))

    xp1 = jnp.einsum('bchw,wf->bchf', x, Pw, precision=hp)
    xp2 = jnp.einsum('bchw,hf->bcfw', x, Ph, precision=hp)
    patt = jnp.einsum('bchf,bcfw->bchw', xp1, xp2, precision=hp)
    patt = _dwconv_ref(patt, w0, b0)

    x1 = x.reshape(B, C, H * W).transpose(0, 2, 1).reshape(B, H * W, 32, C32)
    e1 = jnp.einsum('bpkc,cf->bpkf', x1, Pc, precision=hp)
    e2 = jnp.einsum('bpkc,kf->bpfc', x1, P32, precision=hp)
    emb = jnp.einsum('bpkf,bpfc->bpkc', e1, e2, precision=hp)
    emb = emb.reshape(B, H * W, C).transpose(0, 2, 1).reshape(B, C, H, W)
    emb = _dwconv_ref(emb, w1, b1)

    y = patt + emb
    mu = jnp.mean(y, axis=(1, 2, 3), keepdims=True)
    var = jnp.mean((y - mu) ** 2, axis=(1, 2, 3), keepdims=True)
    y = (y - mu) / jnp.sqrt(var + eps)
    y = y * gamma[None, :, None, None] + beta[None, :, None, None]
    return _dwconv_ref(y, w2, b2)


# ----------------------------------------------------------------------------
# Test
# ----------------------------------------------------------------------------
if __name__ == "__main__":
    key = jax.random.PRNGKey(0)
    ks = jax.random.split(key, 9)
    # Small shapes consistent with the forward pass: C must be a multiple of 32.
    B, C, H, W = 2, 64, 16, 16
    x = jax.random.normal(ks[0], (B, C, H, W), jnp.float32)
    w0 = 0.2 * jax.random.normal(ks[1], (C, 3, 3), jnp.float32)
    b0 = 0.1 * jax.random.normal(ks[2], (C,), jnp.float32)
    w1 = 0.2 * jax.random.normal(ks[3], (C, 3, 3), jnp.float32)
    b1 = 0.1 * jax.random.normal(ks[4], (C,), jnp.float32)
    w2 = 0.2 * jax.random.normal(ks[5], (C, 3, 3), jnp.float32)
    b2 = 0.1 * jax.random.normal(ks[6], (C,), jnp.float32)
    gamma = 1.0 + 0.1 * jax.random.normal(ks[7], (C,), jnp.float32)
    beta = 0.1 * jax.random.normal(ks[8], (C,), jnp.float32)

    out = pool_attn_pallas(x, w0, b0, w1, b1, w2, b2, gamma, beta)
    out = jax.block_until_ready(out)

    ref = pool_attn_ref(x, w0, b0, w1, b1, w2, b2, gamma, beta)
    assert out.shape == (B, C, H, W)
    max_err = float(jnp.max(jnp.abs(out - ref)))
    assert jnp.allclose(out, ref, atol=1e-2, rtol=1e-2), f"max abs err = {max_err}"
    print("KERNEL_OK")
</pallas_src>

<mosaic_0001>
module attributes {stable_mosaic.version = 11 : i64} {
  func.func @_pool_attn_kernel(%arg0: i32, %arg1: memref<1x64x256xf32, #tpu.memory_space<vmem>>, %arg2: memref<256x128xf32, #tpu.memory_space<vmem>>, %arg3: memref<128x2048xf32, #tpu.memory_space<vmem>>, %arg4: memref<512x64xf32, #tpu.memory_space<vmem>>, %arg5: memref<128x9xf32, #tpu.memory_space<vmem>>, %arg6: memref<128x1xf32, #tpu.memory_space<vmem>>, %arg7: memref<64x9xf32, #tpu.memory_space<vmem>>, %arg8: memref<64x1xf32, #tpu.memory_space<vmem>>, %arg9: memref<64x1xf32, #tpu.memory_space<vmem>>, %arg10: memref<64x1xf32, #tpu.memory_space<vmem>>, %arg11: memref<1x64x256xf32, #tpu.memory_space<vmem>>) attributes {dimension_semantics = [#tpu.dimension_semantics<parallel>], iteration_bounds = array<i64: 2>, scalar_prefetch = 0 : i64, scratch_operands = 0 : i64, tpu.core_type = #tpu.core_type<tc>, window_params = [{transform_indices = @transform_0, window_bounds = array<i64: 1, 64, 256>}, {pipeline_mode = #tpu.pipeline_mode<synchronous>, transform_indices = @transform_1, window_bounds = array<i64: 256, 128>}, {pipeline_mode = #tpu.pipeline_mode<synchronous>, transform_indices = @transform_2, window_bounds = array<i64: 128, 2048>}, {pipeline_mode = #tpu.pipeline_mode<synchronous>, transform_indices = @transform_3, window_bounds = array<i64: 512, 64>}, {pipeline_mode = #tpu.pipeline_mode<synchronous>, transform_indices = @transform_4, window_bounds = array<i64: 128, 9>}, {pipeline_mode = #tpu.pipeline_mode<synchronous>, transform_indices = @transform_5, window_bounds = array<i64: 128, 1>}, {pipeline_mode = #tpu.pipeline_mode<synchronous>, transform_indices = @transform_6, window_bounds = array<i64: 64, 9>}, {pipeline_mode = #tpu.pipeline_mode<synchronous>, transform_indices = @transform_7, window_bounds = array<i64: 64, 1>}, {pipeline_mode = #tpu.pipeline_mode<synchronous>, transform_indices = @transform_8, window_bounds = array<i64: 64, 1>}, {pipeline_mode = #tpu.pipeline_mode<synchronous>, transform_indices = @transform_9, window_bounds = array<i64: 64, 1>}, {transform_indices = @transform_10, window_bounds = array<i64: 1, 64, 256>}]} {
    %c0 = arith.constant 0 : index
    %c0_0 = arith.constant 0 : index
    %c0_1 = arith.constant 0 : index
    %0 = vector.load %arg1[%c0, %c0_0, %c0_1] : memref<1x64x256xf32, #tpu.memory_space<vmem>>, vector<1x64x256xf32>
    %1 = vector.shape_cast %0 : vector<1x64x256xf32> to vector<64x256xf32>
    %2 = tpu.iota {dimensions = array<i32: 1>} : vector<1x256xi32>
    %c16_i32 = arith.constant 16 : i32
    %c0_i32 = arith.constant 0 : i32
    %3 = arith.cmpi eq, %c16_i32, %c0_i32 : i32
    %c1_i32 = arith.constant 1 : i32
    %4 = arith.select %3, %c1_i32, %c16_i32 : i32
    %5 = vector.broadcast %4 : i32 to vector<1x256xi32>
    %6 = arith.remsi %2, %5 : vector<1x256xi32>
    %c0_i32_2 = arith.constant 0 : i32
    %7 = vector.broadcast %c0_i32_2 : i32 to vector<1x256xi32>
    %8 = arith.cmpi ne, %6, %7 : vector<1x256xi32>
    %c0_i32_3 = arith.constant 0 : i32
    %9 = vector.broadcast %c0_i32_3 : i32 to vector<1x256xi32>
    %10 = arith.cmpi slt, %6, %9 : vector<1x256xi32>
    %c0_i32_4 = arith.constant 0 : i32
    %11 = arith.cmpi slt, %4, %c0_i32_4 : i32
    %12 = vector.broadcast %11 : i1 to vector<1x256xi1>
    %13 = vector.broadcast %12 : vector<1x256xi1> to vector<1x256xi1>
    %14 = arith.xori %10, %13 : vector<1x256xi1>
    %15 = arith.andi %14, %8 : vector<1x256xi1>
    %16 = vector.broadcast %4 : i32 to vector<1x256xi32>
    %17 = arith.addi %6, %16 : vector<1x256xi32>
    %18 = arith.select %15, %17, %6 : vector<1x256xi1>, vector<1x256xi32>
    %c0_5 = arith.constant 0 : index
    %c0_6 = arith.constant 0 : index
    %19 = vector.load %arg2[%c0_5, %c0_6] : memref<256x128xf32, #tpu.memory_space<vmem>>, vector<256x128xf32>
    %cst = arith.constant dense<0.000000e+00> : vector<64x128xf32>
    %20 = tpu.matmul %1, %19, %cst {dimension_numbers = #tpu.dot_dimension_numbers<[1], [0], [0], [1], [0, 0, 1, 1], [], []>} : vector<64x256xf32>, vector<256x128xf32>, vector<64x128xf32> -> vector<64x128xf32>
    %c0_7 = arith.constant 0 : index
    %c0_8 = arith.constant 0 : index
    %21 = vector.load %arg3[%c0_7, %c0_8] : memref<128x2048xf32, #tpu.memory_space<vmem>>, vector<128x2048xf32>
    %cst_9 = arith.constant dense<0.000000e+00> : vector<64x2048xf32>
    %22 = tpu.matmul %20, %21, %cst_9 {dimension_numbers = #tpu.dot_dimension_numbers<[1], [0], [0], [1], [0, 0, 1, 1], [], []>} : vector<64x128xf32>, vector<128x2048xf32>, vector<64x2048xf32> -> vector<64x2048xf32>
    %23 = vector.extract_strided_slice %22 {offsets = [0, 0], sizes = [64, 256], strides = [1, 1]} : vector<64x2048xf32> to vector<64x256xf32>
    %24 = vector.extract_strided_slice %22 {offsets = [0, 1024], sizes = [64, 256], strides = [1, 1]} : vector<64x2048xf32> to vector<64x256xf32>
    %25 = arith.mulf %23, %24 : vector<64x256xf32>
    %26 = vector.extract_strided_slice %22 {offsets = [0, 256], sizes = [64, 256], strides = [1, 1]} : vector<64x2048xf32> to vector<64x256xf32>
    %27 = vector.extract_strided_slice %22 {offsets = [0, 1280], sizes = [64, 256], strides = [1, 1]} : vector<64x2048xf32> to vector<64x256xf32>
    %28 = arith.mulf %26, %27 : vector<64x256xf32>
    %29 = arith.addf %25, %28 : vector<64x256xf32>
    %30 = vector.extract_strided_slice %22 {offsets = [0, 512], sizes = [64, 256], strides = [1, 1]} : vector<64x2048xf32> to vector<64x256xf32>
    %31 = vector.extract_strided_slice %22 {offsets = [0, 1536], sizes = [64, 256], strides = [1, 1]} : vector<64x2048xf32> to vector<64x256xf32>
    %32 = arith.mulf %30, %31 : vector<64x256xf32>
    %33 = arith.addf %29, %32 : vector<64x256xf32>
    %34 = vector.extract_strided_slice %22 {offsets = [0, 768], sizes = [64, 256], strides = [1, 1]} : vector<64x2048xf32> to vector<64x256xf32>
    %35 = vector.extract_strided_slice %22 {offsets = [0, 1792], sizes = [64, 256], strides = [1, 1]} : vector<64x2048xf32> to vector<64x256xf32>
    %36 = arith.mulf %34, %35 : vector<64x256xf32>
    %37 = arith.addf %33, %36 : vector<64x256xf32>
    %c0_10 = arith.constant 0 : index
    %c0_11 = arith.constant 0 : index
    %38 = vector.load %arg4[%c0_10, %c0_11] : memref<512x64xf32, #tpu.memory_space<vmem>>, vector<512x64xf32>
    %cst_12 = arith.constant dense<0.000000e+00> : vector<512x256xf32>
    %39 = tpu.matmul %38, %1, %cst_12 {dimension_numbers = #tpu.dot_dimension_numbers<[1], [0], [0], [1], [0, 0, 1, 1], [], []>} : vector<512x64xf32>, vector<64x256xf32>, vector<512x256xf32> -> vector<512x256xf32>
    %40 = vector.extract_strided_slice %39 {offsets = [0, 0], sizes = [64, 256], strides = [1, 1]} : vector<512x256xf32> to vector<64x256xf32>
    %41 = vector.extract_strided_slice %39 {offsets = [256, 0], sizes = [64, 256], strides = [1, 1]} : vector<512x256xf32> to vector<64x256xf32>
    %42 = arith.mulf %40, %41 : vector<64x256xf32>
    %43 = vector.extract_strided_slice %39 {offsets = [64, 0], sizes = [64, 256], strides = [1, 1]} : vector<512x256xf32> to vector<64x256xf32>
    %44 = vector.extract_strided_slice %39 {offsets = [320, 0], sizes = [64, 256], strides = [1, 1]} : vector<512x256xf32> to vector<64x256xf32>
    %45 = arith.mulf %43, %44 : vector<64x256xf32>
    %46 = arith.addf %42, %45 : vector<64x256xf32>
    %47 = vector.extract_strided_slice %39 {offsets = [128, 0], sizes = [64, 256], strides = [1, 1]} : vector<512x256xf32> to vector<64x256xf32>
    %48 = vector.extract_strided_slice %39 {offsets = [384, 0], sizes = [64, 256], strides = [1, 1]} : vector<512x256xf32> to vector<64x256xf32>
    %49 = arith.mulf %47, %48 : vector<64x256xf32>
    %50 = arith.addf %46, %49 : vector<64x256xf32>
    %51 = vector.extract_strided_slice %39 {offsets = [192, 0], sizes = [64, 256], strides = [1, 1]} : vector<512x256xf32> to vector<64x256xf32>
    %52 = vector.extract_strided_slice %39 {offsets = [448, 0], sizes = [64, 256], strides = [1, 1]} : vector<512x256xf32> to vector<64x256xf32>
    %53 = arith.mulf %51, %52 : vector<64x256xf32>
    %54 = arith.addf %50, %53 : vector<64x256xf32>
    %55 = tpu.concatenate %37, %54 in 0 : vector<64x256xf32>, vector<64x256xf32> -> vector<128x256xf32>
    %c0_13 = arith.constant 0 : index
    %c0_14 = arith.constant 0 : index
    %56 = vector.load %arg5[%c0_13, %c0_14] : memref<128x9xf32, #tpu.memory_space<vmem>>, vector<128x9xf32>
    %c0_15 = arith.constant 0 : index
    %c0_16 = arith.constant 0 : index
    %57 = vector.load %arg6[%c0_15, %c0_16] : memref<128x1xf32, #tpu.memory_space<vmem>>, vector<128x1xf32>
    %cst_17 = arith.constant 0.000000e+00 : f32
    %58 = vector.broadcast %cst_17 : f32 to vector<128x17xf32>
    %59 = vector.extract_strided_slice %55 {offsets = [0, 0], sizes = [128, 239], strides = [1, 1]} : vector<128x256xf32> to vector<128x239xf32>
    %60 = tpu.concatenate %58, %59 in 1 : vector<128x17xf32>, vector<128x239xf32> -> vector<128x256xf32>
    %c1_i32_18 = arith.constant 1 : i32
    %61 = vector.broadcast %c1_i32_18 : i32 to vector<1x256xi32>
    %62 = arith.cmpi sge, %18, %61 : vector<1x256xi32>
    %cst_19 = arith.constant 0.000000e+00 : f32
    %63 = vector.shape_cast %62 : vector<1x256xi1> to vector<1x256xi1>
    %64 = vector.broadcast %63 : vector<1x256xi1> to vector<128x256xi1>
    %65 = vector.broadcast %cst_19 : f32 to vector<128x256xf32>
    %66 = arith.select %64, %60, %65 : vector<128x256xi1>, vector<128x256xf32>
    %67 = vector.extract_strided_slice %56 {offsets = [0, 0], sizes = [128, 1], strides = [1, 1]} : vector<128x9xf32> to vector<128x1xf32>
    %68 = vector.broadcast %67 : vector<128x1xf32> to vector<128x256xf32>
    %69 = arith.mulf %68, %66 : vector<128x256xf32>
    %cst_20 = arith.constant 0.000000e+00 : f32
    %70 = vector.broadcast %cst_20 : f32 to vector<128x16xf32>
    %71 = vector.extract_strided_slice %55 {offsets = [0, 0], sizes = [128, 240], strides = [1, 1]} : vector<128x256xf32> to vector<128x240xf32>
    %72 = tpu.concatenate %70, %71 in 1 : vector<128x16xf32>, vector<128x240xf32> -> vector<128x256xf32>
    %73 = vector.extract_strided_slice %56 {offsets = [0, 1], sizes = [128, 1], strides = [1, 1]} : vector<128x9xf32> to vector<128x1xf32>
    %74 = vector.broadcast %73 : vector<128x1xf32> to vector<128x256xf32>
    %75 = arith.mulf %74, %72 : vector<128x256xf32>
    %76 = arith.addf %69, %75 : vector<128x256xf32>
    %cst_21 = arith.constant 0.000000e+00 : f32
    %77 = vector.broadcast %cst_21 : f32 to vector<128x15xf32>
    %78 = vector.extract_strided_slice %55 {offsets = [0, 0], sizes = [128, 241], strides = [1, 1]} : vector<128x256xf32> to vector<128x241xf32>
    %79 = tpu.concatenate %77, %78 in 1 : vector<128x15xf32>, vector<128x241xf32> -> vector<128x256xf32>
    %c15_i32 = arith.constant 15 : i32
    %80 = vector.broadcast %c15_i32 : i32 to vector<1x256xi32>
    %81 = arith.cmpi slt, %18, %80 : vector<1x256xi32>
    %cst_22 = arith.constant 0.000000e+00 : f32
    %82 = vector.shape_cast %81 : vector<1x256xi1> to vector<1x256xi1>
    %83 = vector.broadcast %82 : vector<1x256xi1> to vector<128x256xi1>
    %84 = vector.broadcast %cst_22 : f32 to vector<128x256xf32>
    %85 = arith.select %83, %79, %84 : vector<128x256xi1>, vector<128x256xf32>
    %86 = vector.extract_strided_slice %56 {offsets = [0, 2], sizes = [128, 1], strides = [1, 1]} : vector<128x9xf32> to vector<128x1xf32>
    %87 = vector.broadcast %86 : vector<128x1xf32> to vector<128x256xf32>
    %88 = arith.mulf %87, %85 : vector<128x256xf32>
    %89 = arith.addf %76, %88 : vector<128x256xf32>
    %cst_23 = arith.constant 0.000000e+00 : f32
    %90 = vector.broadcast %cst_23 : f32 to vector<128x1xf32>
    %91 = vector.extract_strided_slice %55 {offsets = [0, 0], sizes = [128, 255], strides = [1, 1]} : vector<128x256xf32> to vector<128x255xf32>
    %92 = tpu.concatenate %90, %91 in 1 : vector<128x1xf32>, vector<128x255xf32> -> vector<128x256xf32>
    %c1_i32_24 = arith.constant 1 : i32
    %93 = vector.broadcast %c1_i32_24 : i32 to vector<1x256xi32>
    %94 = arith.cmpi sge, %18, %93 : vector<1x256xi32>
    %cst_25 = arith.constant 0.000000e+00 : f32
    %95 = vector.shape_cast %94 : vector<1x256xi1> to vector<1x256xi1>
    %96 = vector.broadcast %95 : vector<1x256xi1> to vector<128x256xi1>
    %97 = vector.broadcast %cst_25 : f32 to vector<128x256xf32>
    %98 = arith.select %96, %92, %97 : vector<128x256xi1>, vector<128x256xf32>
    %99 = vector.extract_strided_slice %56 {offsets = [0, 3], sizes = [128, 1], strides = [1, 1]} : vector<128x9xf32> to vector<128x1xf32>
    %100 = vector.broadcast %99 : vector<128x1xf32> to vector<128x256xf32>
    %101 = arith.mulf %100, %98 : vector<128x256xf32>
    %102 = arith.addf %89, %101 : vector<128x256xf32>
    %103 = vector.extract_strided_slice %56 {offsets = [0, 4], sizes = [128, 1], strides = [1, 1]} : vector<128x9xf32> to vector<128x1xf32>
    %104 = vector.broadcast %103 : vector<128x1xf32> to vector<128x256xf32>
    %105 = arith.mulf %104, %55 : vector<128x256xf32>
    %106 = arith.addf %102, %105 : vector<128x256xf32>
    %107 = vector.extract_strided_slice %55 {offsets = [0, 1], sizes = [128, 255], strides = [1, 1]} : vector<128x256xf32> to vector<128x255xf32>
    %cst_26 = arith.constant 0.000000e+00 : f32
    %108 = vector.broadcast %cst_26 : f32 to vector<128x1xf32>
    %109 = tpu.concatenate %107, %108 in 1 : vector<128x255xf32>, vector<128x1xf32> -> vector<128x256xf32>
    %c15_i32_27 = arith.constant 15 : i32
    %110 = vector.broadcast %c15_i32_27 : i32 to vector<1x256xi32>
    %111 = arith.cmpi slt, %18, %110 : vector<1x256xi32>
    %cst_28 = arith.constant 0.000000e+00 : f32
    %112 = vector.shape_cast %111 : vector<1x256xi1> to vector<1x256xi1>
    %113 = vector.broadcast %112 : vector<1x256xi1> to vector<128x256xi1>
    %114 = vector.broadcast %cst_28 : f32 to vector<128x256xf32>
    %115 = arith.select %113, %109, %114 : vector<128x256xi1>, vector<128x256xf32>
    %116 = vector.extract_strided_slice %56 {offsets = [0, 5], sizes = [128, 1], strides = [1, 1]} : vector<128x9xf32> to vector<128x1xf32>
    %117 = vector.broadcast %116 : vector<128x1xf32> to vector<128x256xf32>
    %118 = arith.mulf %117, %115 : vector<128x256xf32>
    %119 = arith.addf %106, %118 : vector<128x256xf32>
    %120 = vector.extract_strided_slice %55 {offsets = [0, 15], sizes = [128, 241], strides = [1, 1]} : vector<128x256xf32> to vector<128x241xf32>
    %cst_29 = arith.constant 0.000000e+00 : f32
    %121 = vector.broadcast %cst_29 : f32 to vector<128x15xf32>
    %122 = tpu.concatenate %120, %121 in 1 : vector<128x241xf32>, vector<128x15xf32> -> vector<128x256xf32>
    %c1_i32_30 = arith.constant 1 : i32
    %123 = vector.broadcast %c1_i32_30 : i32 to vector<1x256xi32>
    %124 = arith.cmpi sge, %18, %123 : vector<1x256xi32>
    %cst_31 = arith.constant 0.000000e+00 : f32
    %125 = vector.shape_cast %124 : vector<1x256xi1> to vector<1x256xi1>
    %126 = vector.broadcast %125 : vector<1x256xi1> to vector<128x256xi1>
    %127 = vector.broadcast %cst_31 : f32 to vector<128x256xf32>
    %128 = arith.select %126, %122, %127 : vector<128x256xi1>, vector<128x256xf32>
    %129 = vector.extract_strided_slice %56 {offsets = [0, 6], sizes = [128, 1], strides = [1, 1]} : vector<128x9xf32> to vector<128x1xf32>
    %130 = vector.broadcast %129 : vector<128x1xf32> to vector<128x256xf32>
    %131 = arith.mulf %130, %128 : vector<128x256xf32>
    %132 = arith.addf %119, %131 : vector<128x256xf32>
    %133 = vector.extract_strided_slice %55 {offsets = [0, 16], sizes = [128, 240], strides = [1, 1]} : vector<128x256xf32> to vector<128x240xf32>
    %cst_32 = arith.constant 0.000000e+00 : f32
    %134 = vector.broadcast %cst_32 : f32 to vector<128x16xf32>
    %135 = tpu.concatenate %133, %134 in 1 : vector<128x240xf32>, vector<128x16xf32> -> vector<128x256xf32>
    %136 = vector.extract_strided_slice %56 {offsets = [0, 7], sizes = [128, 1], strides = [1, 1]} : vector<128x9xf32> to vector<128x1xf32>
    %137 = vector.broadcast %136 : vector<128x1xf32> to vector<128x256xf32>
    %138 = arith.mulf %137, %135 : vector<128x256xf32>
    %139 = arith.addf %132, %138 : vector<128x256xf32>
    %140 = vector.extract_strided_slice %55 {offsets = [0, 17], sizes = [128, 239], strides = [1, 1]} : vector<128x256xf32> to vector<128x239xf32>
    %cst_33 = arith.constant 0.000000e+00 : f32
    %141 = vector.broadcast %cst_33 : f32 to vector<128x17xf32>
    %142 = tpu.concatenate %140, %141 in 1 : vector<128x239xf32>, vector<128x17xf32> -> vector<128x256xf32>
    %c15_i32_34 = arith.constant 15 : i32
    %143 = vector.broadcast %c15_i32_34 : i32 to vector<1x256xi32>
    %144 = arith.cmpi slt, %18, %143 : vector<1x256xi32>
    %cst_35 = arith.constant 0.000000e+00 : f32
    %145 = vector.shape_cast %144 : vector<1x256xi1> to vector<1x256xi1>
    %146 = vector.broadcast %145 : vector<1x256xi1> to vector<128x256xi1>
    %147 = vector.broadcast %cst_35 : f32 to vector<128x256xf32>
    %148 = arith.select %146, %142, %147 : vector<128x256xi1>, vector<128x256xf32>
    %149 = vector.extract_strided_slice %56 {offsets = [0, 8], sizes = [128, 1], strides = [1, 1]} : vector<128x9xf32> to vector<128x1xf32>
    %150 = vector.broadcast %149 : vector<128x1xf32> to vector<128x256xf32>
    %151 = arith.mulf %150, %148 : vector<128x256xf32>
    %152 = arith.addf %139, %151 : vector<128x256xf32>
    %153 = vector.broadcast %57 : vector<128x1xf32> to vector<128x256xf32>
    %154 = arith.addf %152, %153 : vector<128x256xf32>
    %155 = vector.extract_strided_slice %154 {offsets = [0, 0], sizes = [64, 256], strides = [1, 1]} : vector<128x256xf32> to vector<64x256xf32>
    %156 = vector.extract_strided_slice %154 {offsets = [64, 0], sizes = [64, 256], strides = [1, 1]} : vector<128x256xf32> to vector<64x256xf32>
    %157 = arith.addf %155, %156 : vector<64x256xf32>
    %cst_36 = arith.constant dense<0.000000e+00> : vector<64xf32>
    %158 = vector.multi_reduction <add>, %157, %cst_36 [1] : vector<64x256xf32> to vector<64xf32>
    %159 = vector.shape_cast %158 : vector<64xf32> to vector<64x1xf32>
    %cst_37 = arith.constant dense<0.000000e+00> : vector<1xf32>
    %160 = vector.multi_reduction <add>, %159, %cst_37 [0] : vector<64x1xf32> to vector<1xf32>
    %161 = vector.shape_cast %160 : vector<1xf32> to vector<1x1xf32>
    %162 = arith.mulf %157, %157 : vector<64x256xf32>
    %cst_38 = arith.constant dense<0.000000e+00> : vector<64xf32>
    %163 = vector.multi_reduction <add>, %162, %cst_38 [1] : vector<64x256xf32> to vector<64xf32>
    %164 = vector.shape_cast %163 : vector<64xf32> to vector<64x1xf32>
    %cst_39 = arith.constant dense<0.000000e+00> : vector<1xf32>
    %165 = vector.multi_reduction <add>, %164, %cst_39 [0] : vector<64x1xf32> to vector<1xf32>
    %166 = vector.shape_cast %165 : vector<1xf32> to vector<1x1xf32>
    %cst_40 = arith.constant 1.638400e+04 : f32
    %167 = vector.broadcast %cst_40 : f32 to vector<1x1xf32>
    %168 = arith.divf %161, %167 : vector<1x1xf32>
    %cst_41 = arith.constant 1.638400e+04 : f32
    %169 = vector.broadcast %cst_41 : f32 to vector<1x1xf32>
    %170 = arith.divf %166, %169 : vector<1x1xf32>
    %171 = arith.mulf %168, %168 : vector<1x1xf32>
    %172 = arith.subf %170, %171 : vector<1x1xf32>
    %cst_42 = arith.constant 9.99999974E-6 : f32
    %173 = vector.broadcast %cst_42 : f32 to vector<1x1xf32>
    %174 = arith.addf %172, %173 : vector<1x1xf32>
    %175 = math.rsqrt %174 : vector<1x1xf32>
    %176 = vector.broadcast %168 : vector<1x1xf32> to vector<64x256xf32>
    %177 = arith.subf %157, %176 : vector<64x256xf32>
    %178 = vector.broadcast %175 : vector<1x1xf32> to vector<64x256xf32>
    %179 = arith.mulf %177, %178 : vector<64x256xf32>
    %c0_43 = arith.constant 0 : index
    %c0_44 = arith.constant 0 : index
    %180 = vector.load %arg9[%c0_43, %c0_44] : memref<64x1xf32, #tpu.memory_space<vmem>>, vector<64x1xf32>
    %181 = vector.broadcast %180 : vector<64x1xf32> to vector<64x256xf32>
    %182 = arith.mulf %179, %181 : vector<64x256xf32>
    %c0_45 = arith.constant 0 : index
    %c0_46 = arith.constant 0 : index
    %183 = vector.load %arg10[%c0_45, %c0_46] : memref<64x1xf32, #tpu.memory_space<vmem>>, vector<64x1xf32>
    %184 = vector.broadcast %183 : vector<64x1xf32> to vector<64x256xf32>
    %185 = arith.addf %182, %184 : vector<64x256xf32>
    %c0_47 = arith.constant 0 : index
    %c0_48 = arith.constant 0 : index
    %186 = vector.load %arg7[%c0_47, %c0_48] : memref<64x9xf32, #tpu.memory_space<vmem>>, vector<64x9xf32>
    %c0_49 = arith.constant 0 : index
    %c0_50 = arith.constant 0 : index
    %187 = vector.load %arg8[%c0_49, %c0_50] : memref<64x1xf32, #tpu.memory_space<vmem>>, vector<64x1xf32>
    %cst_51 = arith.constant 0.000000e+00 : f32
    %188 = vector.broadcast %cst_51 : f32 to vector<64x17xf32>
    %189 = vector.extract_strided_slice %185 {offsets = [0, 0], sizes = [64, 239], strides = [1, 1]} : vector<64x256xf32> to vector<64x239xf32>
    %190 = tpu.concatenate %188, %189 in 1 : vector<64x17xf32>, vector<64x239xf32> -> vector<64x256xf32>
    %c1_i32_52 = arith.constant 1 : i32
    %191 = vector.broadcast %c1_i32_52 : i32 to vector<1x256xi32>
    %192 = arith.cmpi sge, %18, %191 : vector<1x256xi32>
    %cst_53 = arith.constant 0.000000e+00 : f32
    %193 = vector.shape_cast %192 : vector<1x256xi1> to vector<1x256xi1>
    %194 = vector.broadcast %193 : vector<1x256xi1> to vector<64x256xi1>
    %195 = vector.broadcast %cst_53 : f32 to vector<64x256xf32>
    %196 = arith.select %194, %190, %195 : vector<64x256xi1>, vector<64x256xf32>
    %197 = vector.extract_strided_slice %186 {offsets = [0, 0], sizes = [64, 1], strides = [1, 1]} : vector<64x9xf32> to vector<64x1xf32>
    %198 = vector.broadcast %197 : vector<64x1xf32> to vector<64x256xf32>
    %199 = arith.mulf %198, %196 : vector<64x256xf32>
    %cst_54 = arith.constant 0.000000e+00 : f32
    %200 = vector.broadcast %cst_54 : f32 to vector<64x16xf32>
    %201 = vector.extract_strided_slice %185 {offsets = [0, 0], sizes = [64, 240], strides = [1, 1]} : vector<64x256xf32> to vector<64x240xf32>
    %202 = tpu.concatenate %200, %201 in 1 : vector<64x16xf32>, vector<64x240xf32> -> vector<64x256xf32>
    %203 = vector.extract_strided_slice %186 {offsets = [0, 1], sizes = [64, 1], strides = [1, 1]} : vector<64x9xf32> to vector<64x1xf32>
    %204 = vector.broadcast %203 : vector<64x1xf32> to vector<64x256xf32>
    %205 = arith.mulf %204, %202 : vector<64x256xf32>
    %206 = arith.addf %199, %205 : vector<64x256xf32>
    %cst_55 = arith.constant 0.000000e+00 : f32
    %207 = vector.broadcast %cst_55 : f32 to vector<64x15xf32>
    %208 = vector.extract_strided_slice %185 {offsets = [0, 0], sizes = [64, 241], strides = [1, 1]} : vector<64x256xf32> to vector<64x241xf32>
    %209 = tpu.concatenate %207, %208 in 1 : vector<64x15xf32>, vector<64x241xf32> -> vector<64x256xf32>
    %c15_i32_56 = arith.constant 15 : i32
    %210 = vector.broadcast %c15_i32_56 : i32 to vector<1x256xi32>
    %211 = arith.cmpi slt, %18, %210 : vector<1x256xi32>
    %cst_57 = arith.constant 0.000000e+00 : f32
    %212 = vector.shape_cast %211 : vector<1x256xi1> to vector<1x256xi1>
    %213 = vector.broadcast %212 : vector<1x256xi1> to vector<64x256xi1>
    %214 = vector.broadcast %cst_57 : f32 to vector<64x256xf32>
    %215 = arith.select %213, %209, %214 : vector<64x256xi1>, vector<64x256xf32>
    %216 = vector.extract_strided_slice %186 {offsets = [0, 2], sizes = [64, 1], strides = [1, 1]} : vector<64x9xf32> to vector<64x1xf32>
    %217 = vector.broadcast %216 : vector<64x1xf32> to vector<64x256xf32>
    %218 = arith.mulf %217, %215 : vector<64x256xf32>
    %219 = arith.addf %206, %218 : vector<64x256xf32>
    %cst_58 = arith.constant 0.000000e+00 : f32
    %220 = vector.broadcast %cst_58 : f32 to vector<64x1xf32>
    %221 = vector.extract_strided_slice %185 {offsets = [0, 0], sizes = [64, 255], strides = [1, 1]} : vector<64x256xf32> to vector<64x255xf32>
    %222 = tpu.concatenate %220, %221 in 1 : vector<64x1xf32>, vector<64x255xf32> -> vector<64x256xf32>
    %c1_i32_59 = arith.constant 1 : i32
    %223 = vector.broadcast %c1_i32_59 : i32 to vector<1x256xi32>
    %224 = arith.cmpi sge, %18, %223 : vector<1x256xi32>
    %cst_60 = arith.constant 0.000000e+00 : f32
    %225 = vector.shape_cast %224 : vector<1x256xi1> to vector<1x256xi1>
    %226 = vector.broadcast %225 : vector<1x256xi1> to vector<64x256xi1>
    %227 = vector.broadcast %cst_60 : f32 to vector<64x256xf32>
    %228 = arith.select %226, %222, %227 : vector<64x256xi1>, vector<64x256xf32>
    %229 = vector.extract_strided_slice %186 {offsets = [0, 3], sizes = [64, 1], strides = [1, 1]} : vector<64x9xf32> to vector<64x1xf32>
    %230 = vector.broadcast %229 : vector<64x1xf32> to vector<64x256xf32>
    %231 = arith.mulf %230, %228 : vector<64x256xf32>
    %232 = arith.addf %219, %231 : vector<64x256xf32>
    %233 = vector.extract_strided_slice %186 {offsets = [0, 4], sizes = [64, 1], strides = [1, 1]} : vector<64x9xf32> to vector<64x1xf32>
    %234 = vector.broadcast %233 : vector<64x1xf32> to vector<64x256xf32>
    %235 = arith.mulf %234, %185 : vector<64x256xf32>
    %236 = arith.addf %232, %235 : vector<64x256xf32>
    %237 = vector.extract_strided_slice %185 {offsets = [0, 1], sizes = [64, 255], strides = [1, 1]} : vector<64x256xf32> to vector<64x255xf32>
    %cst_61 = arith.constant 0.000000e+00 : f32
    %238 = vector.broadcast %cst_61 : f32 to vector<64x1xf32>
    %239 = tpu.concatenate %237, %238 in 1 : vector<64x255xf32>, vector<64x1xf32> -> vector<64x256xf32>
    %c15_i32_62 = arith.constant 15 : i32
    %240 = vector.broadcast %c15_i32_62 : i32 to vector<1x256xi32>
    %241 = arith.cmpi slt, %18, %240 : vector<1x256xi32>
    %cst_63 = arith.constant 0.000000e+00 : f32
    %242 = vector.shape_cast %241 : vector<1x256xi1> to vector<1x256xi1>
    %243 = vector.broadcast %242 : vector<1x256xi1> to vector<64x256xi1>
    %244 = vector.broadcast %cst_63 : f32 to vector<64x256xf32>
    %245 = arith.select %243, %239, %244 : vector<64x256xi1>, vector<64x256xf32>
    %246 = vector.extract_strided_slice %186 {offsets = [0, 5], sizes = [64, 1], strides = [1, 1]} : vector<64x9xf32> to vector<64x1xf32>
    %247 = vector.broadcast %246 : vector<64x1xf32> to vector<64x256xf32>
    %248 = arith.mulf %247, %245 : vector<64x256xf32>
    %249 = arith.addf %236, %248 : vector<64x256xf32>
    %250 = vector.extract_strided_slice %185 {offsets = [0, 15], sizes = [64, 241], strides = [1, 1]} : vector<64x256xf32> to vector<64x241xf32>
    %cst_64 = arith.constant 0.000000e+00 : f32
    %251 = vector.broadcast %cst_64 : f32 to vector<64x15xf32>
    %252 = tpu.concatenate %250, %251 in 1 : vector<64x241xf32>, vector<64x15xf32> -> vector<64x256xf32>
    %c1_i32_65 = arith.constant 1 : i32
    %253 = vector.broadcast %c1_i32_65 : i32 to vector<1x256xi32>
    %254 = arith.cmpi sge, %18, %253 : vector<1x256xi32>
    %cst_66 = arith.constant 0.000000e+00 : f32
    %255 = vector.shape_cast %254 : vector<1x256xi1> to vector<1x256xi1>
    %256 = vector.broadcast %255 : vector<1x256xi1> to vector<64x256xi1>
    %257 = vector.broadcast %cst_66 : f32 to vector<64x256xf32>
    %258 = arith.select %256, %252, %257 : vector<64x256xi1>, vector<64x256xf32>
    %259 = vector.extract_strided_slice %186 {offsets = [0, 6], sizes = [64, 1], strides = [1, 1]} : vector<64x9xf32> to vector<64x1xf32>
    %260 = vector.broadcast %259 : vector<64x1xf32> to vector<64x256xf32>
    %261 = arith.mulf %260, %258 : vector<64x256xf32>
    %262 = arith.addf %249, %261 : vector<64x256xf32>
    %263 = vector.extract_strided_slice %185 {offsets = [0, 16], sizes = [64, 240], strides = [1, 1]} : vector<64x256xf32> to vector<64x240xf32>
    %cst_67 = arith.constant 0.000000e+00 : f32
    %264 = vector.broadcast %cst_67 : f32 to vector<64x16xf32>
    %265 = tpu.concatenate %263, %264 in 1 : vector<64x240xf32>, vector<64x16xf32> -> vector<64x256xf32>
    %266 = vector.extract_strided_slice %186 {offsets = [0, 7], sizes = [64, 1], strides = [1, 1]} : vector<64x9xf32> to vector<64x1xf32>
    %267 = vector.broadcast %266 : vector<64x1xf32> to vector<64x256xf32>
    %268 = arith.mulf %267, %265 : vector<64x256xf32>
    %269 = arith.addf %262, %268 : vector<64x256xf32>
    %270 = vector.extract_strided_slice %185 {offsets = [0, 17], sizes = [64, 239], strides = [1, 1]} : vector<64x256xf32> to vector<64x239xf32>
    %cst_68 = arith.constant 0.000000e+00 : f32
    %271 = vector.broadcast %cst_68 : f32 to vector<64x17xf32>
    %272 = tpu.concatenate %270, %271 in 1 : vector<64x239xf32>, vector<64x17xf32> -> vector<64x256xf32>
    %c15_i32_69 = arith.constant 15 : i32
    %273 = vector.broadcast %c15_i32_69 : i32 to vector<1x256xi32>
    %274 = arith.cmpi slt, %18, %273 : vector<1x256xi32>
    %cst_70 = arith.constant 0.000000e+00 : f32
    %275 = vector.shape_cast %274 : vector<1x256xi1> to vector<1x256xi1>
    %276 = vector.broadcast %275 : vector<1x256xi1> to vector<64x256xi1>
    %277 = vector.broadcast %cst_70 : f32 to vector<64x256xf32>
    %278 = arith.select %276, %272, %277 : vector<64x256xi1>, vector<64x256xf32>
    %279 = vector.extract_strided_slice %186 {offsets = [0, 8], sizes = [64, 1], strides = [1, 1]} : vector<64x9xf32> to vector<64x1xf32>
    %280 = vector.broadcast %279 : vector<64x1xf32> to vector<64x256xf32>
    %281 = arith.mulf %280, %278 : vector<64x256xf32>
    %282 = arith.addf %269, %281 : vector<64x256xf32>
    %283 = vector.broadcast %187 : vector<64x1xf32> to vector<64x256xf32>
    %284 = arith.addf %282, %283 : vector<64x256xf32>
    %c0_71 = arith.constant 0 : index
    %c0_72 = arith.constant 0 : index
    %c0_73 = arith.constant 0 : index
    %285 = vector.load %arg11[%c0_71, %c0_72, %c0_73] : memref<1x64x256xf32, #tpu.memory_space<vmem>>, vector<1x64x256xf32>
    %286 = vector.shape_cast %285 : vector<1x64x256xf32> to vector<64x256xf32>
    %287 = vector.shape_cast %284 : vector<64x256xf32> to vector<1x64x256xf32>
    tpu.vector_store %arg11[%c0_71, %c0_72, %c0_73], %287 {strides = array<i32>} : memref<1x64x256xf32, #tpu.memory_space<vmem>>, vector<1x64x256xf32>,
    return
  }
  func.func @transform_0(%arg0: i32) -> (i32, i32, i32) {
    %c0_i32 = arith.constant 0 : i32
    %c0_i32_0 = arith.constant 0 : i32
    %c0_i32_1 = arith.constant 0 : i32
    return %arg0, %c0_i32, %c0_i32_0 : i32, i32, i32
  }
  func.func @transform_1(%arg0: i32) -> (i32, i32) {
    %c0_i32 = arith.constant 0 : i32
    %c0_i32_0 = arith.constant 0 : i32
    %c0_i32_1 = arith.constant 0 : i32
    return %c0_i32, %c0_i32_0 : i32, i32
  }
  func.func @transform_2(%arg0: i32) -> (i32, i32) {
    %c0_i32 = arith.constant 0 : i32
    %c0_i32_0 = arith.constant 0 : i32
    %c0_i32_1 = arith.constant 0 : i32
    return %c0_i32, %c0_i32_0 : i32, i32
  }
  func.func @transform_3(%arg0: i32) -> (i32, i32) {
    %c0_i32 = arith.constant 0 : i32
    %c0_i32_0 = arith.constant 0 : i32
    %c0_i32_1 = arith.constant 0 : i32
    return %c0_i32, %c0_i32_0 : i32, i32
  }
  func.func @transform_4(%arg0: i32) -> (i32, i32) {
    %c0_i32 = arith.constant 0 : i32
    %c0_i32_0 = arith.constant 0 : i32
    %c0_i32_1 = arith.constant 0 : i32
    return %c0_i32, %c0_i32_0 : i32, i32
  }
  func.func @transform_5(%arg0: i32) -> (i32, i32) {
    %c0_i32 = arith.constant 0 : i32
    %c0_i32_0 = arith.constant 0 : i32
    %c0_i32_1 = arith.constant 0 : i32
    return %c0_i32, %c0_i32_0 : i32, i32
  }
  func.func @transform_6(%arg0: i32) -> (i32, i32) {
    %c0_i32 = arith.constant 0 : i32
    %c0_i32_0 = arith.constant 0 : i32
    %c0_i32_1 = arith.constant 0 : i32
    return %c0_i32, %c0_i32_0 : i32, i32
  }
  func.func @transform_7(%arg0: i32) -> (i32, i32) {
    %c0_i32 = arith.constant 0 : i32
    %c0_i32_0 = arith.constant 0 : i32
    %c0_i32_1 = arith.constant 0 : i32
    return %c0_i32, %c0_i32_0 : i32, i32
  }
  func.func @transform_8(%arg0: i32) -> (i32, i32) {
    %c0_i32 = arith.constant 0 : i32
    %c0_i32_0 = arith.constant 0 : i32
    %c0_i32_1 = arith.constant 0 : i32
    return %c0_i32, %c0_i32_0 : i32, i32
  }
  func.func @transform_9(%arg0: i32) -> (i32, i32) {
    %c0_i32 = arith.constant 0 : i32
    %c0_i32_0 = arith.constant 0 : i32
    %c0_i32_1 = arith.constant 0 : i32
    return %c0_i32, %c0_i32_0 : i32, i32
  }
  func.func @transform_10(%arg0: i32) -> (i32, i32, i32) {
    %c0_i32 = arith.constant 0 : i32
    %c0_i32_0 = arith.constant 0 : i32
    %c0_i32_1 = arith.constant 0 : i32
    return %arg0, %c0_i32, %c0_i32_0 : i32, i32, i32
  }
}

</mosaic_0001>

<llo_original>
// kernel: tpu_custom_call.1
$region0: #{tpu_custom_call.1}
  #allocation0 [shape = 'u32[]', space=smem, size = 0x4, offset = 0x4, fixed_abs, tag = 'smem constant byte address 0x4 - core index']
  #allocation1 [shape = 'u32[72,128]{1,0:T(1,128)}', space=vmem, size = 0x9000, scoped, tag = 'internal scratch']
  %s0 = inlined_call_operand.vmem [shape: f32[2,64,256], index: 0, kind: input, shape index: {}]
  %s1 = inlined_call_operand.vmem [shape: f32[256,128], index: 1, kind: input, shape index: {}]
  %s2 = inlined_call_operand.hbm [shape: f32[128,2048], index: 2, kind: input, shape index: {}]
  %s3 = inlined_call_operand.vmem [shape: f32[512,64], index: 3, kind: input, shape index: {}]
  %s4 = inlined_call_operand.vmem [shape: f32[128,9], index: 4, kind: input, shape index: {}]
  %s5 = inlined_call_operand.vmem [shape: f32[128,1], index: 5, kind: input, shape index: {}]
  %s6 = inlined_call_operand.vmem [shape: f32[64,9], index: 6, kind: input, shape index: {}]
  %s7 = inlined_call_operand.vmem [shape: f32[64,1], index: 7, kind: input, shape index: {}]
  %s8 = inlined_call_operand.vmem [shape: f32[64,1], index: 8, kind: input, shape index: {}]
  %s9 = inlined_call_operand.vmem [shape: f32[64,1], index: 9, kind: input, shape index: {}]
  %s10 = inlined_call_operand.hbm [shape: f32[2,64,256], index: 10, kind: output, shape index: {}]
  %s11 = sld [smem:[#allocation0]]
  $region77: #{tpu_custom_call.1} parent=0
    _
  %s13 = ssub.s32 1, %s11
  %s14 = scalar_select 0, %s13, %s11
  $region1: #{tpu_custom_call.1} parent=0
    #allocation2 [shape = 'u8[1048576]{0}', space=vmem, size = 0x100000, scoped, tag = 'input window, operand 2, single buffered']
    #allocation3 [shape = 's32[2]{0}', space=sflag, size = 0x8, scoped, tag = 'scoped memory for tpu_custom_call.1']
    #allocation4 [shape = 's32[2]{0}', space=sflag, size = 0x8, scoped, tag = 'scoped memory for tpu_custom_call.1']
    #allocation5 [shape = 'u8[131072]{0}', space=vmem, size = 0x20000, scoped, tag = 'output window, operand 0']
    %15 = vsyncpa [#allocation3], 0
    %16 = vsyncpa [#allocation4], 0
    %s17 = scalar_lea.sflag [#allocation4], 1
    %18 = vsyncpa %s17, 0
    loop: start=0, step=1, limit=4
    $region2: #{tpu_custom_call.1} parent=1 // loop_pre_header
      _
    $region3: #{tpu_custom_call.1} parent=1 // loop_header
      %s20 = sphi 0, %s24
      %p21 = scmp.ge.s32.totalorder %s20, 4
      %s30 = sphi 0, %s32
      %s33 = sphi 0, %s30
      %s34 = sphi 0, %s33
      %s50 = sphi 0, %s34
      %s54 = sphi 0, %s54
      %s56 = sphi 0, %s54
      %s57 = sphi 0, %s56
      %s71 = sphi 0, %s57
      %s75 = sphi 0, %s75
      %s77 = sphi 0, %s75
      %s78 = sphi 0, %s77
      %s92 = sphi 0, %s78
      %s96 = sphi 0, %s96
      %s98 = sphi 0, %s96
      %s99 = sphi 0, %s98
      %s113 = sphi 0, %s99
      %s117 = sphi 0, %s117
      %s119 = sphi 0, %s117
      %s120 = sphi 0, %s119
      %s134 = sphi 0, %s120
      %s138 = sphi 0, %s138
      %s140 = sphi 0, %s138
      %s141 = sphi 0, %s140
      %s155 = sphi 0, %s141
      %s159 = sphi 0, %s159
      %s161 = sphi 0, %s159
      %s162 = sphi 0, %s161
      %s176 = sphi 0, %s162
      %s180 = sphi 0, %s180
      %s182 = sphi 0, %s180
      %s183 = sphi 0, %s182
      %s197 = sphi 0, %s183
      %s201 = sphi 0, %s201
      %s203 = sphi 0, %s201
      %s204 = sphi 0, %s203
      %s218 = sphi 0, %s204
      %s222 = sphi 0, %s222
      %s224 = sphi 0, %s222
      %s225 = sphi 0, %s224
      %s239 = sphi 0, %s225
      %s245 = sphi 0, %s247
      %s248 = sphi 0, %s245
      %s249 = sphi 0, %s248
      %s265 = sphi 0, %s249
    $region4: #{tpu_custom_call.1} parent=1 // loop_header_branch
      %23 = sbr.rel (%p21) target = $region8
    $region5: #{tpu_custom_call.1} parent=1 // loop_body
      %s25 = ssub.s32 %s20, 1
      %s26 = ssub.s32 %s20, 2
      %s27 = sadd.s32 %s20, 1
      %s28 = ssub.s32 %s20, %s27
      %p29 = scmp.eq.s32.totalorder %s28, 0
      %s31 = sadd.s32 %s30, 1
      %s32 = scalar_select %p29, %s30, %s31
      %p35 = pneg %p29
      %p36 = scmp.eq.s32.totalorder %s20, 1
      %p37 = por %p35, %p36
      %p38 = scmp.ne.s32.totalorder %s30, %s33
      %p39 = scmp.eq.s32.totalorder %s20, 0
      %p40 = por %p38, %p39
      %p41 = scmp.ne.s32.totalorder %s30, %s33
      %p42 = scmp.eq.s32.totalorder %s25, 1
      %p43 = por %p41, %p42
      %p44 = scmp.ne.s32.totalorder %s33, %s34
      %p45 = scmp.eq.s32.totalorder %s25, 0
      %p46 = por %p44, %p45
      %p47 = scmp.ne.s32.totalorder %s33, %s34
      %p48 = scmp.eq.s32.totalorder %s26, 1
      %p49 = por %p47, %p48
      %p51 = scmp.ne.s32.totalorder %s34, %s50
      %p52 = scmp.eq.s32.totalorder %s26, 0
      %p53 = por %p51, %p52
      %s55 = sadd.s32 %s54, 1
      %p58 = scmp.eq.s32.totalorder %s20, 1
      %p59 = scmp.ne.s32.totalorder %s54, %s56
      %p60 = scmp.eq.s32.totalorder %s20, 0
      %p61 = por %p59, %p60
      %p62 = scmp.ne.s32.totalorder %s54, %s56
      %p63 = scmp.eq.s32.totalorder %s25, 1
      %p64 = por %p62, %p63
      %p65 = scmp.ne.s32.totalorder %s56, %s57
      %p66 = scmp.eq.s32.totalorder %s25, 0
      %p67 = por %p65, %p66
      %p68 = scmp.ne.s32.totalorder %s56, %s57
      %p69 = scmp.eq.s32.totalorder %s26, 1
      %p70 = por %p68, %p69
      %p72 = scmp.ne.s32.totalorder %s57, %s71
      %p73 = scmp.eq.s32.totalorder %s26, 0
      %p74 = por %p72, %p73
      %s76 = sadd.s32 %s75, 1
      %p79 = scmp.eq.s32.totalorder %s20, 1
      %p80 = scmp.ne.s32.totalorder %s75, %s77
      %p81 = scmp.eq.s32.totalorder %s20, 0
      %p82 = por %p80, %p81
      %p83 = scmp.ne.s32.totalorder %s75, %s77
      %p84 = scmp.eq.s32.totalorder %s25, 1
      %p85 = por %p83, %p84
      %p86 = scmp.ne.s32.totalorder %s77, %s78
      %p87 = scmp.eq.s32.totalorder %s25, 0
      %p88 = por %p86, %p87
      %p89 = scmp.ne.s32.totalorder %s77, %s78
      %p90 = scmp.eq.s32.totalorder %s26, 1
      %p91 = por %p89, %p90
      %p93 = scmp.ne.s32.totalorder %s78, %s92
      %p94 = scmp.eq.s32.totalorder %s26, 0
      %p95 = por %p93, %p94
      %s97 = sadd.s32 %s96, 1
      %p100 = scmp.eq.s32.totalorder %s20, 1
      %p101 = scmp.ne.s32.totalorder %s96, %s98
      %p102 = scmp.eq.s32.totalorder %s20, 0
      %p103 = por %p101, %p102
      %p104 = scmp.ne.s32.totalorder %s96, %s98
      %p105 = scmp.eq.s32.totalorder %s25, 1
      %p106 = por %p104, %p105
      %p107 = scmp.ne.s32.totalorder %s98, %s99
      %p108 = scmp.eq.s32.totalorder %s25, 0
      %p109 = por %p107, %p108
      %p110 = scmp.ne.s32.totalorder %s98, %s99
      %p111 = scmp.eq.s32.totalorder %s26, 1
      %p112 = por %p110, %p111
      %p114 = scmp.ne.s32.totalorder %s99, %s113
      %p115 = scmp.eq.s32.totalorder %s26, 0
      %p116 = por %p114, %p115
      %s118 = sadd.s32 %s117, 1
      %p121 = scmp.eq.s32.totalorder %s20, 1
      %p122 = scmp.ne.s32.totalorder %s117, %s119
      %p123 = scmp.eq.s32.totalorder %s20, 0
      %p124 = por %p122, %p123
      %p125 = scmp.ne.s32.totalorder %s117, %s119
      %p126 = scmp.eq.s32.totalorder %s25, 1
      %p127 = por %p125, %p126
      %p128 = scmp.ne.s32.totalorder %s119, %s120
      %p129 = scmp.eq.s32.totalorder %s25, 0
      %p130 = por %p128, %p129
      %p131 = scmp.ne.s32.totalorder %s119, %s120
      %p132 = scmp.eq.s32.totalorder %s26, 1
      %p133 = por %p131, %p132
      %p135 = scmp.ne.s32.totalorder %s120, %s134
      %p136 = scmp.eq.s32.totalorder %s26, 0
      %p137 = por %p135, %p136
      %s139 = sadd.s32 %s138, 1
      %p142 = scmp.eq.s32.totalorder %s20, 1
      %p143 = scmp.ne.s32.totalorder %s138, %s140
      %p144 = scmp.eq.s32.totalorder %s20, 0
      %p145 = por %p143, %p144
      %p146 = scmp.ne.s32.totalorder %s138, %s140
      %p147 = scmp.eq.s32.totalorder %s25, 1
      %p148 = por %p146, %p147
      %p149 = scmp.ne.s32.totalorder %s140, %s141
      %p150 = scmp.eq.s32.totalorder %s25, 0
      %p151 = por %p149, %p150
      %p152 = scmp.ne.s32.totalorder %s140, %s141
      %p153 = scmp.eq.s32.totalorder %s26, 1
      %p154 = por %p152, %p153
      %p156 = scmp.ne.s32.totalorder %s141, %s155
      %p157 = scmp.eq.s32.totalorder %s26, 0
      %p158 = por %p156, %p157
      %s160 = sadd.s32 %s159, 1
      %p163 = scmp.eq.s32.totalorder %s20, 1
      %p164 = scmp.ne.s32.totalorder %s159, %s161
      %p165 = scmp.eq.s32.totalorder %s20, 0
      %p166 = por %p164, %p165
      %p167 = scmp.ne.s32.totalorder %s159, %s161
      %p168 = scmp.eq.s32.totalorder %s25, 1
      %p169 = por %p167, %p168
      %p170 = scmp.ne.s32.totalorder %s161, %s162
      %p171 = scmp.eq.s32.totalorder %s25, 0
      %p172 = por %p170, %p171
      %p173 = scmp.ne.s32.totalorder %s161, %s162
      %p174 = scmp.eq.s32.totalorder %s26, 1
      %p175 = por %p173, %p174
      %p177 = scmp.ne.s32.totalorder %s162, %s176
      %p178 = scmp.eq.s32.totalorder %s26, 0
      %p179 = por %p177, %p178
      %s181 = sadd.s32 %s180, 1
      %p184 = scmp.eq.s32.totalorder %s20, 1
      %p185 = scmp.ne.s32.totalorder %s180, %s182
      %p186 = scmp.eq.s32.totalorder %s20, 0
      %p187 = por %p185, %p186
      %p188 = scmp.ne.s32.totalorder %s180, %s182
      %p189 = scmp.eq.s32.totalorder %s25, 1
      %p190 = por %p188, %p189
      %p191 = scmp.ne.s32.totalorder %s182, %s183
      %p192 = scmp.eq.s32.totalorder %s25, 0
      %p193 = por %p191, %p192
      %p194 = scmp.ne.s32.totalorder %s182, %s183
      %p195 = scmp.eq.s32.totalorder %s26, 1
      %p196 = por %p194, %p195
      %p198 = scmp.ne.s32.totalorder %s183, %s197
      %p199 = scmp.eq.s32.totalorder %s26, 0
      %p200 = por %p198, %p199
      %s202 = sadd.s32 %s201, 1
      %p205 = scmp.eq.s32.totalorder %s20, 1
      %p206 = scmp.ne.s32.totalorder %s201, %s203
      %p207 = scmp.eq.s32.totalorder %s20, 0
      %p208 = por %p206, %p207
      %p209 = scmp.ne.s32.totalorder %s201, %s203
      %p210 = scmp.eq.s32.totalorder %s25, 1
      %p211 = por %p209, %p210
      %p212 = scmp.ne.s32.totalorder %s203, %s204
      %p213 = scmp.eq.s32.totalorder %s25, 0
      %p214 = por %p212, %p213
      %p215 = scmp.ne.s32.totalorder %s203, %s204
      %p216 = scmp.eq.s32.totalorder %s26, 1
      %p217 = por %p215, %p216
      %p219 = scmp.ne.s32.totalorder %s204, %s218
      %p220 = scmp.eq.s32.totalorder %s26, 0
      %p221 = por %p219, %p220
      %s223 = sadd.s32 %s222, 1
      %p226 = scmp.eq.s32.totalorder %s20, 1
      %p227 = scmp.ne.s32.totalorder %s222, %s224
      %p228 = scmp.eq.s32.totalorder %s20, 0
      %p229 = por %p227, %p228
      %p230 = scmp.ne.s32.totalorder %s222, %s224
      %p231 = scmp.eq.s32.totalorder %s25, 1
      %p232 = por %p230, %p231
      %p233 = scmp.ne.s32.totalorder %s224, %s225
      %p234 = scmp.eq.s32.totalorder %s25, 0
      %p235 = por %p233, %p234
      %p236 = scmp.ne.s32.totalorder %s224, %s225
      %p237 = scmp.eq.s32.totalorder %s26, 1
      %p238 = por %p236, %p237
      %p240 = scmp.ne.s32.totalorder %s225, %s239
      %p241 = scmp.eq.s32.totalorder %s26, 0
      %p242 = por %p240, %p241
      %s243 = ssub.s32 %s20, %s27
      %p244 = scmp.eq.s32.totalorder %s243, 0
      %s246 = sadd.s32 %s245, 1
      %s247 = scalar_select %p244, %s245, %s246
      %p250 = pneg %p244
      %p251 = scmp.eq.s32.totalorder %s20, 1
      %p252 = por %p250, %p251
      %p253 = scmp.ne.s32.totalorder %s245, %s248
      %p254 = scmp.eq.s32.totalorder %s20, 0
      %p255 = por %p253, %p254
      %p256 = scmp.ne.s32.totalorder %s245, %s248
      %p257 = scmp.eq.s32.totalorder %s25, 1
      %p258 = por %p256, %p257
      %p259 = scmp.ne.s32.totalorder %s248, %s249
      %p260 = scmp.eq.s32.totalorder %s25, 0
      %p261 = por %p259, %p260
      %p262 = scmp.ne.s32.totalorder %s248, %s249
      %p263 = scmp.eq.s32.totalorder %s26, 1
      %p264 = por %p262, %p263
      %p266 = scmp.ne.s32.totalorder %s249, %s265
      %p267 = scmp.eq.s32.totalorder %s26, 0
      %p268 = por %p266, %p267
      %p269 = scmp.le.s32.totalorder 1, %s20
      %p270 = scmp.lt.s32.totalorder %s20, 3
      %p271 = pnand %p269, %p270
      %p272 = pneg %p271
      // Predicated region
      $region9: #{tpu_custom_call.1} parent=5 // pred_check
        _
      $region10: #{tpu_custom_call.1} parent=5 // pred_check_branch
        %274 = sbr.rel (%p271) target = $region12
      $region11: #{tpu_custom_call.1} parent=5 // pred_region
        %s275 = ssub.s32 %s20, 1
        // Predicated region
        $region13: #{tpu_custom_call.1} parent=11 // pred_check
          %p276 = pneg %p67
        $region14: #{tpu_custom_call.1} parent=11 // pred_check_branch
          %278 = sbr.rel (%p276) target = $region16
        $region15: #{tpu_custom_call.1} parent=11 // pred_region
          _
        $region16: #{tpu_custom_call.1} parent=11 // pred_fallthru
          _
        // Predicated region
        $region17: #{tpu_custom_call.1} parent=11 // pred_check
          %p279 = pneg %p88
        $region18: #{tpu_custom_call.1} parent=11 // pred_check_branch
          %281 = sbr.rel (%p279) target = $region20
        $region19: #{tpu_custom_call.1} parent=11 // pred_region
          %283 = vsyncadd [#allocation3], 0
          %s284 = sshll.u32 %s2, 4
          %s285 = int_to_ptr.hbm [resolvable:$true] %s284
          %s286 = sshll.u32 [#allocation2], 4
          %s287 = int_to_ptr.vmem [resolvable:$true] %s286
          %292 = dma.hbm_to_vmem [thread:$0]  %s285, 32768, %s287, [#allocation3], 2048, 2048, 128
        $region20: #{tpu_custom_call.1} parent=11 // pred_fallthru
          _
        // Predicated region
        $region21: #{tpu_custom_call.1} parent=11 // pred_check
          %p293 = pneg %p109
        $region22: #{tpu_custom_call.1} parent=11 // pred_check_branch
          %295 = sbr.rel (%p293) target = $region24
        $region23: #{tpu_custom_call.1} parent=11 // pred_region
          _
        $region24: #{tpu_custom_call.1} parent=11 // pred_fallthru
          _
        // Predicated region
        $region25: #{tpu_custom_call.1} parent=11 // pred_check
          %p296 = pneg %p130
        $region26: #{tpu_custom_call.1} parent=11 // pred_check_branch
          %298 = sbr.rel (%p296) target = $region28
        $region27: #{tpu_custom_call.1} parent=11 // pred_region
          _
        $region28: #{tpu_custom_call.1} parent=11 // pred_fallthru
          _
        // Predicated region
        $region29: #{tpu_custom_call.1} parent=11 // pred_check
          %p299 = pneg %p151
        $region30: #{tpu_custom_call.1} parent=11 // pred_check_branch
          %301 = sbr.rel (%p299) target = $region32
        $region31: #{tpu_custom_call.1} parent=11 // pred_region
          _
        $region32: #{tpu_custom_call.1} parent=11 // pred_fallthru
          _
        // Predicated region
        $region33: #{tpu_custom_call.1} parent=11 // pred_check
          %p302 = pneg %p172
        $region34: #{tpu_custom_call.1} parent=11 // pred_check_branch
          %304 = sbr.rel (%p302) target = $region36
        $region35: #{tpu_custom_call.1} parent=11 // pred_region
          _
        $region36: #{tpu_custom_call.1} parent=11 // pred_fallthru
          _
        // Predicated region
        $region37: #{tpu_custom_call.1} parent=11 // pred_check
          %p305 = pneg %p193
        $region38: #{tpu_custom_call.1} parent=11 // pred_check_branch
          %307 = sbr.rel (%p305) target = $region40
        $region39: #{tpu_custom_call.1} parent=11 // pred_region
          _
        $region40: #{tpu_custom_call.1} parent=11 // pred_fallthru
          _
        // Predicated region
        $region41: #{tpu_custom_call.1} parent=11 // pred_check
          %p308 = pneg %p214
        $region42: #{tpu_custom_call.1} parent=11 // pred_check_branch
          %310 = sbr.rel (%p308) target = $region44
        $region43: #{tpu_custom_call.1} parent=11 // pred_region
          _
        $region44: #{tpu_custom_call.1} parent=11 // pred_fallthru
          _
        // Predicated region
        $region45: #{tpu_custom_call.1} parent=11 // pred_check
          %p311 = pneg %p235
        $region46: #{tpu_custom_call.1} parent=11 // pred_check_branch
          %313 = sbr.rel (%p311) target = $region48
        $region47: #{tpu_custom_call.1} parent=11 // pred_region
          _
        $region48: #{tpu_custom_call.1} parent=11 // pred_fallthru
          _
      $region12: #{tpu_custom_call.1} parent=5 // pred_fallthru
        _
      %p314 = scmp.lt.s32.totalorder %s20, 2
      // Predicated region
      $region49: #{tpu_custom_call.1} parent=5 // pred_check
        %p315 = pneg %p314
      $region50: #{tpu_custom_call.1} parent=5 // pred_check_branch
        %317 = sbr.rel (%p315) target = $region52
      $region51: #{tpu_custom_call.1} parent=5 // pred_region
        // Predicated region
        $region53: #{tpu_custom_call.1} parent=51 // pred_check
          %p318 = pneg %p40
        $region54: #{tpu_custom_call.1} parent=51 // pred_check_branch
          %320 = sbr.rel (%p318) target = $region56
        $region55: #{tpu_custom_call.1} parent=51 // pred_region
          %p321 = scmp.lt.s32.totalorder %s20, 1
          %s322 = scalar_select %p321, %s20, 1
          %s323 = smul.addr %s322, 16
          %s324 = smul.addr %s323, 8
          %s325 = scalar_lea.vmem %s0, %s324
        $region56: #{tpu_custom_call.1} parent=51 // pred_fallthru
          _
      $region52: #{tpu_custom_call.1} parent=5 // pred_fallthru
        _
      %p326 = scmp.le.s32.totalorder 1, %s20
      %p327 = scmp.lt.s32.totalorder %s20, 3
      %p328 = pnand %p326, %p327
      %p329 = pneg %p328
      // Predicated region
      $region57: #{tpu_custom_call.1} parent=5 // pred_check
        _
      $region58: #{tpu_custom_call.1} parent=5 // pred_check_branch
        %331 = sbr.rel (%p328) target = $region60
      $region59: #{tpu_custom_call.1} parent=5 // pred_region
        %s332 = ssub.s32 %s20, 1
        // Predicated region
        $region61: #{tpu_custom_call.1} parent=59 // pred_check
          %p333 = pneg %p88
        $region62: #{tpu_custom_call.1} parent=59 // pred_check_branch
          %335 = sbr.rel (%p333) target = $region64
        $region63: #{tpu_custom_call.1} parent=59 // pred_region
          %337 = dma.done [#allocation3], 32768
        $region64: #{tpu_custom_call.1} parent=59 // pred_fallthru
          _
        %p338 = scmp.lt.s32.totalorder %s25, 1
        %s339 = scalar_select %p338, %s25, 1
        %s340 = smul.addr %s339, 16
        %s341 = smul.addr %s340, 8
        %s342 = scalar_lea.vmem %s0, %s341
        %p343 = pneg %p46
        %p344 = pneg %p43
        %p345 = pneg %p67
        %p346 = pneg %p64
        %p347 = pneg %p88
        %p348 = pneg %p85
        %p349 = pneg %p109
        %p350 = pneg %p106
        %p351 = pneg %p130
        %p352 = pneg %p127
        %p353 = pneg %p151
        %p354 = pneg %p148
        %p355 = pneg %p172
        %p356 = pneg %p169
        %p357 = pneg %p193
        %p358 = pneg %p190
        %p359 = pneg %p214
        %p360 = pneg %p211
        %p361 = pneg %p235
        %p362 = pneg %p232
        %p363 = pneg %p261
        %p364 = pneg %p258
        %s365 = sand.u32 %s248, 1
        %s366 = scalar_lea.sflag [#allocation4], %s365
        %s367 = sand.u32 %s248, 1
        %s368 = smul.addr %s367, 128
        %s369 = scalar_lea.vmem [#allocation5], %s368
        %p370 = scmp.lt.s32.totalorder %s25, 1
        %s371 = scalar_select %p370, %s25, 1
        %s372 = smul.addr %s371, 16
        %s373 = smul.addr %s372, 8
        %s374 = scalar_lea.vmem %s0, %s373
        %v375 = vld [vmem:[%s374] sm:$0xff]
        %v376 = vld [vmem:[%s374 + $0x8] sm:$0xff]
        %v377 = vld [vmem:[%s374 + $0x10] sm:$0xff]
        %v378 = vld [vmem:[%s374 + $0x18] sm:$0xff]
        %v379 = vld [vmem:[%s374 + $0x20] sm:$0xff]
        %v380 = vld [vmem:[%s374 + $0x28] sm:$0xff]
        %v381 = vld [vmem:[%s374 + $0x30] sm:$0xff]
        %v382 = vld [vmem:[%s374 + $0x38] sm:$0xff]
        %v383 = vld [vmem:[%s374 + $0x40] sm:$0xff]
        %v384 = vld [vmem:[%s374 + $0x48] sm:$0xff]
        %v385 = vld [vmem:[%s374 + $0x50] sm:$0xff]
        %v386 = vld [vmem:[%s374 + $0x58] sm:$0xff]
        %v387 = vld [vmem:[%s374 + $0x60] sm:$0xff]
        %v388 = vld [vmem:[%s374 + $0x68] sm:$0xff]
        %v389 = vld [vmem:[%s374 + $0x70] sm:$0xff]
        %v390 = vld [vmem:[%s374 + $0x78] sm:$0xff]
        %v391 = vlaneseq
        %v392 = vand.u32 %v391, 127
        %v393 = vadd.s32 %v392, 128
        %vm394 = vcmp.lt.s32.totalorder %v392, 0
        %v395 = vsub.s32 0, %v392
        %v396 = vsel %vm394, %v395, %v392
        %v397 = vshrl.u32 %v396, 4
        %v398 = vand.u32 %v396, 15
        %v399 = vsub.s32 0, %v398
        %v400 = vsel %vm394, %v399, %v398
        %vm401 = vcmp.lt.s32.totalorder %v393, 0
        %v402 = vsub.s32 0, %v393
        %v403 = vsel %vm401, %v402, %v393
        %v404 = vshrl.u32 %v403, 4
        %v405 = vand.u32 %v403, 15
        %v406 = vsub.s32 0, %v405
        %v407 = vsel %vm401, %v406, %v405
        %vm408 = vcmp.ne.s32.totalorder %v400, 0
        %vm409 = vcmp.ne.s32.totalorder %v407, 0
        %vm410 = vcmp.lt.s32.totalorder %v400, 0
        %vm411 = vcmp.lt.s32.totalorder %v407, 0
        %vm412 = vmand %vm410, %vm408
        %vm413 = vmand %vm411, %vm409
        %v414 = vadd.s32 %v400, 16
        %v415 = vadd.s32 %v407, 16
        %v416 = vsel %vm412, %v414, %v400
        %v417 = vsel %vm413, %v415, %v407
        %v418 = vld [vmem:[%s1] sm:$0xff]
        %v419 = vld [vmem:[%s1 + $0x8] sm:$0xff]
        %v420 = vld [vmem:[%s1 + $0x10] sm:$0xff]
        %v421 = vld [vmem:[%s1 + $0x18] sm:$0xff]
        %v422 = vld [vmem:[%s1 + $0x20] sm:$0xff]
        %v423 = vld [vmem:[%s1 + $0x28] sm:$0xff]
        %v424 = vld [vmem:[%s1 + $0x30] sm:$0xff]
        %v425 = vld [vmem:[%s1 + $0x38] sm:$0xff]
        %v426 = vld [vmem:[%s1 + $0x40] sm:$0xff]
        %v427 = vld [vmem:[%s1 + $0x48] sm:$0xff]
        %v428 = vld [vmem:[%s1 + $0x50] sm:$0xff]
        %v429 = vld [vmem:[%s1 + $0x58] sm:$0xff]
        %v430 = vld [vmem:[%s1 + $0x60] sm:$0xff]
        %v431 = vld [vmem:[%s1 + $0x68] sm:$0xff]
        %v432 = vld [vmem:[%s1 + $0x70] sm:$0xff]
        %v433 = vld [vmem:[%s1 + $0x78] sm:$0xff]
        %v434 = vld [vmem:[%s1 + $0x80] sm:$0xff]
        %v435 = vld [vmem:[%s1 + $0x88] sm:$0xff]
        %v436 = vld [vmem:[%s1 + $0x90] sm:$0xff]
        %v437 = vld [vmem:[%s1 + $0x98] sm:$0xff]
        %v438 = vld [vmem:[%s1 + $0xa0] sm:$0xff]
        %v439 = vld [vmem:[%s1 + $0xa8] sm:$0xff]
        %v440 = vld [vmem:[%s1 + $0xb0] sm:$0xff]
        %v441 = vld [vmem:[%s1 + $0xb8] sm:$0xff]
        %v442 = vld [vmem:[%s1 + $0xc0] sm:$0xff]
        %v443 = vld [vmem:[%s1 + $0xc8] sm:$0xff]
        %v444 = vld [vmem:[%s1 + $0xd0] sm:$0xff]
        %v445 = vld [vmem:[%s1 + $0xd8] sm:$0xff]
        %v446 = vld [vmem:[%s1 + $0xe0] sm:$0xff]
        %v447 = vld [vmem:[%s1 + $0xe8] sm:$0xff]
        %v448 = vld [vmem:[%s1 + $0xf0] sm:$0xff]
        %v449 = vld [vmem:[%s1 + $0xf8] sm:$0xff]
        %450 = vmatpush.msra.mxu0 %v433
        %451 = vmatpush.msra.mxu0 %v432
        %452 = vmatpush.msra.mxu0 %v431
        %453 = vmatpush.msra.mxu0 %v430
        %454 = vmatpush.msra.mxu0 %v429
        %455 = vmatpush.msra.mxu0 %v428
        %456 = vmatpush.msra.mxu0 %v427
        %457 = vmatpush.msra.mxu0 %v426
        %458 = vmatpush.msra.mxu0 %v425
        %459 = vmatpush.msra.mxu0 %v424
        %460 = vmatpush.msra.mxu0 %v423
        %461 = vmatpush.msra.mxu0 %v422
        %462 = vmatpush.msra.mxu0 %v421
        %463 = vmatpush.msra.mxu0 %v420
        %464 = vmatpush.msra.mxu0 %v419
        %465 = vmatpush.msra.mxu0 %v418
        %466 = vmatmul.f32.gmra.mxu0 %v375
        %v467 = vpop.f32.mrf.mxu0
        %v468 = vadd.f32 0.0, %v467
        %469 = vmatmul.f32.gmra.mxu0 %v377
        %v470 = vpop.f32.mrf.mxu0
        %v471 = vadd.f32 0.0, %v470
        %472 = vmatmul.f32.gmra.mxu0 %v379
        %v473 = vpop.f32.mrf.mxu0
        %v474 = vadd.f32 0.0, %v473
        %475 = vmatmul.f32.gmra.mxu0 %v381
        %v476 = vpop.f32.mrf.mxu0
        %v477 = vadd.f32 0.0, %v476
        %478 = vmatmul.f32.gmra.mxu0 %v383
        %v479 = vpop.f32.mrf.mxu0
        %v480 = vadd.f32 0.0, %v479
        %481 = vmatmul.f32.gmra.mxu0 %v385
        %v482 = vpop.f32.mrf.mxu0
        %v483 = vadd.f32 0.0, %v482
        %484 = vmatmul.f32.gmra.mxu0 %v387
        %v485 = vpop.f32.mrf.mxu0
        %v486 = vadd.f32 0.0, %v485
        %487 = vmatmul.f32.gmra.mxu0 %v389
        %v488 = vpop.f32.mrf.mxu0
        %v489 = vadd.f32 0.0, %v488
        %490 = vdwg.mxu0
        %491 = vmatpush.msra.mxu0 %v449
        %492 = vmatpush.msra.mxu0 %v448
        %493 = vmatpush.msra.mxu0 %v447
        %494 = vmatpush.msra.mxu0 %v446
        %495 = vmatpush.msra.mxu0 %v445
        %496 = vmatpush.msra.mxu0 %v444
        %497 = vmatpush.msra.mxu0 %v443
        %498 = vmatpush.msra.mxu0 %v442
        %499 = vmatpush.msra.mxu0 %v441
        %500 = vmatpush.msra.mxu0 %v440
        %501 = vmatpush.msra.mxu0 %v439
        %502 = vmatpush.msra.mxu0 %v438
        %503 = vmatpush.msra.mxu0 %v437
        %504 = vmatpush.msra.mxu0 %v436
        %505 = vmatpush.msra.mxu0 %v435
        %506 = vmatpush.msra.mxu0 %v434
        %507 = vmatmul.f32.gmra.mxu0 %v376
        %v508 = vpop.f32.mrf.mxu0
        %v509 = vadd.f32 %v468, %v508
        %510 = vmatmul.f32.gmra.mxu0 %v378
        %v511 = vpop.f32.mrf.mxu0
        %v512 = vadd.f32 %v471, %v511
        %513 = vmatmul.f32.gmra.mxu0 %v380
        %v514 = vpop.f32.mrf.mxu0
        %v515 = vadd.f32 %v474, %v514
        %516 = vmatmul.f32.gmra.mxu0 %v382
        %v517 = vpop.f32.mrf.mxu0
        %v518 = vadd.f32 %v477, %v517
        %519 = vmatmul.f32.gmra.mxu0 %v384
        %v520 = vpop.f32.mrf.mxu0
        %v521 = vadd.f32 %v480, %v520
        %522 = vmatmul.f32.gmra.mxu0 %v386
        %v523 = vpop.f32.mrf.mxu0
        %v524 = vadd.f32 %v483, %v523
        %525 = vmatmul.f32.gmra.mxu0 %v388
        %v526 = vpop.f32.mrf.mxu0
        %v527 = vadd.f32 %v486, %v526
        %528 = vmatmul.f32.gmra.mxu0 %v390
        %v529 = vpop.f32.mrf.mxu0
        %v530 = vadd.f32 %v489, %v529
        %531 = vdwg.mxu0
        %v532 = vld [vmem:[#allocation2] sm:$0xff]
        %v533 = vld [vmem:[#allocation2 + $0x8] sm:$0xff]
        %v534 = vld [vmem:[#allocation2 + $0x10] sm:$0xff]
        %v535 = vld [vmem:[#allocation2 + $0x18] sm:$0xff]
        %v536 = vld [vmem:[#allocation2 + $0x20] sm:$0xff]
        %v537 = vld [vmem:[#allocation2 + $0x28] sm:$0xff]
        %v538 = vld [vmem:[#allocation2 + $0x30] sm:$0xff]
        %v539 = vld [vmem:[#allocation2 + $0x38] sm:$0xff]
        %v540 = vld [vmem:[#allocation2 + $0x40] sm:$0xff]
        %v541 = vld [vmem:[#allocation2 + $0x48] sm:$0xff]
        %v542 = vld [vmem:[#allocation2 + $0x50] sm:$0xff]
        %v543 = vld [vmem:[#allocation2 + $0x58] sm:$0xff]
        %v544 = vld [vmem:[#allocation2 + $0x60] sm:$0xff]
        %v545 = vld [vmem:[#allocation2 + $0x68] sm:$0xff]
        %v546 = vld [vmem:[#allocation2 + $0x70] sm:$0xff]
        %v547 = vld [vmem:[#allocation2 + $0x78] sm:$0xff]
        %v548 = vld [vmem:[#allocation2 + $0x80] sm:$0xff]
        %v549 = vld [vmem:[#allocation2 + $0x88] sm:$0xff]
        %v550 = vld [vmem:[#allocation2 + $0x90] sm:$0xff]
        %v551 = vld [vmem:[#allocation2 + $0x98] sm:$0xff]
        %v552 = vld [vmem:[#allocation2 + $0xa0] sm:$0xff]
        %v553 = vld [vmem:[#allocation2 + $0xa8] sm:$0xff]
        %v554 = vld [vmem:[#allocation2 + $0xb0] sm:$0xff]
        %v555 = vld [vmem:[#allocation2 + $0xb8] sm:$0xff]
        %v556 = vld [vmem:[#allocation2 + $0xc0] sm:$0xff]
        %v557 = vld [vmem:[#allocation2 + $0xc8] sm:$0xff]
        %v558 = vld [vmem:[#allocation2 + $0xd0] sm:$0xff]
        %v559 = vld [vmem:[#allocation2 + $0xd8] sm:$0xff]
        %v560 = vld [vmem:[#allocation2 + $0xe0] sm:$0xff]
        %v561 = vld [vmem:[#allocation2 + $0xe8] sm:$0xff]
        %v562 = vld [vmem:[#allocation2 + $0xf0] sm:$0xff]
        %v563 = vld [vmem:[#allocation2 + $0xf8] sm:$0xff]
        %v564 = vld [vmem:[#allocation2 + $0x100] sm:$0xff]
        %v565 = vld [vmem:[#allocation2 + $0x108] sm:$0xff]
        %v566 = vld [vmem:[#allocation2 + $0x110] sm:$0xff]
        %v567 = vld [vmem:[#allocation2 + $0x118] sm:$0xff]
        %v568 = vld [vmem:[#allocation2 + $0x120] sm:$0xff]
        %v569 = vld [vmem:[#allocation2 + $0x128] sm:$0xff]
        %v570 = vld [vmem:[#allocation2 + $0x130] sm:$0xff]
        %v571 = vld [vmem:[#allocation2 + $0x138] sm:$0xff]
        %v572 = vld [vmem:[#allocation2 + $0x140] sm:$0xff]
        %v573 = vld [vmem:[#allocation2 + $0x148] sm:$0xff]
        %v574 = vld [vmem:[#allocation2 + $0x150] sm:$0xff]
        %v575 = vld [vmem:[#allocation2 + $0x158] sm:$0xff]
        %v576 = vld [vmem:[#allocation2 + $0x160] sm:$0xff]
        %v577 = vld [vmem:[#allocation2 + $0x168] sm:$0xff]
        %v578 = vld [vmem:[#allocation2 + $0x170] sm:$0xff]
        %v579 = vld [vmem:[#allocation2 + $0x178] sm:$0xff]
        %v580 = vld [vmem:[#allocation2 + $0x180] sm:$0xff]
        %v581 = vld [vmem:[#allocation2 + $0x188] sm:$0xff]
        %v582 = vld [vmem:[#allocation2 + $0x190] sm:$0xff]
        %v583 = vld [vmem:[#allocation2 + $0x198] sm:$0xff]
        %v584 = vld [vmem:[#allocation2 + $0x1a0] sm:$0xff]
        %v585 = vld [vmem:[#allocation2 + $0x1a8] sm:$0xff]
        %v586 = vld [vmem:[#allocation2 + $0x1b0] sm:$0xff]
        %v587 = vld [vmem:[#allocation2 + $0x1b8] sm:$0xff]
        %v588 = vld [vmem:[#allocation2 + $0x1c0] sm:$0xff]
        %v589 = vld [vmem:[#allocation2 + $0x1c8] sm:$0xff]
        %v590 = vld [vmem:[#allocation2 + $0x1d0] sm:$0xff]
        %v591 = vld [vmem:[#allocation2 + $0x1d8] sm:$0xff]
        %v592 = vld [vmem:[#allocation2 + $0x1e0] sm:$0xff]
        %v593 = vld [vmem:[#allocation2 + $0x1e8] sm:$0xff]
        %v594 = vld [vmem:[#allocation2 + $0x1f0] sm:$0xff]
        %v595 = vld [vmem:[#allocation2 + $0x1f8] sm:$0xff]
        %v596 = vld [vmem:[#allocation2 + $0x200] sm:$0xff]
        %v597 = vld [vmem:[#allocation2 + $0x208] sm:$0xff]
        %v598 = vld [vmem:[#allocation2 + $0x210] sm:$0xff]
        %v599 = vld [vmem:[#allocation2 + $0x218] sm:$0xff]
        %v600 = vld [vmem:[#allocation2 + $0x220] sm:$0xff]
        %v601 = vld [vmem:[#allocation2 + $0x228] sm:$0xff]
        %v602 = vld [vmem:[#allocation2 + $0x230] sm:$0xff]
        %v603 = vld [vmem:[#allocation2 + $0x238] sm:$0xff]
        %v604 = vld [vmem:[#allocation2 + $0x240] sm:$0xff]
        %v605 = vld [vmem:[#allocation2 + $0x248] sm:$0xff]
        %v606 = vld [vmem:[#allocation2 + $0x250] sm:$0xff]
        %v607 = vld [vmem:[#allocation2 + $0x258] sm:$0xff]
        %v608 = vld [vmem:[#allocation2 + $0x260] sm:$0xff]
        %v609 = vld [vmem:[#allocation2 + $0x268] sm:$0xff]
        %v610 = vld [vmem:[#allocation2 + $0x270] sm:$0xff]
        %v611 = vld [vmem:[#allocation2 + $0x278] sm:$0xff]
        %v612 = vld [vmem:[#allocation2 + $0x280] sm:$0xff]
        %v613 = vld [vmem:[#allocation2 + $0x288] sm:$0xff]
        %v614 = vld [vmem:[#allocation2 + $0x290] sm:$0xff]
        %v615 = vld [vmem:[#allocation2 + $0x298] sm:$0xff]
        %v616 = vld [vmem:[#allocation2 + $0x2a0] sm:$0xff]
        %v617 = vld [vmem:[#allocation2 + $0x2a8] sm:$0xff]
        %v618 = vld [vmem:[#allocation2 + $0x2b0] sm:$0xff]
        %v619 = vld [vmem:[#allocation2 + $0x2b8] sm:$0xff]
        %v620 = vld [vmem:[#allocation2 + $0x2c0] sm:$0xff]
        %v621 = vld [vmem:[#allocation2 + $0x2c8] sm:$0xff]
        %v622 = vld [vmem:[#allocation2 + $0x2d0] sm:$0xff]
        %v623 = vld [vmem:[#allocation2 + $0x2d8] sm:$0xff]
        %v624 = vld [vmem:[#allocation2 + $0x2e0] sm:$0xff]
        %v625 = vld [vmem:[#allocation2 + $0x2e8] sm:$0xff]
        %v626 = vld [vmem:[#allocation2 + $0x2f0] sm:$0xff]
        %v627 = vld [vmem:[#allocation2 + $0x2f8] sm:$0xff]
        %v628 = vld [vmem:[#allocation2 + $0x300] sm:$0xff]
        %v629 = vld [vmem:[#allocation2 + $0x308] sm:$0xff]
        %v630 = vld [vmem:[#allocation2 + $0x310] sm:$0xff]
        %v631 = vld [vmem:[#allocation2 + $0x318] sm:$0xff]
        %v632 = vld [vmem:[#allocation2 + $0x320] sm:$0xff]
        %v633 = vld [vmem:[#allocation2 + $0x328] sm:$0xff]
        %v634 = vld [vmem:[#allocation2 + $0x330] sm:$0xff]
        %v635 = vld [vmem:[#allocation2 + $0x338] sm:$0xff]
        %v636 = vld [vmem:[#allocation2 + $0x340] sm:$0xff]
        %v637 = vld [vmem:[#allocation2 + $0x348] sm:$0xff]
        %v638 = vld [vmem:[#allocation2 + $0x350] sm:$0xff]
        %v639 = vld [vmem:[#allocation2 + $0x358] sm:$0xff]
        %v640 = vld [vmem:[#allocation2 + $0x360] sm:$0xff]
        %v641 = vld [vmem:[#allocation2 + $0x368] sm:$0xff]
        %v642 = vld [vmem:[#allocation2 + $0x370] sm:$0xff]
        %v643 = vld [vmem:[#allocation2 + $0x378] sm:$0xff]
        %v644 = vld [vmem:[#allocation2 + $0x380] sm:$0xff]
        %v645 = vld [vmem:[#allocation2 + $0x388] sm:$0xff]
        %v646 = vld [vmem:[#allocation2 + $0x390] sm:$0xff]
        %v647 = vld [vmem:[#allocation2 + $0x398] sm:$0xff]
        %v648 = vld [vmem:[#allocation2 + $0x3a0] sm:$0xff]
        %v649 = vld [vmem:[#allocation2 + $0x3a8] sm:$0xff]
        %v650 = vld [vmem:[#allocation2 + $0x3b0] sm:$0xff]
        %v651 = vld [vmem:[#allocation2 + $0x3b8] sm:$0xff]
        %v652 = vld [vmem:[#allocation2 + $0x3c0] sm:$0xff]
        %v653 = vld [vmem:[#allocation2 + $0x3c8] sm:$0xff]
        %v654 = vld [vmem:[#allocation2 + $0x3d0] sm:$0xff]
        %v655 = vld [vmem:[#allocation2 + $0x3d8] sm:$0xff]
        %v656 = vld [vmem:[#allocation2 + $0x3e0] sm:$0xff]
        %v657 = vld [vmem:[#allocation2 + $0x3e8] sm:$0xff]
        %v658 = vld [vmem:[#allocation2 + $0x3f0] sm:$0xff]
        %v659 = vld [vmem:[#allocation2 + $0x3f8] sm:$0xff]
        %v660 = vld [vmem:[#allocation2 + $0x400] sm:$0xff]
        %v661 = vld [vmem:[#allocation2 + $0x408] sm:$0xff]
        %v662 = vld [vmem:[#allocation2 + $0x410] sm:$0xff]
        %v663 = vld [vmem:[#allocation2 + $0x418] sm:$0xff]
        %v664 = vld [vmem:[#allocation2 + $0x420] sm:$0xff]
        %v665 = vld [vmem:[#allocation2 + $0x428] sm:$0xff]
        %v666 = vld [vmem:[#allocation2 + $0x430] sm:$0xff]
        %v667 = vld [vmem:[#allocation2 + $0x438] sm:$0xff]
        %v668 = vld [vmem:[#allocation2 + $0x440] sm:$0xff]
        %v669 = vld [vmem:[#allocation2 + $0x448] sm:$0xff]
        %v670 = vld [vmem:[#allocation2 + $0x450] sm:$0xff]
        %v671 = vld [vmem:[#allocation2 + $0x458] sm:$0xff]
        %v672 = vld [vmem:[#allocation2 + $0x460] sm:$0xff]
        %v673 = vld [vmem:[#allocation2 + $0x468] sm:$0xff]
        %v674 = vld [vmem:[#allocation2 + $0x470] sm:$0xff]
        %v675 = vld [vmem:[#allocation2 + $0x478] sm:$0xff]
        %v676 = vld [vmem:[#allocation2 + $0x480] sm:$0xff]
        %v677 = vld [vmem:[#allocation2 + $0x488] sm:$0xff]
        %v678 = vld [vmem:[#allocation2 + $0x490] sm:$0xff]
        %v679 = vld [vmem:[#allocation2 + $0x498] sm:$0xff]
        %v680 = vld [vmem:[#allocation2 + $0x4a0] sm:$0xff]
        %v681 = vld [vmem:[#allocation2 + $0x4a8] sm:$0xff]
        %v682 = vld [vmem:[#allocation2 + $0x4b0] sm:$0xff]
        %v683 = vld [vmem:[#allocation2 + $0x4b8] sm:$0xff]
        %v684 = vld [vmem:[#allocation2 + $0x4c0] sm:$0xff]
        %v685 = vld [vmem:[#allocation2 + $0x4c8] sm:$0xff]
        %v686 = vld [vmem:[#allocation2 + $0x4d0] sm:$0xff]
        %v687 = vld [vmem:[#allocation2 + $0x4d8] sm:$0xff]
        %v688 = vld [vmem:[#allocation2 + $0x4e0] sm:$0xff]
        %v689 = vld [vmem:[#allocation2 + $0x4e8] sm:$0xff]
        %v690 = vld [vmem:[#allocation2 + $0x4f0] sm:$0xff]
        %v691 = vld [vmem:[#allocation2 + $0x4f8] sm:$0xff]
        %v692 = vld [vmem:[#allocation2 + $0x500] sm:$0xff]
        %v693 = vld [vmem:[#allocation2 + $0x508] sm:$0xff]
        %v694 = vld [vmem:[#allocation2 + $0x510] sm:$0xff]
        %v695 = vld [vmem:[#allocation2 + $0x518] sm:$0xff]
        %v696 = vld [vmem:[#allocation2 + $0x520] sm:$0xff]
        %v697 = vld [vmem:[#allocation2 + $0x528] sm:$0xff]
        %v698 = vld [vmem:[#allocation2 + $0x530] sm:$0xff]
        %v699 = vld [vmem:[#allocation2 + $0x538] sm:$0xff]
        %v700 = vld [vmem:[#allocation2 + $0x540] sm:$0xff]
        %v701 = vld [vmem:[#allocation2 + $0x548] sm:$0xff]
        %v702 = vld [vmem:[#allocation2 + $0x550] sm:$0xff]
        %v703 = vld [vmem:[#allocation2 + $0x558] sm:$0xff]
        %v704 = vld [vmem:[#allocation2 + $0x560] sm:$0xff]
        %v705 = vld [vmem:[#allocation2 + $0x568] sm:$0xff]
        %v706 = vld [vmem:[#allocation2 + $0x570] sm:$0xff]
        %v707 = vld [vmem:[#allocation2 + $0x578] sm:$0xff]
        %v708 = vld [vmem:[#allocation2 + $0x580] sm:$0xff]
        %v709 = vld [vmem:[#allocation2 + $0x588] sm:$0xff]
        %v710 = vld [vmem:[#allocation2 + $0x590] sm:$0xff]
        %v711 = vld [vmem:[#allocation2 + $0x598] sm:$0xff]
        %v712 = vld [vmem:[#allocation2 + $0x5a0] sm:$0xff]
        %v713 = vld [vmem:[#allocation2 + $0x5a8] sm:$0xff]
        %v714 = vld [vmem:[#allocation2 + $0x5b0] sm:$0xff]
        %v715 = vld [vmem:[#allocation2 + $0x5b8] sm:$0xff]
        %v716 = vld [vmem:[#allocation2 + $0x5c0] sm:$0xff]
        %v717 = vld [vmem:[#allocation2 + $0x5c8] sm:$0xff]
        %v718 = vld [vmem:[#allocation2 + $0x5d0] sm:$0xff]
        %v719 = vld [vmem:[#allocation2 + $0x5d8] sm:$0xff]
        %v720 = vld [vmem:[#allocation2 + $0x5e0] sm:$0xff]
        %v721 = vld [vmem:[#allocation2 + $0x5e8] sm:$0xff]
        %v722 = vld [vmem:[#allocation2 + $0x5f0] sm:$0xff]
        %v723 = vld [vmem:[#allocation2 + $0x5f8] sm:$0xff]
        %v724 = vld [vmem:[#allocation2 + $0x600] sm:$0xff]
        %v725 = vld [vmem:[#allocation2 + $0x608] sm:$0xff]
        %v726 = vld [vmem:[#allocation2 + $0x610] sm:$0xff]
        %v727 = vld [vmem:[#allocation2 + $0x618] sm:$0xff]
        %v728 = vld [vmem:[#allocation2 + $0x620] sm:$0xff]
        %v729 = vld [vmem:[#allocation2 + $0x628] sm:$0xff]
        %v730 = vld [vmem:[#allocation2 + $0x630] sm:$0xff]
        %v731 = vld [vmem:[#allocation2 + $0x638] sm:$0xff]
        %v732 = vld [vmem:[#allocation2 + $0x640] sm:$0xff]
        %v733 = vld [vmem:[#allocation2 + $0x648] sm:$0xff]
        %v734 = vld [vmem:[#allocation2 + $0x650] sm:$0xff]
        %v735 = vld [vmem:[#allocation2 + $0x658] sm:$0xff]
        %v736 = vld [vmem:[#allocation2 + $0x660] sm:$0xff]
        %v737 = vld [vmem:[#allocation2 + $0x668] sm:$0xff]
        %v738 = vld [vmem:[#allocation2 + $0x670] sm:$0xff]
        %v739 = vld [vmem:[#allocation2 + $0x678] sm:$0xff]
        %v740 = vld [vmem:[#allocation2 + $0x680] sm:$0xff]
        %v741 = vld [vmem:[#allocation2 + $0x688] sm:$0xff]
        %v742 = vld [vmem:[#allocation2 + $0x690] sm:$0xff]
        %v743 = vld [vmem:[#allocation2 + $0x698] sm:$0xff]
        %v744 = vld [vmem:[#allocation2 + $0x6a0] sm:$0xff]
        %v745 = vld [vmem:[#allocation2 + $0x6a8] sm:$0xff]
        %v746 = vld [vmem:[#allocation2 + $0x6b0] sm:$0xff]
        %v747 = vld [vmem:[#allocation2 + $0x6b8] sm:$0xff]
        %v748 = vld [vmem:[#allocation2 + $0x6c0] sm:$0xff]
        %v749 = vld [vmem:[#allocation2 + $0x6c8] sm:$0xff]
        %v750 = vld [vmem:[#allocation2 + $0x6d0] sm:$0xff]
        %v751 = vld [vmem:[#allocation2 + $0x6d8] sm:$0xff]
        %v752 = vld [vmem:[#allocation2 + $0x6e0] sm:$0xff]
        %v753 = vld [vmem:[#allocation2 + $0x6e8] sm:$0xff]
        %v754 = vld [vmem:[#allocation2 + $0x6f0] sm:$0xff]
        %v755 = vld [vmem:[#allocation2 + $0x6f8] sm:$0xff]
        %v756 = vld [vmem:[#allocation2 + $0x700] sm:$0xff]
        %v757 = vld [vmem:[#allocation2 + $0x708] sm:$0xff]
        %v758 = vld [vmem:[#allocation2 + $0x710] sm:$0xff]
        %v759 = vld [vmem:[#allocation2 + $0x718] sm:$0xff]
        %v760 = vld [vmem:[#allocation2 + $0x720] sm:$0xff]
        %v761 = vld [vmem:[#allocation2 + $0x728] sm:$0xff]
        %v762 = vld [vmem:[#allocation2 + $0x730] sm:$0xff]
        %v763 = vld [vmem:[#allocation2 + $0x738] sm:$0xff]
        %v764 = vld [vmem:[#allocation2 + $0x740] sm:$0xff]
        %v765 = vld [vmem:[#allocation2 + $0x748] sm:$0xff]
        %v766 = vld [vmem:[#allocation2 + $0x750] sm:$0xff]
        %v767 = vld [vmem:[#allocation2 + $0x758] sm:$0xff]
        %v768 = vld [vmem:[#allocation2 + $0x760] sm:$0xff]
        %v769 = vld [vmem:[#allocation2 + $0x768] sm:$0xff]
        %v770 = vld [vmem:[#allocation2 + $0x770] sm:$0xff]
        %v771 = vld [vmem:[#allocation2 + $0x778] sm:$0xff]
        %v772 = vld [vmem:[#allocation2 + $0x780] sm:$0xff]
        %v773 = vld [vmem:[#allocation2 + $0x788] sm:$0xff]
        %v774 = vld [vmem:[#allocation2 + $0x790] sm:$0xff]
        %v775 = vld [vmem:[#allocation2 + $0x798] sm:$0xff]
        %v776 = vld [vmem:[#allocation2 + $0x7a0] sm:$0xff]
        %v777 = vld [vmem:[#allocation2 + $0x7a8] sm:$0xff]
        %v778 = vld [vmem:[#allocation2 + $0x7b0] sm:$0xff]
        %v779 = vld [vmem:[#allocation2 + $0x7b8] sm:$0xff]
        %v780 = vld [vmem:[#allocation2 + $0x7c0] sm:$0xff]
        %v781 = vld [vmem:[#allocation2 + $0x7c8] sm:$0xff]
        %v782 = vld [vmem:[#allocation2 + $0x7d0] sm:$0xff]
        %v783 = vld [vmem:[#allocation2 + $0x7d8] sm:$0xff]
        %v784 = vld [vmem:[#allocation2 + $0x7e0] sm:$0xff]
        %v785 = vld [vmem:[#allocation2 + $0x7e8] sm:$0xff]
        %v786 = vld [vmem:[#allocation2 + $0x7f0] sm:$0xff]
        %v787 = vld [vmem:[#allocation2 + $0x7f8] sm:$0xff]
        %788 = vmatpush.msra.mxu0 %v772
        %789 = vmatpush.msra.mxu0 %v756
        %790 = vmatpush.msra.mxu0 %v740
        %791 = vmatpush.msra.mxu0 %v724
        %792 = vmatpush.msra.mxu0 %v708
        %793 = vmatpush.msra.mxu0 %v692
        %794 = vmatpush.msra.mxu0 %v676
        %795 = vmatpush.msra.mxu0 %v660
        %796 = vmatpush.msra.mxu0 %v644
        %797 = vmatpush.msra.mxu0 %v628
        %798 = vmatpush.msra.mxu0 %v612
        %799 = vmatpush.msra.mxu0 %v596
        %800 = vmatpush.msra.mxu0 %v580
        %801 = vmatpush.msra.mxu0 %v564
        %802 = vmatpush.msra.mxu0 %v548
        %803 = vmatpush.msra.mxu0 %v532
        %804 = vmatmul.f32.gmra.mxu0 %v509
        %v805 = vpop.f32.mrf.mxu0
        %v806 = vadd.f32 0.0, %v805
        %807 = vmatmul.f32.gmra.mxu0 %v512
        %v808 = vpop.f32.mrf.mxu0
        %v809 = vadd.f32 0.0, %v808
        %810 = vmatmul.f32.gmra.mxu0 %v515
        %v811 = vpop.f32.mrf.mxu0
        %v812 = vadd.f32 0.0, %v811
        %813 = vmatmul.f32.gmra.mxu0 %v518
        %v814 = vpop.f32.mrf.mxu0
        %v815 = vadd.f32 0.0, %v814
        %816 = vmatmul.f32.gmra.mxu0 %v521
        %v817 = vpop.f32.mrf.mxu0
        %v818 = vadd.f32 0.0, %v817
        %819 = vmatmul.f32.gmra.mxu0 %v524
        %v820 = vpop.f32.mrf.mxu0
        %v821 = vadd.f32 0.0, %v820
        %822 = vmatmul.f32.gmra.mxu0 %v527
        %v823 = vpop.f32.mrf.mxu0
        %v824 = vadd.f32 0.0, %v823
        %825 = vmatmul.f32.gmra.mxu0 %v530
        %v826 = vpop.f32.mrf.mxu0
        %v827 = vadd.f32 0.0, %v826
        %828 = vdwg.mxu0
        %829 = vmatpush.msra.mxu0 %v773
        %830 = vmatpush.msra.mxu0 %v757
        %831 = vmatpush.msra.mxu0 %v741
        %832 = vmatpush.msra.mxu0 %v725
        %833 = vmatpush.msra.mxu0 %v709
        %834 = vmatpush.msra.mxu0 %v693
        %835 = vmatpush.msra.mxu0 %v677
        %836 = vmatpush.msra.mxu0 %v661
        %837 = vmatpush.msra.mxu0 %v645
        %838 = vmatpush.msra.mxu0 %v629
        %839 = vmatpush.msra.mxu0 %v613
        %840 = vmatpush.msra.mxu0 %v597
        %841 = vmatpush.msra.mxu0 %v581
        %842 = vmatpush.msra.mxu0 %v565
        %843 = vmatpush.msra.mxu0 %v549
        %844 = vmatpush.msra.mxu0 %v533
        %845 = vmatmul.f32.gmra.mxu0 %v509
        %v846 = vpop.f32.mrf.mxu0
        %v847 = vadd.f32 0.0, %v846
        %848 = vmatmul.f32.gmra.mxu0 %v512
        %v849 = vpop.f32.mrf.mxu0
        %v850 = vadd.f32 0.0, %v849
        %851 = vmatmul.f32.gmra.mxu0 %v515
        %v852 = vpop.f32.mrf.mxu0
        %v853 = vadd.f32 0.0, %v852
        %854 = vmatmul.f32.gmra.mxu0 %v518
        %v855 = vpop.f32.mrf.mxu0
        %v856 = vadd.f32 0.0, %v855
        %857 = vmatmul.f32.gmra.mxu0 %v521
        %v858 = vpop.f32.mrf.mxu0
        %v859 = vadd.f32 0.0, %v858
        %860 = vmatmul.f32.gmra.mxu0 %v524
        %v861 = vpop.f32.mrf.mxu0
        %v862 = vadd.f32 0.0, %v861
        %863 = vmatmul.f32.gmra.mxu0 %v527
        %v864 = vpop.f32.mrf.mxu0
        %v865 = vadd.f32 0.0, %v864
        %866 = vmatmul.f32.gmra.mxu0 %v530
        %v867 = vpop.f32.mrf.mxu0
        %v868 = vadd.f32 0.0, %v867
        %869 = vdwg.mxu0
        %870 = vmatpush.msra.mxu0 %v774
        %871 = vmatpush.msra.mxu0 %v758
        %872 = vmatpush.msra.mxu0 %v742
        %873 = vmatpush.msra.mxu0 %v726
        %874 = vmatpush.msra.mxu0 %v710
        %875 = vmatpush.msra.mxu0 %v694
        %876 = vmatpush.msra.mxu0 %v678
        %877 = vmatpush.msra.mxu0 %v662
        %878 = vmatpush.msra.mxu0 %v646
        %879 = vmatpush.msra.mxu0 %v630
        %880 = vmatpush.msra.mxu0 %v614
        %881 = vmatpush.msra.mxu0 %v598
        %882 = vmatpush.msra.mxu0 %v582
        %883 = vmatpush.msra.mxu0 %v566
        %884 = vmatpush.msra.mxu0 %v550
        %885 = vmatpush.msra.mxu0 %v534
        %886 = vmatmul.f32.gmra.mxu0 %v509
        %v887 = vpop.f32.mrf.mxu0
        %v888 = vadd.f32 0.0, %v887
        %889 = vmatmul.f32.gmra.mxu0 %v512
        %v890 = vpop.f32.mrf.mxu0
        %v891 = vadd.f32 0.0, %v890
        %892 = vmatmul.f32.gmra.mxu0 %v515
        %v893 = vpop.f32.mrf.mxu0
        %v894 = vadd.f32 0.0, %v893
        %895 = vmatmul.f32.gmra.mxu0 %v518
        %v896 = vpop.f32.mrf.mxu0
        %v897 = vadd.f32 0.0, %v896
        %898 = vmatmul.f32.gmra.mxu0 %v521
        %v899 = vpop.f32.mrf.mxu0
        %v900 = vadd.f32 0.0, %v899
        %901 = vmatmul.f32.gmra.mxu0 %v524
        %v902 = vpop.f32.mrf.mxu0
        %v903 = vadd.f32 0.0, %v902
        %904 = vmatmul.f32.gmra.mxu0 %v527
        %v905 = vpop.f32.mrf.mxu0
        %v906 = vadd.f32 0.0, %v905
        %907 = vmatmul.f32.gmra.mxu0 %v530
        %v908 = vpop.f32.mrf.mxu0
        %v909 = vadd.f32 0.0, %v908
        %910 = vdwg.mxu0
        %911 = vmatpush.msra.mxu0 %v775
        %912 = vmatpush.msra.mxu0 %v759
        %913 = vmatpush.msra.mxu0 %v743
        %914 = vmatpush.msra.mxu0 %v727
        %915 = vmatpush.msra.mxu0 %v711
        %916 = vmatpush.msra.mxu0 %v695
        %917 = vmatpush.msra.mxu0 %v679
        %918 = vmatpush.msra.mxu0 %v663
        %919 = vmatpush.msra.mxu0 %v647
        %920 = vmatpush.msra.mxu0 %v631
        %921 = vmatpush.msra.mxu0 %v615
        %922 = vmatpush.msra.mxu0 %v599
        %923 = vmatpush.msra.mxu0 %v583
        %924 = vmatpush.msra.mxu0 %v567
        %925 = vmatpush.msra.mxu0 %v551
        %926 = vmatpush.msra.mxu0 %v535
        %927 = vmatmul.f32.gmra.mxu0 %v509
        %v928 = vpop.f32.mrf.mxu0
        %v929 = vadd.f32 0.0, %v928
        %930 = vmatmul.f32.gmra.mxu0 %v512
        %v931 = vpop.f32.mrf.mxu0
        %v932 = vadd.f32 0.0, %v931
        %933 = vmatmul.f32.gmra.mxu0 %v515
        %v934 = vpop.f32.mrf.mxu0
        %v935 = vadd.f32 0.0, %v934
        %936 = vmatmul.f32.gmra.mxu0 %v518
        %v937 = vpop.f32.mrf.mxu0
        %v938 = vadd.f32 0.0, %v937
        %939 = vmatmul.f32.gmra.mxu0 %v521
        %v940 = vpop.f32.mrf.mxu0
        %v941 = vadd.f32 0.0, %v940
        %942 = vmatmul.f32.gmra.mxu0 %v524
        %v943 = vpop.f32.mrf.mxu0
        %v944 = vadd.f32 0.0, %v943
        %945 = vmatmul.f32.gmra.mxu0 %v527
        %v946 = vpop.f32.mrf.mxu0
        %v947 = vadd.f32 0.0, %v946
        %948 = vmatmul.f32.gmra.mxu0 %v530
        %v949 = vpop.f32.mrf.mxu0
        %v950 = vadd.f32 0.0, %v949
        %951 = vdwg.mxu0
        %952 = vmatpush.msra.mxu0 %v776
        %953 = vmatpush.msra.mxu0 %v760
        %954 = vmatpush.msra.mxu0 %v744
        %955 = vmatpush.msra.mxu0 %v728
        %956 = vmatpush.msra.mxu0 %v712
        %957 = vmatpush.msra.mxu0 %v696
        %958 = vmatpush.msra.mxu0 %v680
        %959 = vmatpush.msra.mxu0 %v664
        %960 = vmatpush.msra.mxu0 %v648
        %961 = vmatpush.msra.mxu0 %v632
        %962 = vmatpush.msra.mxu0 %v616
        %963 = vmatpush.msra.mxu0 %v600
        %964 = vmatpush.msra.mxu0 %v584
        %965 = vmatpush.msra.mxu0 %v568
        %966 = vmatpush.msra.mxu0 %v552
        %967 = vmatpush.msra.mxu0 %v536
        %968 = vmatmul.f32.gmra.mxu0 %v509
        %v969 = vpop.f32.mrf.mxu0
        %v970 = vadd.f32 0.0, %v969
        %971 = vmatmul.f32.gmra.mxu0 %v512
        %v972 = vpop.f32.mrf.mxu0
        %v973 = vadd.f32 0.0, %v972
        %974 = vmatmul.f32.gmra.mxu0 %v515
        %v975 = vpop.f32.mrf.mxu0
        %v976 = vadd.f32 0.0, %v975
        %977 = vmatmul.f32.gmra.mxu0 %v518
        %v978 = vpop.f32.mrf.mxu0
        %v979 = vadd.f32 0.0, %v978
        %980 = vmatmul.f32.gmra.mxu0 %v521
        %v981 = vpop.f32.mrf.mxu0
        %v982 = vadd.f32 0.0, %v981
        %983 = vmatmul.f32.gmra.mxu0 %v524
        %v984 = vpop.f32.mrf.mxu0
        %v985 = vadd.f32 0.0, %v984
        %986 = vmatmul.f32.gmra.mxu0 %v527
        %v987 = vpop.f32.mrf.mxu0
        %v988 = vadd.f32 0.0, %v987
        %989 = vmatmul.f32.gmra.mxu0 %v530
        %v990 = vpop.f32.mrf.mxu0
        %v991 = vadd.f32 0.0, %v990
        %992 = vdwg.mxu0
        %993 = vmatpush.msra.mxu0 %v777
        %994 = vmatpush.msra.mxu0 %v761
        %995 = vmatpush.msra.mxu0 %v745
        %996 = vmatpush.msra.mxu0 %v729
        %997 = vmatpush.msra.mxu0 %v713
        %998 = vmatpush.msra.mxu0 %v697
        %999 = vmatpush.msra.mxu0 %v681
        %1000 = vmatpush.msra.mxu0 %v665
        %1001 = vmatpush.msra.mxu0 %v649
        %1002 = vmatpush.msra.mxu0 %v633
        %1003 = vmatpush.msra.mxu0 %v617
        %1004 = vmatpush.msra.mxu0 %v601
        %1005 = vmatpush.msra.mxu0 %v585
        %1006 = vmatpush.msra.mxu0 %v569
        %1007 = vmatpush.msra.mxu0 %v553
        %1008 = vmatpush.msra.mxu0 %v537
        %1009 = vmatmul.f32.gmra.mxu0 %v509
        %v1010 = vpop.f32.mrf.mxu0
        %v1011 = vadd.f32 0.0, %v1010
        %1012 = vmatmul.f32.gmra.mxu0 %v512
        %v1013 = vpop.f32.mrf.mxu0
        %v1014 = vadd.f32 0.0, %v1013
        %1015 = vmatmul.f32.gmra.mxu0 %v515
        %v1016 = vpop.f32.mrf.mxu0
        %v1017 = vadd.f32 0.0, %v1016
        %1018 = vmatmul.f32.gmra.mxu0 %v518
        %v1019 = vpop.f32.mrf.mxu0
        %v1020 = vadd.f32 0.0, %v1019
        %1021 = vmatmul.f32.gmra.mxu0 %v521
        %v1022 = vpop.f32.mrf.mxu0
        %v1023 = vadd.f32 0.0, %v1022
        %1024 = vmatmul.f32.gmra.mxu0 %v524
        %v1025 = vpop.f32.mrf.mxu0
        %v1026 = vadd.f32 0.0, %v1025
        %1027 = vmatmul.f32.gmra.mxu0 %v527
        %v1028 = vpop.f32.mrf.mxu0
        %v1029 = vadd.f32 0.0, %v1028
        %1030 = vmatmul.f32.gmra.mxu0 %v530
        %v1031 = vpop.f32.mrf.mxu0
        %v1032 = vadd.f32 0.0, %v1031
        %1033 = vdwg.mxu0
        %1034 = vmatpush.msra.mxu0 %v778
        %1035 = vmatpush.msra.mxu0 %v762
        %1036 = vmatpush.msra.mxu0 %v746
        %1037 = vmatpush.msra.mxu0 %v730
        %1038 = vmatpush.msra.mxu0 %v714
        %1039 = vmatpush.msra.mxu0 %v698
        %1040 = vmatpush.msra.mxu0 %v682
        %1041 = vmatpush.msra.mxu0 %v666
        %1042 = vmatpush.msra.mxu0 %v650
        %1043 = vmatpush.msra.mxu0 %v634
        %1044 = vmatpush.msra.mxu0 %v618
        %1045 = vmatpush.msra.mxu0 %v602
        %1046 = vmatpush.msra.mxu0 %v586
        %1047 = vmatpush.msra.mxu0 %v570
        %1048 = vmatpush.msra.mxu0 %v554
        %1049 = vmatpush.msra.mxu0 %v538
        %1050 = vmatmul.f32.gmra.mxu0 %v509
        %v1051 = vpop.f32.mrf.mxu0
        %v1052 = vadd.f32 0.0, %v1051
        %1053 = vmatmul.f32.gmra.mxu0 %v512
        %v1054 = vpop.f32.mrf.mxu0
        %v1055 = vadd.f32 0.0, %v1054
        %1056 = vmatmul.f32.gmra.mxu0 %v515
        %v1057 = vpop.f32.mrf.mxu0
        %v1058 = vadd.f32 0.0, %v1057
        %1059 = vmatmul.f32.gmra.mxu0 %v518
        %v1060 = vpop.f32.mrf.mxu0
        %v1061 = vadd.f32 0.0, %v1060
        %1062 = vmatmul.f32.gmra.mxu0 %v521
        %v1063 = vpop.f32.mrf.mxu0
        %v1064 = vadd.f32 0.0, %v1063
        %1065 = vmatmul.f32.gmra.mxu0 %v524
        %v1066 = vpop.f32.mrf.mxu0
        %v1067 = vadd.f32 0.0, %v1066
        %1068 = vmatmul.f32.gmra.mxu0 %v527
        %v1069 = vpop.f32.mrf.mxu0
        %v1070 = vadd.f32 0.0, %v1069
        %1071 = vmatmul.f32.gmra.mxu0 %v530
        %v1072 = vpop.f32.mrf.mxu0
        %v1073 = vadd.f32 0.0, %v1072
        %1074 = vdwg.mxu0
        %1075 = vmatpush.msra.mxu0 %v779
        %1076 = vmatpush.msra.mxu0 %v763
        %1077 = vmatpush.msra.mxu0 %v747
        %1078 = vmatpush.msra.mxu0 %v731
        %1079 = vmatpush.msra.mxu0 %v715
        %1080 = vmatpush.msra.mxu0 %v699
        %1081 = vmatpush.msra.mxu0 %v683
        %1082 = vmatpush.msra.mxu0 %v667
        %1083 = vmatpush.msra.mxu0 %v651
        %1084 = vmatpush.msra.mxu0 %v635
        %1085 = vmatpush.msra.mxu0 %v619
        %1086 = vmatpush.msra.mxu0 %v603
        %1087 = vmatpush.msra.mxu0 %v587
        %1088 = vmatpush.msra.mxu0 %v571
        %1089 = vmatpush.msra.mxu0 %v555
        %1090 = vmatpush.msra.mxu0 %v539
        %1091 = vmatmul.f32.gmra.mxu0 %v509
        %v1092 = vpop.f32.mrf.mxu0
        %v1093 = vadd.f32 0.0, %v1092
        %1094 = vmatmul.f32.gmra.mxu0 %v512
        %v1095 = vpop.f32.mrf.mxu0
        %v1096 = vadd.f32 0.0, %v1095
        %1097 = vmatmul.f32.gmra.mxu0 %v515
        %v1098 = vpop.f32.mrf.mxu0
        %v1099 = vadd.f32 0.0, %v1098
        %1100 = vmatmul.f32.gmra.mxu0 %v518
        %v1101 = vpop.f32.mrf.mxu0
        %v1102 = vadd.f32 0.0, %v1101
        %1103 = vmatmul.f32.gmra.mxu0 %v521
        %v1104 = vpop.f32.mrf.mxu0
        %v1105 = vadd.f32 0.0, %v1104
        %1106 = vmatmul.f32.gmra.mxu0 %v524
        %v1107 = vpop.f32.mrf.mxu0
        %v1108 = vadd.f32 0.0, %v1107
        %1109 = vmatmul.f32.gmra.mxu0 %v527
        %v1110 = vpop.f32.mrf.mxu0
        %v1111 = vadd.f32 0.0, %v1110
        %1112 = vmatmul.f32.gmra.mxu0 %v530
        %v1113 = vpop.f32.mrf.mxu0
        %v1114 = vadd.f32 0.0, %v1113
        %1115 = vdwg.mxu0
        %1116 = vmatpush.msra.mxu0 %v780
        %1117 = vmatpush.msra.mxu0 %v764
        %1118 = vmatpush.msra.mxu0 %v748
        %1119 = vmatpush.msra.mxu0 %v732
        %1120 = vmatpush.msra.mxu0 %v716
        %1121 = vmatpush.msra.mxu0 %v700
        %1122 = vmatpush.msra.mxu0 %v684
        %1123 = vmatpush.msra.mxu0 %v668
        %1124 = vmatpush.msra.mxu0 %v652
        %1125 = vmatpush.msra.mxu0 %v636
        %1126 = vmatpush.msra.mxu0 %v620
        %1127 = vmatpush.msra.mxu0 %v604
        %1128 = vmatpush.msra.mxu0 %v588
        %1129 = vmatpush.msra.mxu0 %v572
        %1130 = vmatpush.msra.mxu0 %v556
        %1131 = vmatpush.msra.mxu0 %v540
        %1132 = vmatmul.f32.gmra.mxu0 %v509
        %v1133 = vpop.f32.mrf.mxu0
        %v1134 = vadd.f32 0.0, %v1133
        %1135 = vmatmul.f32.gmra.mxu0 %v512
        %v1136 = vpop.f32.mrf.mxu0
        %v1137 = vadd.f32 0.0, %v1136
        %1138 = vmatmul.f32.gmra.mxu0 %v515
        %v1139 = vpop.f32.mrf.mxu0
        %v1140 = vadd.f32 0.0, %v1139
        %1141 = vmatmul.f32.gmra.mxu0 %v518
        %v1142 = vpop.f32.mrf.mxu0
        %v1143 = vadd.f32 0.0, %v1142
        %1144 = vmatmul.f32.gmra.mxu0 %v521
        %v1145 = vpop.f32.mrf.mxu0
        %v1146 = vadd.f32 0.0, %v1145
        %1147 = vmatmul.f32.gmra.mxu0 %v524
        %v1148 = vpop.f32.mrf.mxu0
        %v1149 = vadd.f32 0.0, %v1148
        %1150 = vmatmul.f32.gmra.mxu0 %v527
        %v1151 = vpop.f32.mrf.mxu0
        %v1152 = vadd.f32 0.0, %v1151
        %1153 = vmatmul.f32.gmra.mxu0 %v530
        %v1154 = vpop.f32.mrf.mxu0
        %v1155 = vadd.f32 0.0, %v1154
        %1156 = vdwg.mxu0
        %1157 = vmatpush.msra.mxu0 %v781
        %1158 = vmatpush.msra.mxu0 %v765
        %1159 = vmatpush.msra.mxu0 %v749
        %1160 = vmatpush.msra.mxu0 %v733
        %1161 = vmatpush.msra.mxu0 %v717
        %1162 = vmatpush.msra.mxu0 %v701
        %1163 = vmatpush.msra.mxu0 %v685
        %1164 = vmatpush.msra.mxu0 %v669
        %1165 = vmatpush.msra.mxu0 %v653
        %1166 = vmatpush.msra.mxu0 %v637
        %1167 = vmatpush.msra.mxu0 %v621
        %1168 = vmatpush.msra.mxu0 %v605
        %1169 = vmatpush.msra.mxu0 %v589
        %1170 = vmatpush.msra.mxu0 %v573
        %1171 = vmatpush.msra.mxu0 %v557
        %1172 = vmatpush.msra.mxu0 %v541
        %1173 = vmatmul.f32.gmra.mxu0 %v509
        %v1174 = vpop.f32.mrf.mxu0
        %v1175 = vadd.f32 0.0, %v1174
        %1176 = vmatmul.f32.gmra.mxu0 %v512
        %v1177 = vpop.f32.mrf.mxu0
        %v1178 = vadd.f32 0.0, %v1177
        %1179 = vmatmul.f32.gmra.mxu0 %v515
        %v1180 = vpop.f32.mrf.mxu0
        %v1181 = vadd.f32 0.0, %v1180
        %1182 = vmatmul.f32.gmra.mxu0 %v518
        %v1183 = vpop.f32.mrf.mxu0
        %v1184 = vadd.f32 0.0, %v1183
        %1185 = vmatmul.f32.gmra.mxu0 %v521
        %v1186 = vpop.f32.mrf.mxu0
        %v1187 = vadd.f32 0.0, %v1186
        %1188 = vmatmul.f32.gmra.mxu0 %v524
        %v1189 = vpop.f32.mrf.mxu0
        %v1190 = vadd.f32 0.0, %v1189
        %1191 = vmatmul.f32.gmra.mxu0 %v527
        %v1192 = vpop.f32.mrf.mxu0
        %v1193 = vadd.f32 0.0, %v1192
        %1194 = vmatmul.f32.gmra.mxu0 %v530
        %v1195 = vpop.f32.mrf.mxu0
        %v1196 = vadd.f32 0.0, %v1195
        %1197 = vdwg.mxu0
        %1198 = vmatpush.msra.mxu0 %v782
        %1199 = vmatpush.msra.mxu0 %v766
        %1200 = vmatpush.msra.mxu0 %v750
        %1201 = vmatpush.msra.mxu0 %v734
        %1202 = vmatpush.msra.mxu0 %v718
        %1203 = vmatpush.msra.mxu0 %v702
        %1204 = vmatpush.msra.mxu0 %v686
        %1205 = vmatpush.msra.mxu0 %v670
        %1206 = vmatpush.msra.mxu0 %v654
        %1207 = vmatpush.msra.mxu0 %v638
        %1208 = vmatpush.msra.mxu0 %v622
        %1209 = vmatpush.msra.mxu0 %v606
        %1210 = vmatpush.msra.mxu0 %v590
        %1211 = vmatpush.msra.mxu0 %v574
        %1212 = vmatpush.msra.mxu0 %v558
        %1213 = vmatpush.msra.mxu0 %v542
        %1214 = vmatmul.f32.gmra.mxu0 %v509
        %v1215 = vpop.f32.mrf.mxu0
        %v1216 = vadd.f32 0.0, %v1215
        %1217 = vmatmul.f32.gmra.mxu0 %v512
        %v1218 = vpop.f32.mrf.mxu0
        %v1219 = vadd.f32 0.0, %v1218
        %1220 = vmatmul.f32.gmra.mxu0 %v515
        %v1221 = vpop.f32.mrf.mxu0
        %v1222 = vadd.f32 0.0, %v1221
        %1223 = vmatmul.f32.gmra.mxu0 %v518
        %v1224 = vpop.f32.mrf.mxu0
        %v1225 = vadd.f32 0.0, %v1224
        %1226 = vmatmul.f32.gmra.mxu0 %v521
        %v1227 = vpop.f32.mrf.mxu0
        %v1228 = vadd.f32 0.0, %v1227
        %1229 = vmatmul.f32.gmra.mxu0 %v524
        %v1230 = vpop.f32.mrf.mxu0
        %v1231 = vadd.f32 0.0, %v1230
        %1232 = vmatmul.f32.gmra.mxu0 %v527
        %v1233 = vpop.f32.mrf.mxu0
        %v1234 = vadd.f32 0.0, %v1233
        %1235 = vmatmul.f32.gmra.mxu0 %v530
        %v1236 = vpop.f32.mrf.mxu0
        %v1237 = vadd.f32 0.0, %v1236
        %1238 = vdwg.mxu0
        %1239 = vmatpush.msra.mxu0 %v783
        %1240 = vmatpush.msra.mxu0 %v767
        %1241 = vmatpush.msra.mxu0 %v751
        %1242 = vmatpush.msra.mxu0 %v735
        %1243 = vmatpush.msra.mxu0 %v719
        %1244 = vmatpush.msra.mxu0 %v703
        %1245 = vmatpush.msra.mxu0 %v687
        %1246 = vmatpush.msra.mxu0 %v671
        %1247 = vmatpush.msra.mxu0 %v655
        %1248 = vmatpush.msra.mxu0 %v639
        %1249 = vmatpush.msra.mxu0 %v623
        %1250 = vmatpush.msra.mxu0 %v607
        %1251 = vmatpush.msra.mxu0 %v591
        %1252 = vmatpush.msra.mxu0 %v575
        %1253 = vmatpush.msra.mxu0 %v559
        %1254 = vmatpush.msra.mxu0 %v543
        %1255 = vmatmul.f32.gmra.mxu0 %v509
        %v1256 = vpop.f32.mrf.mxu0
        %v1257 = vadd.f32 0.0, %v1256
        %1258 = vmatmul.f32.gmra.mxu0 %v512
        %v1259 = vpop.f32.mrf.mxu0
        %v1260 = vadd.f32 0.0, %v1259
        %1261 = vmatmul.f32.gmra.mxu0 %v515
        %v1262 = vpop.f32.mrf.mxu0
        %v1263 = vadd.f32 0.0, %v1262
        %1264 = vmatmul.f32.gmra.mxu0 %v518
        %v1265 = vpop.f32.mrf.mxu0
        %v1266 = vadd.f32 0.0, %v1265
        %1267 = vmatmul.f32.gmra.mxu0 %v521
        %v1268 = vpop.f32.mrf.mxu0
        %v1269 = vadd.f32 0.0, %v1268
        %1270 = vmatmul.f32.gmra.mxu0 %v524
        %v1271 = vpop.f32.mrf.mxu0
        %v1272 = vadd.f32 0.0, %v1271
        %1273 = vmatmul.f32.gmra.mxu0 %v527
        %v1274 = vpop.f32.mrf.mxu0
        %v1275 = vadd.f32 0.0, %v1274
        %1276 = vmatmul.f32.gmra.mxu0 %v530
        %v1277 = vpop.f32.mrf.mxu0
        %v1278 = vadd.f32 0.0, %v1277
        %1279 = vdwg.mxu0
        %1280 = vmatpush.msra.mxu0 %v784
        %1281 = vmatpush.msra.mxu0 %v768
        %1282 = vmatpush.msra.mxu0 %v752
        %1283 = vmatpush.msra.mxu0 %v736
        %1284 = vmatpush.msra.mxu0 %v720
        %1285 = vmatpush.msra.mxu0 %v704
        %1286 = vmatpush.msra.mxu0 %v688
        %1287 = vmatpush.msra.mxu0 %v672
        %1288 = vmatpush.msra.mxu0 %v656
        %1289 = vmatpush.msra.mxu0 %v640
        %1290 = vmatpush.msra.mxu0 %v624
        %1291 = vmatpush.msra.mxu0 %v608
        %1292 = vmatpush.msra.mxu0 %v592
        %1293 = vmatpush.msra.mxu0 %v576
        %1294 = vmatpush.msra.mxu0 %v560
        %1295 = vmatpush.msra.mxu0 %v544
        %1296 = vmatmul.f32.gmra.mxu0 %v509
        %v1297 = vpop.f32.mrf.mxu0
        %v1298 = vadd.f32 0.0, %v1297
        %1299 = vmatmul.f32.gmra.mxu0 %v512
        %v1300 = vpop.f32.mrf.mxu0
        %v1301 = vadd.f32 0.0, %v1300
        %1302 = vmatmul.f32.gmra.mxu0 %v515
        %v1303 = vpop.f32.mrf.mxu0
        %v1304 = vadd.f32 0.0, %v1303
        %1305 = vmatmul.f32.gmra.mxu0 %v518
        %v1306 = vpop.f32.mrf.mxu0
        %v1307 = vadd.f32 0.0, %v1306
        %1308 = vmatmul.f32.gmra.mxu0 %v521
        %v1309 = vpop.f32.mrf.mxu0
        %v1310 = vadd.f32 0.0, %v1309
        %1311 = vmatmul.f32.gmra.mxu0 %v524
        %v1312 = vpop.f32.mrf.mxu0
        %v1313 = vadd.f32 0.0, %v1312
        %1314 = vmatmul.f32.gmra.mxu0 %v527
        %v1315 = vpop.f32.mrf.mxu0
        %v1316 = vadd.f32 0.0, %v1315
        %1317 = vmatmul.f32.gmra.mxu0 %v530
        %v1318 = vpop.f32.mrf.mxu0
        %v1319 = vadd.f32 0.0, %v1318
        %1320 = vdwg.mxu0
        %1321 = vmatpush.msra.mxu0 %v785
        %1322 = vmatpush.msra.mxu0 %v769
        %1323 = vmatpush.msra.mxu0 %v753
        %1324 = vmatpush.msra.mxu0 %v737
        %1325 = vmatpush.msra.mxu0 %v721
        %1326 = vmatpush.msra.mxu0 %v705
        %1327 = vmatpush.msra.mxu0 %v689
        %1328 = vmatpush.msra.mxu0 %v673
        %1329 = vmatpush.msra.mxu0 %v657
        %1330 = vmatpush.msra.mxu0 %v641
        %1331 = vmatpush.msra.mxu0 %v625
        %1332 = vmatpush.msra.mxu0 %v609
        %1333 = vmatpush.msra.mxu0 %v593
        %1334 = vmatpush.msra.mxu0 %v577
        %1335 = vmatpush.msra.mxu0 %v561
        %1336 = vmatpush.msra.mxu0 %v545
        %1337 = vmatmul.f32.gmra.mxu0 %v509
        %v1338 = vpop.f32.mrf.mxu0
        %v1339 = vadd.f32 0.0, %v1338
        %1340 = vmatmul.f32.gmra.mxu0 %v512
        %v1341 = vpop.f32.mrf.mxu0
        %v1342 = vadd.f32 0.0, %v1341
        %1343 = vmatmul.f32.gmra.mxu0 %v515
        %v1344 = vpop.f32.mrf.mxu0
        %v1345 = vadd.f32 0.0, %v1344
        %1346 = vmatmul.f32.gmra.mxu0 %v518
        %v1347 = vpop.f32.mrf.mxu0
        %v1348 = vadd.f32 0.0, %v1347
        %1349 = vmatmul.f32.gmra.mxu0 %v521
        %v1350 = vpop.f32.mrf.mxu0
        %v1351 = vadd.f32 0.0, %v1350
        %1352 = vmatmul.f32.gmra.mxu0 %v524
        %v1353 = vpop.f32.mrf.mxu0
        %v1354 = vadd.f32 0.0, %v1353
        %1355 = vmatmul.f32.gmra.mxu0 %v527
        %v1356 = vpop.f32.mrf.mxu0
        %v1357 = vadd.f32 0.0, %v1356
        %1358 = vmatmul.f32.gmra.mxu0 %v530
        %v1359 = vpop.f32.mrf.mxu0
        %v1360 = vadd.f32 0.0, %v1359
        %1361 = vdwg.mxu0
        %1362 = vmatpush.msra.mxu0 %v786
        %1363 = vmatpush.msra.mxu0 %v770
        %1364 = vmatpush.msra.mxu0 %v754
        %1365 = vmatpush.msra.mxu0 %v738
        %1366 = vmatpush.msra.mxu0 %v722
        %1367 = vmatpush.msra.mxu0 %v706
        %1368 = vmatpush.msra.mxu0 %v690
        %1369 = vmatpush.msra.mxu0 %v674
        %1370 = vmatpush.msra.mxu0 %v658
        %1371 = vmatpush.msra.mxu0 %v642
        %1372 = vmatpush.msra.mxu0 %v626
        %1373 = vmatpush.msra.mxu0 %v610
        %1374 = vmatpush.msra.mxu0 %v594
        %1375 = vmatpush.msra.mxu0 %v578
        %1376 = vmatpush.msra.mxu0 %v562
        %1377 = vmatpush.msra.mxu0 %v546
        %1378 = vmatmul.f32.gmra.mxu0 %v509
        %v1379 = vpop.f32.mrf.mxu0
        %v1380 = vadd.f32 0.0, %v1379
        %1381 = vmatmul.f32.gmra.mxu0 %v512
        %v1382 = vpop.f32.mrf.mxu0
        %v1383 = vadd.f32 0.0, %v1382
        %1384 = vmatmul.f32.gmra.mxu0 %v515
        %v1385 = vpop.f32.mrf.mxu0
        %v1386 = vadd.f32 0.0, %v1385
        %1387 = vmatmul.f32.gmra.mxu0 %v518
        %v1388 = vpop.f32.mrf.mxu0
        %v1389 = vadd.f32 0.0, %v1388
        %1390 = vmatmul.f32.gmra.mxu0 %v521
        %v1391 = vpop.f32.mrf.mxu0
        %v1392 = vadd.f32 0.0, %v1391
        %1393 = vmatmul.f32.gmra.mxu0 %v524
        %v1394 = vpop.f32.mrf.mxu0
        %v1395 = vadd.f32 0.0, %v1394
        %1396 = vmatmul.f32.gmra.mxu0 %v527
        %v1397 = vpop.f32.mrf.mxu0
        %v1398 = vadd.f32 0.0, %v1397
        %1399 = vmatmul.f32.gmra.mxu0 %v530
        %v1400 = vpop.f32.mrf.mxu0
        %v1401 = vadd.f32 0.0, %v1400
        %1402 = vdwg.mxu0
        %1403 = vmatpush.msra.mxu0 %v787
        %1404 = vmatpush.msra.mxu0 %v771
        %1405 = vmatpush.msra.mxu0 %v755
        %1406 = vmatpush.msra.mxu0 %v739
        %1407 = vmatpush.msra.mxu0 %v723
        %1408 = vmatpush.msra.mxu0 %v707
        %1409 = vmatpush.msra.mxu0 %v691
        %1410 = vmatpush.msra.mxu0 %v675
        %1411 = vmatpush.msra.mxu0 %v659
        %1412 = vmatpush.msra.mxu0 %v643
        %1413 = vmatpush.msra.mxu0 %v627
        %1414 = vmatpush.msra.mxu0 %v611
        %1415 = vmatpush.msra.mxu0 %v595
        %1416 = vmatpush.msra.mxu0 %v579
        %1417 = vmatpush.msra.mxu0 %v563
        %1418 = vmatpush.msra.mxu0 %v547
        %1419 = vmatmul.f32.gmra.mxu0 %v509
        %v1420 = vpop.f32.mrf.mxu0
        %v1421 = vadd.f32 0.0, %v1420
        %1422 = vmatmul.f32.gmra.mxu0 %v512
        %v1423 = vpop.f32.mrf.mxu0
        %v1424 = vadd.f32 0.0, %v1423
        %1425 = vmatmul.f32.gmra.mxu0 %v515
        %v1426 = vpop.f32.mrf.mxu0
        %v1427 = vadd.f32 0.0, %v1426
        %1428 = vmatmul.f32.gmra.mxu0 %v518
        %v1429 = vpop.f32.mrf.mxu0
        %v1430 = vadd.f32 0.0, %v1429
        %1431 = vmatmul.f32.gmra.mxu0 %v521
        %v1432 = vpop.f32.mrf.mxu0
        %v1433 = vadd.f32 0.0, %v1432
        %1434 = vmatmul.f32.gmra.mxu0 %v524
        %v1435 = vpop.f32.mrf.mxu0
        %v1436 = vadd.f32 0.0, %v1435
        %1437 = vmatmul.f32.gmra.mxu0 %v527
        %v1438 = vpop.f32.mrf.mxu0
        %v1439 = vadd.f32 0.0, %v1438
        %1440 = vmatmul.f32.gmra.mxu0 %v530
        %v1441 = vpop.f32.mrf.mxu0
        %v1442 = vadd.f32 0.0, %v1441
        %1443 = vdwg.mxu0
        %v1444 = vmul.f32 %v806, %v1134
        %v1445 = vmul.f32 %v847, %v1175
        %v1446 = vmul.f32 %v809, %v1137
        %v1447 = vmul.f32 %v850, %v1178
        %v1448 = vmul.f32 %v812, %v1140
        %v1449 = vmul.f32 %v853, %v1181
        %v1450 = vmul.f32 %v815, %v1143
        %v1451 = vmul.f32 %v856, %v1184
        %v1452 = vmul.f32 %v818, %v1146
        %v1453 = vmul.f32 %v859, %v1187
        %v1454 = vmul.f32 %v821, %v1149
        %v1455 = vmul.f32 %v862, %v1190
        %v1456 = vmul.f32 %v824, %v1152
        %v1457 = vmul.f32 %v865, %v1193
        %v1458 = vmul.f32 %v827, %v1155
        %v1459 = vmul.f32 %v868, %v1196
        %v1460 = vmul.f32 %v888, %v1216
        %v1461 = vmul.f32 %v929, %v1257
        %v1462 = vmul.f32 %v891, %v1219
        %v1463 = vmul.f32 %v932, %v1260
        %v1464 = vmul.f32 %v894, %v1222
        %v1465 = vmul.f32 %v935, %v1263
        %v1466 = vmul.f32 %v897, %v1225
        %v1467 = vmul.f32 %v938, %v1266
        %v1468 = vmul.f32 %v900, %v1228
        %v1469 = vmul.f32 %v941, %v1269
        %v1470 = vmul.f32 %v903, %v1231
        %v1471 = vmul.f32 %v944, %v1272
        %v1472 = vmul.f32 %v906, %v1234
        %v1473 = vmul.f32 %v947, %v1275
        %v1474 = vmul.f32 %v909, %v1237
        %v1475 = vmul.f32 %v950, %v1278
        %v1476 = vadd.f32 %v1444, %v1460
        %v1477 = vadd.f32 %v1445, %v1461
        %v1478 = vadd.f32 %v1446, %v1462
        %v1479 = vadd.f32 %v1447, %v1463
        %v1480 = vadd.f32 %v1448, %v1464
        %v1481 = vadd.f32 %v1449, %v1465
        %v1482 = vadd.f32 %v1450, %v1466
        %v1483 = vadd.f32 %v1451, %v1467
        %v1484 = vadd.f32 %v1452, %v1468
        %v1485 = vadd.f32 %v1453, %v1469
        %v1486 = vadd.f32 %v1454, %v1470
        %v1487 = vadd.f32 %v1455, %v1471
        %v1488 = vadd.f32 %v1456, %v1472
        %v1489 = vadd.f32 %v1457, %v1473
        %v1490 = vadd.f32 %v1458, %v1474
        %v1491 = vadd.f32 %v1459, %v1475
        %v1492 = vmul.f32 %v970, %v1298
        %v1493 = vmul.f32 %v1011, %v1339
        %v1494 = vmul.f32 %v973, %v1301
        %v1495 = vmul.f32 %v1014, %v1342
        %v1496 = vmul.f32 %v976, %v1304
        %v1497 = vmul.f32 %v1017, %v1345
        %v1498 = vmul.f32 %v979, %v1307
        %v1499 = vmul.f32 %v1020, %v1348
        %v1500 = vmul.f32 %v982, %v1310
        %v1501 = vmul.f32 %v1023, %v1351
        %v1502 = vmul.f32 %v985, %v1313
        %v1503 = vmul.f32 %v1026, %v1354
        %v1504 = vmul.f32 %v988, %v1316
        %v1505 = vmul.f32 %v1029, %v1357
        %v1506 = vmul.f32 %v991, %v1319
        %v1507 = vmul.f32 %v1032, %v1360
        %v1508 = vadd.f32 %v1476, %v1492
        %v1509 = vadd.f32 %v1477, %v1493
        %v1510 = vadd.f32 %v1478, %v1494
        %v1511 = vadd.f32 %v1479, %v1495
        %v1512 = vadd.f32 %v1480, %v1496
        %v1513 = vadd.f32 %v1481, %v1497
        %v1514 = vadd.f32 %v1482, %v1498
        %v1515 = vadd.f32 %v1483, %v1499
        %v1516 = vadd.f32 %v1484, %v1500
        %v1517 = vadd.f32 %v1485, %v1501
        %v1518 = vadd.f32 %v1486, %v1502
        %v1519 = vadd.f32 %v1487, %v1503
        %v1520 = vadd.f32 %v1488, %v1504
        %v1521 = vadd.f32 %v1489, %v1505
        %v1522 = vadd.f32 %v1490, %v1506
        %v1523 = vadd.f32 %v1491, %v1507
        %v1524 = vmul.f32 %v1052, %v1380
        %v1525 = vmul.f32 %v1093, %v1421
        %v1526 = vmul.f32 %v1055, %v1383
        %v1527 = vmul.f32 %v1096, %v1424
        %v1528 = vmul.f32 %v1058, %v1386
        %v1529 = vmul.f32 %v1099, %v1427
        %v1530 = vmul.f32 %v1061, %v1389
        %v1531 = vmul.f32 %v1102, %v1430
        %v1532 = vmul.f32 %v1064, %v1392
        %v1533 = vmul.f32 %v1105, %v1433
        %v1534 = vmul.f32 %v1067, %v1395
        %v1535 = vmul.f32 %v1108, %v1436
        %v1536 = vmul.f32 %v1070, %v1398
        %v1537 = vmul.f32 %v1111, %v1439
        %v1538 = vmul.f32 %v1073, %v1401
        %v1539 = vmul.f32 %v1114, %v1442
        %v1540 = vadd.f32 %v1508, %v1524
        %v1541 = vadd.f32 %v1509, %v1525
        %v1542 = vadd.f32 %v1510, %v1526
        %v1543 = vadd.f32 %v1511, %v1527
        %v1544 = vadd.f32 %v1512, %v1528
        %v1545 = vadd.f32 %v1513, %v1529
        %v1546 = vadd.f32 %v1514, %v1530
        %v1547 = vadd.f32 %v1515, %v1531
        %v1548 = vadd.f32 %v1516, %v1532
        %v1549 = vadd.f32 %v1517, %v1533
        %v1550 = vadd.f32 %v1518, %v1534
        %v1551 = vadd.f32 %v1519, %v1535
        %v1552 = vadd.f32 %v1520, %v1536
        %v1553 = vadd.f32 %v1521, %v1537
        %v1554 = vadd.f32 %v1522, %v1538
        %v1555 = vadd.f32 %v1523, %v1539
        %v1556 = vld [vmem:[%s3] sm:$0xff]
        %v1557 = vld [vmem:[%s3 + $0x8] sm:$0xff]
        %v1558 = vld [vmem:[%s3 + $0x10] sm:$0xff]
        %v1559 = vld [vmem:[%s3 + $0x18] sm:$0xff]
        %v1560 = vld [vmem:[%s3 + $0x20] sm:$0xff]
        %v1561 = vld [vmem:[%s3 + $0x28] sm:$0xff]
        %v1562 = vld [vmem:[%s3 + $0x30] sm:$0xff]
        %v1563 = vld [vmem:[%s3 + $0x38] sm:$0xff]
        %v1564 = vld [vmem:[%s3 + $0x40] sm:$0xff]
        %v1565 = vld [vmem:[%s3 + $0x48] sm:$0xff]
        %v1566 = vld [vmem:[%s3 + $0x50] sm:$0xff]
        %v1567 = vld [vmem:[%s3 + $0x58] sm:$0xff]
        %v1568 = vld [vmem:[%s3 + $0x60] sm:$0xff]
        %v1569 = vld [vmem:[%s3 + $0x68] sm:$0xff]
        %v1570 = vld [vmem:[%s3 + $0x70] sm:$0xff]
        %v1571 = vld [vmem:[%s3 + $0x78] sm:$0xff]
        %v1572 = vld [vmem:[%s3 + $0x80] sm:$0xff]
        %v1573 = vld [vmem:[%s3 + $0x88] sm:$0xff]
        %v1574 = vld [vmem:[%s3 + $0x90] sm:$0xff]
        %v1575 = vld [vmem:[%s3 + $0x98] sm:$0xff]
        %v1576 = vld [vmem:[%s3 + $0xa0] sm:$0xff]
        %v1577 = vld [vmem:[%s3 + $0xa8] sm:$0xff]
        %v1578 = vld [vmem:[%s3 + $0xb0] sm:$0xff]
        %v1579 = vld [vmem:[%s3 + $0xb8] sm:$0xff]
        %v1580 = vld [vmem:[%s3 + $0xc0] sm:$0xff]
        %v1581 = vld [vmem:[%s3 + $0xc8] sm:$0xff]
        %v1582 = vld [vmem:[%s3 + $0xd0] sm:$0xff]
        %v1583 = vld [vmem:[%s3 + $0xd8] sm:$0xff]
        %v1584 = vld [vmem:[%s3 + $0xe0] sm:$0xff]
        %v1585 = vld [vmem:[%s3 + $0xe8] sm:$0xff]
        %v1586 = vld [vmem:[%s3 + $0xf0] sm:$0xff]
        %v1587 = vld [vmem:[%s3 + $0xf8] sm:$0xff]
        %v1588 = vld [vmem:[%s3 + $0x100] sm:$0xff]
        %v1589 = vld [vmem:[%s3 + $0x108] sm:$0xff]
        %v1590 = vld [vmem:[%s3 + $0x110] sm:$0xff]
        %v1591 = vld [vmem:[%s3 + $0x118] sm:$0xff]
        %v1592 = vld [vmem:[%s3 + $0x120] sm:$0xff]
        %v1593 = vld [vmem:[%s3 + $0x128] sm:$0xff]
        %v1594 = vld [vmem:[%s3 + $0x130] sm:$0xff]
        %v1595 = vld [vmem:[%s3 + $0x138] sm:$0xff]
        %v1596 = vld [vmem:[%s3 + $0x140] sm:$0xff]
        %v1597 = vld [vmem:[%s3 + $0x148] sm:$0xff]
        %v1598 = vld [vmem:[%s3 + $0x150] sm:$0xff]
        %v1599 = vld [vmem:[%s3 + $0x158] sm:$0xff]
        %v1600 = vld [vmem:[%s3 + $0x160] sm:$0xff]
        %v1601 = vld [vmem:[%s3 + $0x168] sm:$0xff]
        %v1602 = vld [vmem:[%s3 + $0x170] sm:$0xff]
        %v1603 = vld [vmem:[%s3 + $0x178] sm:$0xff]
        %v1604 = vld [vmem:[%s3 + $0x180] sm:$0xff]
        %v1605 = vld [vmem:[%s3 + $0x188] sm:$0xff]
        %v1606 = vld [vmem:[%s3 + $0x190] sm:$0xff]
        %v1607 = vld [vmem:[%s3 + $0x198] sm:$0xff]
        %v1608 = vld [vmem:[%s3 + $0x1a0] sm:$0xff]
        %v1609 = vld [vmem:[%s3 + $0x1a8] sm:$0xff]
        %v1610 = vld [vmem:[%s3 + $0x1b0] sm:$0xff]
        %v1611 = vld [vmem:[%s3 + $0x1b8] sm:$0xff]
        %v1612 = vld [vmem:[%s3 + $0x1c0] sm:$0xff]
        %v1613 = vld [vmem:[%s3 + $0x1c8] sm:$0xff]
        %v1614 = vld [vmem:[%s3 + $0x1d0] sm:$0xff]
        %v1615 = vld [vmem:[%s3 + $0x1d8] sm:$0xff]
        %v1616 = vld [vmem:[%s3 + $0x1e0] sm:$0xff]
        %v1617 = vld [vmem:[%s3 + $0x1e8] sm:$0xff]
        %v1618 = vld [vmem:[%s3 + $0x1f0] sm:$0xff]
        %v1619 = vld [vmem:[%s3 + $0x1f8] sm:$0xff]
        %vm1620 = vcmask 523264
        %v1622 = vsel %vm1620, %v1556, 0
        %v1625 = vsel %vm1620, %v1557, 0
        %v1628 = vsel %vm1620, %v1558, 0
        %v1631 = vsel %vm1620, %v1559, 0
        %v1634 = vsel %vm1620, %v1560, 0
        %v1637 = vsel %vm1620, %v1561, 0
        %v1640 = vsel %vm1620, %v1562, 0
        %v1643 = vsel %vm1620, %v1563, 0
        %v1646 = vsel %vm1620, %v1564, 0
        %v1649 = vsel %vm1620, %v1565, 0
        %v1652 = vsel %vm1620, %v1566, 0
        %v1655 = vsel %vm1620, %v1567, 0
        %v1658 = vsel %vm1620, %v1568, 0
        %v1661 = vsel %vm1620, %v1569, 0
        %v1664 = vsel %vm1620, %v1570, 0
        %v1667 = vsel %vm1620, %v1571, 0
        %v1670 = vsel %vm1620, %v1572, 0
        %v1673 = vsel %vm1620, %v1573, 0
        %v1676 = vsel %vm1620, %v1574, 0
        %v1679 = vsel %vm1620, %v1575, 0
        %v1682 = vsel %vm1620, %v1576, 0
        %v1685 = vsel %vm1620, %v1577, 0
        %v1688 = vsel %vm1620, %v1578, 0
        %v1691 = vsel %vm1620, %v1579, 0
        %v1694 = vsel %vm1620, %v1580, 0
        %v1697 = vsel %vm1620, %v1581, 0
        %v1700 = vsel %vm1620, %v1582, 0
        %v1703 = vsel %vm1620, %v1583, 0
        %v1706 = vsel %vm1620, %v1584, 0
        %v1709 = vsel %vm1620, %v1585, 0
        %v1712 = vsel %vm1620, %v1586, 0
        %v1715 = vsel %vm1620, %v1587, 0
        %v1718 = vsel %vm1620, %v1588, 0
        %v1721 = vsel %vm1620, %v1589, 0
        %v1724 = vsel %vm1620, %v1590, 0
        %v1727 = vsel %vm1620, %v1591, 0
        %v1730 = vsel %vm1620, %v1592, 0
        %v1733 = vsel %vm1620, %v1593, 0
        %v1736 = vsel %vm1620, %v1594, 0
        %v1739 = vsel %vm1620, %v1595, 0
        %v1742 = vsel %vm1620, %v1596, 0
        %v1745 = vsel %vm1620, %v1597, 0
        %v1748 = vsel %vm1620, %v1598, 0
        %v1751 = vsel %vm1620, %v1599, 0
        %v1754 = vsel %vm1620, %v1600, 0
        %v1757 = vsel %vm1620, %v1601, 0
        %v1760 = vsel %vm1620, %v1602, 0
        %v1763 = vsel %vm1620, %v1603, 0
        %v1766 = vsel %vm1620, %v1604, 0
        %v1769 = vsel %vm1620, %v1605, 0
        %v1772 = vsel %vm1620, %v1606, 0
        %v1775 = vsel %vm1620, %v1607, 0
        %v1778 = vsel %vm1620, %v1608, 0
        %v1781 = vsel %vm1620, %v1609, 0
        %v1784 = vsel %vm1620, %v1610, 0
        %v1787 = vsel %vm1620, %v1611, 0
        %v1790 = vsel %vm1620, %v1612, 0
        %v1793 = vsel %vm1620, %v1613, 0
        %v1796 = vsel %vm1620, %v1614, 0
        %v1799 = vsel %vm1620, %v1615, 0
        %v1802 = vsel %vm1620, %v1616, 0
        %v1805 = vsel %vm1620, %v1617, 0
        %v1808 = vsel %vm1620, %v1618, 0
        %v1811 = vsel %vm1620, %v1619, 0
        %1813 = vmatpush.msra.mxu0 0.0
        %1814 = vmatpush.msra.mxu0 0.0
        %1815 = vmatpush.msra.mxu0 0.0
        %1816 = vmatpush.msra.mxu0 0.0
        %1817 = vmatpush.msra.mxu0 0.0
        %1818 = vmatpush.msra.mxu0 0.0
        %1819 = vmatpush.msra.mxu0 0.0
        %1820 = vmatpush.msra.mxu0 0.0
        %1821 = vmatpush.msra.mxu0 %v389
        %1822 = vmatpush.msra.mxu0 %v387
        %1823 = vmatpush.msra.mxu0 %v385
        %1824 = vmatpush.msra.mxu0 %v383
        %1825 = vmatpush.msra.mxu0 %v381
        %1826 = vmatpush.msra.mxu0 %v379
        %1827 = vmatpush.msra.mxu0 %v377
        %1828 = vmatpush.msra.mxu0 %v375
        %1829 = vmatmul.f32.gmra.mxu0 %v1622
        %v1830 = vpop.f32.mrf.mxu0
        %v1831 = vadd.f32 0.0, %v1830
        %1832 = vmatmul.f32.gmra.mxu0 %v1625
        %v1833 = vpop.f32.mrf.mxu0
        %v1834 = vadd.f32 0.0, %v1833
        %1835 = vmatmul.f32.gmra.mxu0 %v1628
        %v1836 = vpop.f32.mrf.mxu0
        %v1837 = vadd.f32 0.0, %v1836
        %1838 = vmatmul.f32.gmra.mxu0 %v1631
        %v1839 = vpop.f32.mrf.mxu0
        %v1840 = vadd.f32 0.0, %v1839
        %1841 = vmatmul.f32.gmra.mxu0 %v1634
        %v1842 = vpop.f32.mrf.mxu0
        %v1843 = vadd.f32 0.0, %v1842
        %1844 = vmatmul.f32.gmra.mxu0 %v1637
        %v1845 = vpop.f32.mrf.mxu0
        %v1846 = vadd.f32 0.0, %v1845
        %1847 = vmatmul.f32.gmra.mxu0 %v1640
        %v1848 = vpop.f32.mrf.mxu0
        %v1849 = vadd.f32 0.0, %v1848
        %1850 = vmatmul.f32.gmra.mxu0 %v1643
        %v1851 = vpop.f32.mrf.mxu0
        %v1852 = vadd.f32 0.0, %v1851
        %1853 = vmatmul.f32.gmra.mxu0 %v1646
        %v1854 = vpop.f32.mrf.mxu0
        %v1855 = vadd.f32 0.0, %v1854
        %1856 = vmatmul.f32.gmra.mxu0 %v1649
        %v1857 = vpop.f32.mrf.mxu0
        %v1858 = vadd.f32 0.0, %v1857
        %1859 = vmatmul.f32.gmra.mxu0 %v1652
        %v1860 = vpop.f32.mrf.mxu0
        %v1861 = vadd.f32 0.0, %v1860
        %1862 = vmatmul.f32.gmra.mxu0 %v1655
        %v1863 = vpop.f32.mrf.mxu0
        %v1864 = vadd.f32 0.0, %v1863
        %1865 = vmatmul.f32.gmra.mxu0 %v1658
        %v1866 = vpop.f32.mrf.mxu0
        %v1867 = vadd.f32 0.0, %v1866
        %1868 = vmatmul.f32.gmra.mxu0 %v1661
        %v1869 = vpop.f32.mrf.mxu0
        %v1870 = vadd.f32 0.0, %v1869
        %1871 = vmatmul.f32.gmra.mxu0 %v1664
        %v1872 = vpop.f32.mrf.mxu0
        %v1873 = vadd.f32 0.0, %v1872
        %1874 = vmatmul.f32.gmra.mxu0 %v1667
        %v1875 = vpop.f32.mrf.mxu0
        %v1876 = vadd.f32 0.0, %v1875
        %1877 = vmatmul.f32.gmra.mxu0 %v1670
        %v1878 = vpop.f32.mrf.mxu0
        %v1879 = vadd.f32 0.0, %v1878
        %1880 = vmatmul.f32.gmra.mxu0 %v1673
        %v1881 = vpop.f32.mrf.mxu0
        %v1882 = vadd.f32 0.0, %v1881
        %1883 = vmatmul.f32.gmra.mxu0 %v1676
        %v1884 = vpop.f32.mrf.mxu0
        %v1885 = vadd.f32 0.0, %v1884
        %1886 = vmatmul.f32.gmra.mxu0 %v1679
        %v1887 = vpop.f32.mrf.mxu0
        %v1888 = vadd.f32 0.0, %v1887
        %1889 = vmatmul.f32.gmra.mxu0 %v1682
        %v1890 = vpop.f32.mrf.mxu0
        %v1891 = vadd.f32 0.0, %v1890
        %1892 = vmatmul.f32.gmra.mxu0 %v1685
        %v1893 = vpop.f32.mrf.mxu0
        %v1894 = vadd.f32 0.0, %v1893
        %1895 = vmatmul.f32.gmra.mxu0 %v1688
        %v1896 = vpop.f32.mrf.mxu0
        %v1897 = vadd.f32 0.0, %v1896
        %1898 = vmatmul.f32.gmra.mxu0 %v1691
        %v1899 = vpop.f32.mrf.mxu0
        %v1900 = vadd.f32 0.0, %v1899
        %1901 = vmatmul.f32.gmra.mxu0 %v1694
        %v1902 = vpop.f32.mrf.mxu0
        %v1903 = vadd.f32 0.0, %v1902
        %1904 = vmatmul.f32.gmra.mxu0 %v1697
        %v1905 = vpop.f32.mrf.mxu0
        %v1906 = vadd.f32 0.0, %v1905
        %1907 = vmatmul.f32.gmra.mxu0 %v1700
        %v1908 = vpop.f32.mrf.mxu0
        %v1909 = vadd.f32 0.0, %v1908
        %1910 = vmatmul.f32.gmra.mxu0 %v1703
        %v1911 = vpop.f32.mrf.mxu0
        %v1912 = vadd.f32 0.0, %v1911
        %1913 = vmatmul.f32.gmra.mxu0 %v1706
        %v1914 = vpop.f32.mrf.mxu0
        %v1915 = vadd.f32 0.0, %v1914
        %1916 = vmatmul.f32.gmra.mxu0 %v1709
        %v1917 = vpop.f32.mrf.mxu0
        %v1918 = vadd.f32 0.0, %v1917
        %1919 = vmatmul.f32.gmra.mxu0 %v1712
        %v1920 = vpop.f32.mrf.mxu0
        %v1921 = vadd.f32 0.0, %v1920
        %1922 = vmatmul.f32.gmra.mxu0 %v1715
        %v1923 = vpop.f32.mrf.mxu0
        %v1924 = vadd.f32 0.0, %v1923
        %1925 = vmatmul.f32.gmra.mxu0 %v1718
        %v1926 = vpop.f32.mrf.mxu0
        %v1927 = vadd.f32 0.0, %v1926
        %1928 = vmatmul.f32.gmra.mxu0 %v1721
        %v1929 = vpop.f32.mrf.mxu0
        %v1930 = vadd.f32 0.0, %v1929
        %1931 = vmatmul.f32.gmra.mxu0 %v1724
        %v1932 = vpop.f32.mrf.mxu0
        %v1933 = vadd.f32 0.0, %v1932
        %1934 = vmatmul.f32.gmra.mxu0 %v1727
        %v1935 = vpop.f32.mrf.mxu0
        %v1936 = vadd.f32 0.0, %v1935
        %1937 = vmatmul.f32.gmra.mxu0 %v1730
        %v1938 = vpop.f32.mrf.mxu0
        %v1939 = vadd.f32 0.0, %v1938
        %1940 = vmatmul.f32.gmra.mxu0 %v1733
        %v1941 = vpop.f32.mrf.mxu0
        %v1942 = vadd.f32 0.0, %v1941
        %1943 = vmatmul.f32.gmra.mxu0 %v1736
        %v1944 = vpop.f32.mrf.mxu0
        %v1945 = vadd.f32 0.0, %v1944
        %1946 = vmatmul.f32.gmra.mxu0 %v1739
        %v1947 = vpop.f32.mrf.mxu0
        %v1948 = vadd.f32 0.0, %v1947
        %1949 = vmatmul.f32.gmra.mxu0 %v1742
        %v1950 = vpop.f32.mrf.mxu0
        %v1951 = vadd.f32 0.0, %v1950
        %1952 = vmatmul.f32.gmra.mxu0 %v1745
        %v1953 = vpop.f32.mrf.mxu0
        %v1954 = vadd.f32 0.0, %v1953
        %1955 = vmatmul.f32.gmra.mxu0 %v1748
        %v1956 = vpop.f32.mrf.mxu0
        %v1957 = vadd.f32 0.0, %v1956
        %1958 = vmatmul.f32.gmra.mxu0 %v1751
        %v1959 = vpop.f32.mrf.mxu0
        %v1960 = vadd.f32 0.0, %v1959
        %1961 = vmatmul.f32.gmra.mxu0 %v1754
        %v1962 = vpop.f32.mrf.mxu0
        %v1963 = vadd.f32 0.0, %v1962
        %1964 = vmatmul.f32.gmra.mxu0 %v1757
        %v1965 = vpop.f32.mrf.mxu0
        %v1966 = vadd.f32 0.0, %v1965
        %1967 = vmatmul.f32.gmra.mxu0 %v1760
        %v1968 = vpop.f32.mrf.mxu0
        %v1969 = vadd.f32 0.0, %v1968
        %1970 = vmatmul.f32.gmra.mxu0 %v1763
        %v1971 = vpop.f32.mrf.mxu0
        %v1972 = vadd.f32 0.0, %v1971
        %1973 = vmatmul.f32.gmra.mxu0 %v1766
        %v1974 = vpop.f32.mrf.mxu0
        %v1975 = vadd.f32 0.0, %v1974
        %1976 = vmatmul.f32.gmra.mxu0 %v1769
        %v1977 = vpop.f32.mrf.mxu0
        %v1978 = vadd.f32 0.0, %v1977
        %1979 = vmatmul.f32.gmra.mxu0 %v1772
        %v1980 = vpop.f32.mrf.mxu0
        %v1981 = vadd.f32 0.0, %v1980
        %1982 = vmatmul.f32.gmra.mxu0 %v1775
        %v1983 = vpop.f32.mrf.mxu0
        %v1984 = vadd.f32 0.0, %v1983
        %1985 = vmatmul.f32.gmra.mxu0 %v1778
        %v1986 = vpop.f32.mrf.mxu0
        %v1987 = vadd.f32 0.0, %v1986
        %1988 = vmatmul.f32.gmra.mxu0 %v1781
        %v1989 = vpop.f32.mrf.mxu0
        %v1990 = vadd.f32 0.0, %v1989
        %1991 = vmatmul.f32.gmra.mxu0 %v1784
        %v1992 = vpop.f32.mrf.mxu0
        %v1993 = vadd.f32 0.0, %v1992
        %1994 = vmatmul.f32.gmra.mxu0 %v1787
        %v1995 = vpop.f32.mrf.mxu0
        %v1996 = vadd.f32 0.0, %v1995
        %1997 = vmatmul.f32.gmra.mxu0 %v1790
        %v1998 = vpop.f32.mrf.mxu0
        %v1999 = vadd.f32 0.0, %v1998
        %2000 = vmatmul.f32.gmra.mxu0 %v1793
        %v2001 = vpop.f32.mrf.mxu0
        %v2002 = vadd.f32 0.0, %v2001
        %2003 = vmatmul.f32.gmra.mxu0 %v1796
        %v2004 = vpop.f32.mrf.mxu0
        %v2005 = vadd.f32 0.0, %v2004
        %2006 = vmatmul.f32.gmra.mxu0 %v1799
        %v2007 = vpop.f32.mrf.mxu0
        %v2008 = vadd.f32 0.0, %v2007
        %2009 = vmatmul.f32.gmra.mxu0 %v1802
        %v2010 = vpop.f32.mrf.mxu0
        %v2011 = vadd.f32 0.0, %v2010
        %2012 = vmatmul.f32.gmra.mxu0 %v1805
        %v2013 = vpop.f32.mrf.mxu0
        %v2014 = vadd.f32 0.0, %v2013
        %2015 = vmatmul.f32.gmra.mxu0 %v1808
        %v2016 = vpop.f32.mrf.mxu0
        %v2017 = vadd.f32 0.0, %v2016
        %2018 = vmatmul.f32.gmra.mxu0 %v1811
        %v2019 = vpop.f32.mrf.mxu0
        %v2020 = vadd.f32 0.0, %v2019
        %2021 = vdwg.mxu0
        %2022 = vmatpush.msra.mxu0 0.0
        %2023 = vmatpush.msra.mxu0 0.0
        %2024 = vmatpush.msra.mxu0 0.0
        %2025 = vmatpush.msra.mxu0 0.0
        %2026 = vmatpush.msra.mxu0 0.0
        %2027 = vmatpush.msra.mxu0 0.0
        %2028 = vmatpush.msra.mxu0 0.0
        %2029 = vmatpush.msra.mxu0 0.0
        %2030 = vmatpush.msra.mxu0 %v390
        %2031 = vmatpush.msra.mxu0 %v388
        %2032 = vmatpush.msra.mxu0 %v386
        %2033 = vmatpush.msra.mxu0 %v384
        %2034 = vmatpush.msra.mxu0 %v382
        %2035 = vmatpush.msra.mxu0 %v380
        %2036 = vmatpush.msra.mxu0 %v378
        %2037 = vmatpush.msra.mxu0 %v376
        %2038 = vmatmul.f32.gmra.mxu0 %v1622
        %v2039 = vpop.f32.mrf.mxu0
        %v2040 = vadd.f32 0.0, %v2039
        %2041 = vmatmul.f32.gmra.mxu0 %v1625
        %v2042 = vpop.f32.mrf.mxu0
        %v2043 = vadd.f32 0.0, %v2042
        %2044 = vmatmul.f32.gmra.mxu0 %v1628
        %v2045 = vpop.f32.mrf.mxu0
        %v2046 = vadd.f32 0.0, %v2045
        %2047 = vmatmul.f32.gmra.mxu0 %v1631
        %v2048 = vpop.f32.mrf.mxu0
        %v2049 = vadd.f32 0.0, %v2048
        %2050 = vmatmul.f32.gmra.mxu0 %v1634
        %v2051 = vpop.f32.mrf.mxu0
        %v2052 = vadd.f32 0.0, %v2051
        %2053 = vmatmul.f32.gmra.mxu0 %v1637
        %v2054 = vpop.f32.mrf.mxu0
        %v2055 = vadd.f32 0.0, %v2054
        %2056 = vmatmul.f32.gmra.mxu0 %v1640
        %v2057 = vpop.f32.mrf.mxu0
        %v2058 = vadd.f32 0.0, %v2057
        %2059 = vmatmul.f32.gmra.mxu0 %v1643
        %v2060 = vpop.f32.mrf.mxu0
        %v2061 = vadd.f32 0.0, %v2060
        %2062 = vmatmul.f32.gmra.mxu0 %v1646
        %v2063 = vpop.f32.mrf.mxu0
        %v2064 = vadd.f32 0.0, %v2063
        %2065 = vmatmul.f32.gmra.mxu0 %v1649
        %v2066 = vpop.f32.mrf.mxu0
        %v2067 = vadd.f32 0.0, %v2066
        %2068 = vmatmul.f32.gmra.mxu0 %v1652
        %v2069 = vpop.f32.mrf.mxu0
        %v2070 = vadd.f32 0.0, %v2069
        %2071 = vmatmul.f32.gmra.mxu0 %v1655
        %v2072 = vpop.f32.mrf.mxu0
        %v2073 = vadd.f32 0.0, %v2072
        %2074 = vmatmul.f32.gmra.mxu0 %v1658
        %v2075 = vpop.f32.mrf.mxu0
        %v2076 = vadd.f32 0.0, %v2075
        %2077 = vmatmul.f32.gmra.mxu0 %v1661
        %v2078 = vpop.f32.mrf.mxu0
        %v2079 = vadd.f32 0.0, %v2078
        %2080 = vmatmul.f32.gmra.mxu0 %v1664
        %v2081 = vpop.f32.mrf.mxu0
        %v2082 = vadd.f32 0.0, %v2081
        %2083 = vmatmul.f32.gmra.mxu0 %v1667
        %v2084 = vpop.f32.mrf.mxu0
        %v2085 = vadd.f32 0.0, %v2084
        %2086 = vmatmul.f32.gmra.mxu0 %v1670
        %v2087 = vpop.f32.mrf.mxu0
        %v2088 = vadd.f32 0.0, %v2087
        %2089 = vmatmul.f32.gmra.mxu0 %v1673
        %v2090 = vpop.f32.mrf.mxu0
        %v2091 = vadd.f32 0.0, %v2090
        %2092 = vmatmul.f32.gmra.mxu0 %v1676
        %v2093 = vpop.f32.mrf.mxu0
        %v2094 = vadd.f32 0.0, %v2093
        %2095 = vmatmul.f32.gmra.mxu0 %v1679
        %v2096 = vpop.f32.mrf.mxu0
        %v2097 = vadd.f32 0.0, %v2096
        %2098 = vmatmul.f32.gmra.mxu0 %v1682
        %v2099 = vpop.f32.mrf.mxu0
        %v2100 = vadd.f32 0.0, %v2099
        %2101 = vmatmul.f32.gmra.mxu0 %v1685
        %v2102 = vpop.f32.mrf.mxu0
        %v2103 = vadd.f32 0.0, %v2102
        %2104 = vmatmul.f32.gmra.mxu0 %v1688
        %v2105 = vpop.f32.mrf.mxu0
        %v2106 = vadd.f32 0.0, %v2105
        %2107 = vmatmul.f32.gmra.mxu0 %v1691
        %v2108 = vpop.f32.mrf.mxu0
        %v2109 = vadd.f32 0.0, %v2108
        %2110 = vmatmul.f32.gmra.mxu0 %v1694
        %v2111 = vpop.f32.mrf.mxu0
        %v2112 = vadd.f32 0.0, %v2111
        %2113 = vmatmul.f32.gmra.mxu0 %v1697
        %v2114 = vpop.f32.mrf.mxu0
        %v2115 = vadd.f32 0.0, %v2114
        %2116 = vmatmul.f32.gmra.mxu0 %v1700
        %v2117 = vpop.f32.mrf.mxu0
        %v2118 = vadd.f32 0.0, %v2117
        %2119 = vmatmul.f32.gmra.mxu0 %v1703
        %v2120 = vpop.f32.mrf.mxu0
        %v2121 = vadd.f32 0.0, %v2120
        %2122 = vmatmul.f32.gmra.mxu0 %v1706
        %v2123 = vpop.f32.mrf.mxu0
        %v2124 = vadd.f32 0.0, %v2123
        %2125 = vmatmul.f32.gmra.mxu0 %v1709
        %v2126 = vpop.f32.mrf.mxu0
        %v2127 = vadd.f32 0.0, %v2126
        %2128 = vmatmul.f32.gmra.mxu0 %v1712
        %v2129 = vpop.f32.mrf.mxu0
        %v2130 = vadd.f32 0.0, %v2129
        %2131 = vmatmul.f32.gmra.mxu0 %v1715
        %v2132 = vpop.f32.mrf.mxu0
        %v2133 = vadd.f32 0.0, %v2132
        %2134 = vmatmul.f32.gmra.mxu0 %v1718
        %v2135 = vpop.f32.mrf.mxu0
        %v2136 = vadd.f32 0.0, %v2135
        %2137 = vmatmul.f32.gmra.mxu0 %v1721
        %v2138 = vpop.f32.mrf.mxu0
        %v2139 = vadd.f32 0.0, %v2138
        %2140 = vmatmul.f32.gmra.mxu0 %v1724
        %v2141 = vpop.f32.mrf.mxu0
        %v2142 = vadd.f32 0.0, %v2141
        %2143 = vmatmul.f32.gmra.mxu0 %v1727
        %v2144 = vpop.f32.mrf.mxu0
        %v2145 = vadd.f32 0.0, %v2144
        %2146 = vmatmul.f32.gmra.mxu0 %v1730
        %v2147 = vpop.f32.mrf.mxu0
        %v2148 = vadd.f32 0.0, %v2147
        %2149 = vmatmul.f32.gmra.mxu0 %v1733
        %v2150 = vpop.f32.mrf.mxu0
        %v2151 = vadd.f32 0.0, %v2150
        %2152 = vmatmul.f32.gmra.mxu0 %v1736
        %v2153 = vpop.f32.mrf.mxu0
        %v2154 = vadd.f32 0.0, %v2153
        %2155 = vmatmul.f32.gmra.mxu0 %v1739
        %v2156 = vpop.f32.mrf.mxu0
        %v2157 = vadd.f32 0.0, %v2156
        %2158 = vmatmul.f32.gmra.mxu0 %v1742
        %v2159 = vpop.f32.mrf.mxu0
        %v2160 = vadd.f32 0.0, %v2159
        %2161 = vmatmul.f32.gmra.mxu0 %v1745
        %v2162 = vpop.f32.mrf.mxu0
        %v2163 = vadd.f32 0.0, %v2162
        %2164 = vmatmul.f32.gmra.mxu0 %v1748
        %v2165 = vpop.f32.mrf.mxu0
        %v2166 = vadd.f32 0.0, %v2165
        %2167 = vmatmul.f32.gmra.mxu0 %v1751
        %v2168 = vpop.f32.mrf.mxu0
        %v2169 = vadd.f32 0.0, %v2168
        %2170 = vmatmul.f32.gmra.mxu0 %v1754
        %v2171 = vpop.f32.mrf.mxu0
        %v2172 = vadd.f32 0.0, %v2171
        %2173 = vmatmul.f32.gmra.mxu0 %v1757
        %v2174 = vpop.f32.mrf.mxu0
        %v2175 = vadd.f32 0.0, %v2174
        %2176 = vmatmul.f32.gmra.mxu0 %v1760
        %v2177 = vpop.f32.mrf.mxu0
        %v2178 = vadd.f32 0.0, %v2177
        %2179 = vmatmul.f32.gmra.mxu0 %v1763
        %v2180 = vpop.f32.mrf.mxu0
        %v2181 = vadd.f32 0.0, %v2180
        %2182 = vmatmul.f32.gmra.mxu0 %v1766
        %v2183 = vpop.f32.mrf.mxu0
        %v2184 = vadd.f32 0.0, %v2183
        %2185 = vmatmul.f32.gmra.mxu0 %v1769
        %v2186 = vpop.f32.mrf.mxu0
        %v2187 = vadd.f32 0.0, %v2186
        %2188 = vmatmul.f32.gmra.mxu0 %v1772
        %v2189 = vpop.f32.mrf.mxu0
        %v2190 = vadd.f32 0.0, %v2189
        %2191 = vmatmul.f32.gmra.mxu0 %v1775
        %v2192 = vpop.f32.mrf.mxu0
        %v2193 = vadd.f32 0.0, %v2192
        %2194 = vmatmul.f32.gmra.mxu0 %v1778
        %v2195 = vpop.f32.mrf.mxu0
        %v2196 = vadd.f32 0.0, %v2195
        %2197 = vmatmul.f32.gmra.mxu0 %v1781
        %v2198 = vpop.f32.mrf.mxu0
        %v2199 = vadd.f32 0.0, %v2198
        %2200 = vmatmul.f32.gmra.mxu0 %v1784
        %v2201 = vpop.f32.mrf.mxu0
        %v2202 = vadd.f32 0.0, %v2201
        %2203 = vmatmul.f32.gmra.mxu0 %v1787
        %v2204 = vpop.f32.mrf.mxu0
        %v2205 = vadd.f32 0.0, %v2204
        %2206 = vmatmul.f32.gmra.mxu0 %v1790
        %v2207 = vpop.f32.mrf.mxu0
        %v2208 = vadd.f32 0.0, %v2207
        %2209 = vmatmul.f32.gmra.mxu0 %v1793
        %v2210 = vpop.f32.mrf.mxu0
        %v2211 = vadd.f32 0.0, %v2210
        %2212 = vmatmul.f32.gmra.mxu0 %v1796
        %v2213 = vpop.f32.mrf.mxu0
        %v2214 = vadd.f32 0.0, %v2213
        %2215 = vmatmul.f32.gmra.mxu0 %v1799
        %v2216 = vpop.f32.mrf.mxu0
        %v2217 = vadd.f32 0.0, %v2216
        %2218 = vmatmul.f32.gmra.mxu0 %v1802
        %v2219 = vpop.f32.mrf.mxu0
        %v2220 = vadd.f32 0.0, %v2219
        %2221 = vmatmul.f32.gmra.mxu0 %v1805
        %v2222 = vpop.f32.mrf.mxu0
        %v2223 = vadd.f32 0.0, %v2222
        %2224 = vmatmul.f32.gmra.mxu0 %v1808
        %v2225 = vpop.f32.mrf.mxu0
        %v2226 = vadd.f32 0.0, %v2225
        %2227 = vmatmul.f32.gmra.mxu0 %v1811
        %v2228 = vpop.f32.mrf.mxu0
        %v2229 = vadd.f32 0.0, %v2228
        %2230 = vdwg.mxu0
        %v2231 = vmul.f32 %v1831, %v1927
        %v2232 = vmul.f32 %v2040, %v2136
        %v2233 = vmul.f32 %v1834, %v1930
        %v2234 = vmul.f32 %v2043, %v2139
        %v2235 = vmul.f32 %v1837, %v1933
        %v2236 = vmul.f32 %v2046, %v2142
        %v2237 = vmul.f32 %v1840, %v1936
        %v2238 = vmul.f32 %v2049, %v2145
        %v2239 = vmul.f32 %v1843, %v1939
        %v2240 = vmul.f32 %v2052, %v2148
        %v2241 = vmul.f32 %v1846, %v1942
        %v2242 = vmul.f32 %v2055, %v2151
        %v2243 = vmul.f32 %v1849, %v1945
        %v2244 = vmul.f32 %v2058, %v2154
        %v2245 = vmul.f32 %v1852, %v1948
        %v2246 = vmul.f32 %v2061, %v2157
        %v2247 = vmul.f32 %v1855, %v1951
        %v2248 = vmul.f32 %v2064, %v2160
        %v2249 = vmul.f32 %v1858, %v1954
        %v2250 = vmul.f32 %v2067, %v2163
        %v2251 = vmul.f32 %v1861, %v1957
        %v2252 = vmul.f32 %v2070, %v2166
        %v2253 = vmul.f32 %v1864, %v1960
        %v2254 = vmul.f32 %v2073, %v2169
        %v2255 = vmul.f32 %v1867, %v1963
        %v2256 = vmul.f32 %v2076, %v2172
        %v2257 = vmul.f32 %v1870, %v1966
        %v2258 = vmul.f32 %v2079, %v2175
        %v2259 = vmul.f32 %v1873, %v1969
        %v2260 = vmul.f32 %v2082, %v2178
        %v2261 = vmul.f32 %v1876, %v1972
        %v2262 = vmul.f32 %v2085, %v2181
        %v2263 = vadd.f32 %v2231, %v2247
        %v2264 = vadd.f32 %v2232, %v2248
        %v2265 = vadd.f32 %v2233, %v2249
        %v2266 = vadd.f32 %v2234, %v2250
        %v2267 = vadd.f32 %v2235, %v2251
        %v2268 = vadd.f32 %v2236, %v2252
        %v2269 = vadd.f32 %v2237, %v2253
        %v2270 = vadd.f32 %v2238, %v2254
        %v2271 = vadd.f32 %v2239, %v2255
        %v2272 = vadd.f32 %v2240, %v2256
        %v2273 = vadd.f32 %v2241, %v2257
        %v2274 = vadd.f32 %v2242, %v2258
        %v2275 = vadd.f32 %v2243, %v2259
        %v2276 = vadd.f32 %v2244, %v2260
        %v2277 = vadd.f32 %v2245, %v2261
        %v2278 = vadd.f32 %v2246, %v2262
        %v2279 = vmul.f32 %v1879, %v1975
        %v2280 = vmul.f32 %v2088, %v2184
        %v2281 = vmul.f32 %v1882, %v1978
        %v2282 = vmul.f32 %v2091, %v2187
        %v2283 = vmul.f32 %v1885, %v1981
        %v2284 = vmul.f32 %v2094, %v2190
        %v2285 = vmul.f32 %v1888, %v1984
        %v2286 = vmul.f32 %v2097, %v2193
        %v2287 = vmul.f32 %v1891, %v1987
        %v2288 = vmul.f32 %v2100, %v2196
        %v2289 = vmul.f32 %v1894, %v1990
        %v2290 = vmul.f32 %v2103, %v2199
        %v2291 = vmul.f32 %v1897, %v1993
        %v2292 = vmul.f32 %v2106, %v2202
        %v2293 = vmul.f32 %v1900, %v1996
        %v2294 = vmul.f32 %v2109, %v2205
        %v2295 = vadd.f32 %v2263, %v2279
        %v2296 = vadd.f32 %v2264, %v2280
        %v2297 = vadd.f32 %v2265, %v2281
        %v2298 = vadd.f32 %v2266, %v2282
        %v2299 = vadd.f32 %v2267, %v2283
        %v2300 = vadd.f32 %v2268, %v2284
        %v2301 = vadd.f32 %v2269, %v2285
        %v2302 = vadd.f32 %v2270, %v2286
        %v2303 = vadd.f32 %v2271, %v2287
        %v2304 = vadd.f32 %v2272, %v2288
        %v2305 = vadd.f32 %v2273, %v2289
        %v2306 = vadd.f32 %v2274, %v2290
        %v2307 = vadd.f32 %v2275, %v2291
        %v2308 = vadd.f32 %v2276, %v2292
        %v2309 = vadd.f32 %v2277, %v2293
        %v2310 = vadd.f32 %v2278, %v2294
        %v2311 = vmul.f32 %v1903, %v1999
        %v2312 = vmul.f32 %v2112, %v2208
        %v2313 = vmul.f32 %v1906, %v2002
        %v2314 = vmul.f32 %v2115, %v2211
        %v2315 = vmul.f32 %v1909, %v2005
        %v2316 = vmul.f32 %v2118, %v2214
        %v2317 = vmul.f32 %v1912, %v2008
        %v2318 = vmul.f32 %v2121, %v2217
        %v2319 = vmul.f32 %v1915, %v2011
        %v2320 = vmul.f32 %v2124, %v2220
        %v2321 = vmul.f32 %v1918, %v2014
        %v2322 = vmul.f32 %v2127, %v2223
        %v2323 = vmul.f32 %v1921, %v2017
        %v2324 = vmul.f32 %v2130, %v2226
        %v2325 = vmul.f32 %v1924, %v2020
        %v2326 = vmul.f32 %v2133, %v2229
        %v2327 = vadd.f32 %v2295, %v2311
        %v2328 = vadd.f32 %v2296, %v2312
        %v2329 = vadd.f32 %v2297, %v2313
        %v2330 = vadd.f32 %v2298, %v2314
        %v2331 = vadd.f32 %v2299, %v2315
        %v2332 = vadd.f32 %v2300, %v2316
        %v2333 = vadd.f32 %v2301, %v2317
        %v2334 = vadd.f32 %v2302, %v2318
        %v2335 = vadd.f32 %v2303, %v2319
        %v2336 = vadd.f32 %v2304, %v2320
        %v2337 = vadd.f32 %v2305, %v2321
        %v2338 = vadd.f32 %v2306, %v2322
        %v2339 = vadd.f32 %v2307, %v2323
        %v2340 = vadd.f32 %v2308, %v2324
        %v2341 = vadd.f32 %v2309, %v2325
        %v2342 = vadd.f32 %v2310, %v2326
        %v2343 = vld [vmem:[%s4] sm:$0xff]
        %v2344 = vld [vmem:[%s4 + $0x8] sm:$0xff]
        %v2345 = vld [vmem:[%s4 + $0x10] sm:$0xff]
        %v2346 = vld [vmem:[%s4 + $0x18] sm:$0xff]
        %v2347 = vld [vmem:[%s4 + $0x20] sm:$0xff]
        %v2348 = vld [vmem:[%s4 + $0x28] sm:$0xff]
        %v2349 = vld [vmem:[%s4 + $0x30] sm:$0xff]
        %v2350 = vld [vmem:[%s4 + $0x38] sm:$0xff]
        %v2351 = vld [vmem:[%s4 + $0x40] sm:$0xff]
        %v2352 = vld [vmem:[%s4 + $0x48] sm:$0xff]
        %v2353 = vld [vmem:[%s4 + $0x50] sm:$0xff]
        %v2354 = vld [vmem:[%s4 + $0x58] sm:$0xff]
        %v2355 = vld [vmem:[%s4 + $0x60] sm:$0xff]
        %v2356 = vld [vmem:[%s4 + $0x68] sm:$0xff]
        %v2357 = vld [vmem:[%s4 + $0x70] sm:$0xff]
        %v2358 = vld [vmem:[%s4 + $0x78] sm:$0xff]
        %v2359 = vld [vmem:[%s5] sm:$0xff]
        %v2360 = vld [vmem:[%s5 + $0x8] sm:$0xff]
        %v2361 = vld [vmem:[%s5 + $0x10] sm:$0xff]
        %v2362 = vld [vmem:[%s5 + $0x18] sm:$0xff]
        %v2363 = vld [vmem:[%s5 + $0x20] sm:$0xff]
        %v2364 = vld [vmem:[%s5 + $0x28] sm:$0xff]
        %v2365 = vld [vmem:[%s5 + $0x30] sm:$0xff]
        %v2366 = vld [vmem:[%s5 + $0x38] sm:$0xff]
        %v2367 = vld [vmem:[%s5 + $0x40] sm:$0xff]
        %v2368 = vld [vmem:[%s5 + $0x48] sm:$0xff]
        %v2369 = vld [vmem:[%s5 + $0x50] sm:$0xff]
        %v2370 = vld [vmem:[%s5 + $0x58] sm:$0xff]
        %v2371 = vld [vmem:[%s5 + $0x60] sm:$0xff]
        %v2372 = vld [vmem:[%s5 + $0x68] sm:$0xff]
        %v2373 = vld [vmem:[%s5 + $0x70] sm:$0xff]
        %v2374 = vld [vmem:[%s5 + $0x78] sm:$0xff]
        %2407 = vrot.lane.b32.xlu0 %v1540, 17
        %v2408 = vpop.permute.xlu0 %2407
        %2409 = vrot.lane.b32.xlu0 %v1541, 17
        %v2410 = vpop.permute.xlu0 %2409
        %2411 = vrot.lane.b32.xlu0 %v1542, 17
        %v2412 = vpop.permute.xlu0 %2411
        %2413 = vrot.lane.b32.xlu0 %v1543, 17
        %v2414 = vpop.permute.xlu0 %2413
        %2415 = vrot.lane.b32.xlu0 %v1544, 17
        %v2416 = vpop.permute.xlu0 %2415
        %2417 = vrot.lane.b32.xlu0 %v1545, 17
        %v2418 = vpop.permute.xlu0 %2417
        %2419 = vrot.lane.b32.xlu0 %v1546, 17
        %v2420 = vpop.permute.xlu0 %2419
        %2421 = vrot.lane.b32.xlu0 %v1547, 17
        %v2422 = vpop.permute.xlu0 %2421
        %2423 = vrot.lane.b32.xlu0 %v1548, 17
        %v2424 = vpop.permute.xlu0 %2423
        %2425 = vrot.lane.b32.xlu0 %v1549, 17
        %v2426 = vpop.permute.xlu0 %2425
        %2427 = vrot.lane.b32.xlu0 %v1550, 17
        %v2428 = vpop.permute.xlu0 %2427
        %2429 = vrot.lane.b32.xlu0 %v1551, 17
        %v2430 = vpop.permute.xlu0 %2429
        %2431 = vrot.lane.b32.xlu0 %v1552, 17
        %v2432 = vpop.permute.xlu0 %2431
        %2433 = vrot.lane.b32.xlu0 %v1553, 17
        %v2434 = vpop.permute.xlu0 %2433
        %2435 = vrot.lane.b32.xlu0 %v1554, 17
        %v2436 = vpop.permute.xlu0 %2435
        %2437 = vrot.lane.b32.xlu0 %v1555, 17
        %v2438 = vpop.permute.xlu0 %2437
        %2439 = vrot.lane.b32.xlu0 %v2327, 17
        %v2440 = vpop.permute.xlu0 %2439
        %2441 = vrot.lane.b32.xlu0 %v2328, 17
        %v2442 = vpop.permute.xlu0 %2441
        %2443 = vrot.lane.b32.xlu0 %v2329, 17
        %v2444 = vpop.permute.xlu0 %2443
        %2445 = vrot.lane.b32.xlu0 %v2330, 17
        %v2446 = vpop.permute.xlu0 %2445
        %2447 = vrot.lane.b32.xlu0 %v2331, 17
        %v2448 = vpop.permute.xlu0 %2447
        %2449 = vrot.lane.b32.xlu0 %v2332, 17
        %v2450 = vpop.permute.xlu0 %2449
        %2451 = vrot.lane.b32.xlu0 %v2333, 17
        %v2452 = vpop.permute.xlu0 %2451
        %2453 = vrot.lane.b32.xlu0 %v2334, 17
        %v2454 = vpop.permute.xlu0 %2453
        %2455 = vrot.lane.b32.xlu0 %v2335, 17
        %v2456 = vpop.permute.xlu0 %2455
        %2457 = vrot.lane.b32.xlu0 %v2336, 17
        %v2458 = vpop.permute.xlu0 %2457
        %2459 = vrot.lane.b32.xlu0 %v2337, 17
        %v2460 = vpop.permute.xlu0 %2459
        %2461 = vrot.lane.b32.xlu0 %v2338, 17
        %v2462 = vpop.permute.xlu0 %2461
        %2463 = vrot.lane.b32.xlu0 %v2339, 17
        %v2464 = vpop.permute.xlu0 %2463
        %2465 = vrot.lane.b32.xlu0 %v2340, 17
        %v2466 = vpop.permute.xlu0 %2465
        %2467 = vrot.lane.b32.xlu0 %v2341, 17
        %v2468 = vpop.permute.xlu0 %2467
        %2469 = vrot.lane.b32.xlu0 %v2342, 17
        %v2470 = vpop.permute.xlu0 %2469
        %vm2471 = vcmask 138240
        %v2472 = vsel %vm2471, %v2408, %v2410
        %v2473 = vsel %vm2471, %v2412, %v2414
        %v2474 = vsel %vm2471, %v2416, %v2418
        %v2475 = vsel %vm2471, %v2420, %v2422
        %v2476 = vsel %vm2471, %v2424, %v2426
        %v2477 = vsel %vm2471, %v2428, %v2430
        %v2478 = vsel %vm2471, %v2432, %v2434
        %v2479 = vsel %vm2471, %v2436, %v2438
        %v2480 = vsel %vm2471, %v2440, %v2442
        %v2481 = vsel %vm2471, %v2444, %v2446
        %v2482 = vsel %vm2471, %v2448, %v2450
        %v2483 = vsel %vm2471, %v2452, %v2454
        %v2484 = vsel %vm2471, %v2456, %v2458
        %v2485 = vsel %vm2471, %v2460, %v2462
        %v2486 = vsel %vm2471, %v2464, %v2466
        %v2487 = vsel %vm2471, %v2468, %v2470
        %v2520 = vsel %vm2471, 0.0, %v2408
        %v2521 = vsel %vm2471, 0.0, %v2412
        %v2522 = vsel %vm2471, 0.0, %v2416
        %v2523 = vsel %vm2471, 0.0, %v2420
        %v2524 = vsel %vm2471, 0.0, %v2424
        %v2525 = vsel %vm2471, 0.0, %v2428
        %v2526 = vsel %vm2471, 0.0, %v2432
        %v2527 = vsel %vm2471, 0.0, %v2436
        %v2528 = vsel %vm2471, 0.0, %v2440
        %v2529 = vsel %vm2471, 0.0, %v2444
        %v2530 = vsel %vm2471, 0.0, %v2448
        %v2531 = vsel %vm2471, 0.0, %v2452
        %v2532 = vsel %vm2471, 0.0, %v2456
        %v2533 = vsel %vm2471, 0.0, %v2460
        %v2534 = vsel %vm2471, 0.0, %v2464
        %v2535 = vsel %vm2471, 0.0, %v2468
        %vm2536 = vcmp.ge.s32.totalorder %v416, 1
        %vm2537 = vcmp.ge.s32.totalorder %v417, 1
        %v2538 = vsel %vm2536, 1, 0
        %v2539 = vsel %vm2537, 1, 0
        %vm2540 = vcmp.eq.s32.totalorder %v2538, 1
        %vm2541 = vcmp.eq.s32.totalorder %v2539, 1
        %v2542 = vsel %vm2540, %v2520, 0.0
        %v2543 = vsel %vm2541, %v2472, 0.0
        %v2544 = vsel %vm2540, %v2521, 0.0
        %v2545 = vsel %vm2541, %v2473, 0.0
        %v2546 = vsel %vm2540, %v2522, 0.0
        %v2547 = vsel %vm2541, %v2474, 0.0
        %v2548 = vsel %vm2540, %v2523, 0.0
        %v2549 = vsel %vm2541, %v2475, 0.0
        %v2550 = vsel %vm2540, %v2524, 0.0
        %v2551 = vsel %vm2541, %v2476, 0.0
        %v2552 = vsel %vm2540, %v2525, 0.0
        %v2553 = vsel %vm2541, %v2477, 0.0
        %v2554 = vsel %vm2540, %v2526, 0.0
        %v2555 = vsel %vm2541, %v2478, 0.0
        %v2556 = vsel %vm2540, %v2527, 0.0
        %v2557 = vsel %vm2541, %v2479, 0.0
        %v2558 = vsel %vm2540, %v2528, 0.0
        %v2559 = vsel %vm2541, %v2480, 0.0
        %v2560 = vsel %vm2540, %v2529, 0.0
        %v2561 = vsel %vm2541, %v2481, 0.0
        %v2562 = vsel %vm2540, %v2530, 0.0
        %v2563 = vsel %vm2541, %v2482, 0.0
        %v2564 = vsel %vm2540, %v2531, 0.0
        %v2565 = vsel %vm2541, %v2483, 0.0
        %v2566 = vsel %vm2540, %v2532, 0.0
        %v2567 = vsel %vm2541, %v2484, 0.0
        %v2568 = vsel %vm2540, %v2533, 0.0
        %v2569 = vsel %vm2541, %v2485, 0.0
        %v2570 = vsel %vm2540, %v2534, 0.0
        %v2571 = vsel %vm2541, %v2486, 0.0
        %v2572 = vsel %vm2540, %v2535, 0.0
        %v2573 = vsel %vm2541, %v2487, 0.0
        %2575 = vset.pattern.permute.xlu0 0
        %2576 = vperm.xlu0 %2575, %v2343
        %v2577 = vpop.permute.xlu0 %2576
        %2580 = vset.pattern.permute.xlu0 0
        %2581 = vperm.xlu0 %2580, %v2344
        %v2582 = vpop.permute.xlu0 %2581
        %2585 = vset.pattern.permute.xlu0 0
        %2586 = vperm.xlu0 %2585, %v2345
        %v2587 = vpop.permute.xlu0 %2586
        %2590 = vset.pattern.permute.xlu0 0
        %2591 = vperm.xlu0 %2590, %v2346
        %v2592 = vpop.permute.xlu0 %2591
        %2595 = vset.pattern.permute.xlu0 0
        %2596 = vperm.xlu0 %2595, %v2347
        %v2597 = vpop.permute.xlu0 %2596
        %2600 = vset.pattern.permute.xlu0 0
        %2601 = vperm.xlu0 %2600, %v2348
        %v2602 = vpop.permute.xlu0 %2601
        %2605 = vset.pattern.permute.xlu0 0
        %2606 = vperm.xlu0 %2605, %v2349
        %v2607 = vpop.permute.xlu0 %2606
        %2610 = vset.pattern.permute.xlu0 0
        %2611 = vperm.xlu0 %2610, %v2350
        %v2612 = vpop.permute.xlu0 %2611
        %2615 = vset.pattern.permute.xlu0 0
        %2616 = vperm.xlu0 %2615, %v2351
        %v2617 = vpop.permute.xlu0 %2616
        %2620 = vset.pattern.permute.xlu0 0
        %2621 = vperm.xlu0 %2620, %v2352
        %v2622 = vpop.permute.xlu0 %2621
        %2625 = vset.pattern.permute.xlu0 0
        %2626 = vperm.xlu0 %2625, %v2353
        %v2627 = vpop.permute.xlu0 %2626
        %2630 = vset.pattern.permute.xlu0 0
        %2631 = vperm.xlu0 %2630, %v2354
        %v2632 = vpop.permute.xlu0 %2631
        %2635 = vset.pattern.permute.xlu0 0
        %2636 = vperm.xlu0 %2635, %v2355
        %v2637 = vpop.permute.xlu0 %2636
        %2640 = vset.pattern.permute.xlu0 0
        %2641 = vperm.xlu0 %2640, %v2356
        %v2642 = vpop.permute.xlu0 %2641
        %2645 = vset.pattern.permute.xlu0 0
        %2646 = vperm.xlu0 %2645, %v2357
        %v2647 = vpop.permute.xlu0 %2646
        %2650 = vset.pattern.permute.xlu0 0
        %2651 = vperm.xlu0 %2650, %v2358
        %v2652 = vpop.permute.xlu0 %2651
        %v2654 = vmul.f32 %v2577, %v2542
        %v2655 = vmul.f32 %v2577, %v2543
        %v2656 = vmul.f32 %v2582, %v2544
        %v2657 = vmul.f32 %v2582, %v2545
        %v2658 = vmul.f32 %v2587, %v2546
        %v2659 = vmul.f32 %v2587, %v2547
        %v2660 = vmul.f32 %v2592, %v2548
        %v2661 = vmul.f32 %v2592, %v2549
        %v2662 = vmul.f32 %v2597, %v2550
        %v2663 = vmul.f32 %v2597, %v2551
        %v2664 = vmul.f32 %v2602, %v2552
        %v2665 = vmul.f32 %v2602, %v2553
        %v2666 = vmul.f32 %v2607, %v2554
        %v2667 = vmul.f32 %v2607, %v2555
        %v2668 = vmul.f32 %v2612, %v2556
        %v2669 = vmul.f32 %v2612, %v2557
        %v2670 = vmul.f32 %v2617, %v2558
        %v2671 = vmul.f32 %v2617, %v2559
        %v2672 = vmul.f32 %v2622, %v2560
        %v2673 = vmul.f32 %v2622, %v2561
        %v2674 = vmul.f32 %v2627, %v2562
        %v2675 = vmul.f32 %v2627, %v2563
        %v2676 = vmul.f32 %v2632, %v2564
        %v2677 = vmul.f32 %v2632, %v2565
        %v2678 = vmul.f32 %v2637, %v2566
        %v2679 = vmul.f32 %v2637, %v2567
        %v2680 = vmul.f32 %v2642, %v2568
        %v2681 = vmul.f32 %v2642, %v2569
        %v2682 = vmul.f32 %v2647, %v2570
        %v2683 = vmul.f32 %v2647, %v2571
        %v2684 = vmul.f32 %v2652, %v2572
        %v2685 = vmul.f32 %v2652, %v2573
        %2686 = vrot.lane.b32.xlu0 %v1540, 16
        %v2687 = vpop.permute.xlu0 %2686
        %2688 = vrot.lane.b32.xlu0 %v1541, 16
        %v2689 = vpop.permute.xlu0 %2688
        %2690 = vrot.lane.b32.xlu0 %v1542, 16
        %v2691 = vpop.permute.xlu0 %2690
        %2692 = vrot.lane.b32.xlu0 %v1543, 16
        %v2693 = vpop.permute.xlu0 %2692
        %2694 = vrot.lane.b32.xlu0 %v1544, 16
        %v2695 = vpop.permute.xlu0 %2694
        %2696 = vrot.lane.b32.xlu0 %v1545, 16
        %v2697 = vpop.permute.xlu0 %2696
        %2698 = vrot.lane.b32.xlu0 %v1546, 16
        %v2699 = vpop.permute.xlu0 %2698
        %2700 = vrot.lane.b32.xlu0 %v1547, 16
        %v2701 = vpop.permute.xlu0 %2700
        %2702 = vrot.lane.b32.xlu0 %v1548, 16
        %v2703 = vpop.permute.xlu0 %2702
        %2704 = vrot.lane.b32.xlu0 %v1549, 16
        %v2705 = vpop.permute.xlu0 %2704
        %2706 = vrot.lane.b32.xlu0 %v1550, 16
        %v2707 = vpop.permute.xlu0 %2706
        %2708 = vrot.lane.b32.xlu0 %v1551, 16
        %v2709 = vpop.permute.xlu0 %2708
        %2710 = vrot.lane.b32.xlu0 %v1552, 16
        %v2711 = vpop.permute.xlu0 %2710
        %2712 = vrot.lane.b32.xlu0 %v1553, 16
        %v2713 = vpop.permute.xlu0 %2712
        %2714 = vrot.lane.b32.xlu0 %v1554, 16
        %v2715 = vpop.permute.xlu0 %2714
        %2716 = vrot.lane.b32.xlu0 %v1555, 16
        %v2717 = vpop.permute.xlu0 %2716
        %2718 = vrot.lane.b32.xlu0 %v2327, 16
        %v2719 = vpop.permute.xlu0 %2718
        %2720 = vrot.lane.b32.xlu0 %v2328, 16
        %v2721 = vpop.permute.xlu0 %2720
        %2722 = vrot.lane.b32.xlu0 %v2329, 16
        %v2723 = vpop.permute.xlu0 %2722
        %2724 = vrot.lane.b32.xlu0 %v2330, 16
        %v2725 = vpop.permute.xlu0 %2724
        %2726 = vrot.lane.b32.xlu0 %v2331, 16
        %v2727 = vpop.permute.xlu0 %2726
        %2728 = vrot.lane.b32.xlu0 %v2332, 16
        %v2729 = vpop.permute.xlu0 %2728
        %2730 = vrot.lane.b32.xlu0 %v2333, 16
        %v2731 = vpop.permute.xlu0 %2730
        %2732 = vrot.lane.b32.xlu0 %v2334, 16
        %v2733 = vpop.permute.xlu0 %2732
        %2734 = vrot.lane.b32.xlu0 %v2335, 16
        %v2735 = vpop.permute.xlu0 %2734
        %2736 = vrot.lane.b32.xlu0 %v2336, 16
        %v2737 = vpop.permute.xlu0 %2736
        %2738 = vrot.lane.b32.xlu0 %v2337, 16
        %v2739 = vpop.permute.xlu0 %2738
        %2740 = vrot.lane.b32.xlu0 %v2338, 16
        %v2741 = vpop.permute.xlu0 %2740
        %2742 = vrot.lane.b32.xlu0 %v2339, 16
        %v2743 = vpop.permute.xlu0 %2742
        %2744 = vrot.lane.b32.xlu0 %v2340, 16
        %v2745 = vpop.permute.xlu0 %2744
        %2746 = vrot.lane.b32.xlu0 %v2341, 16
        %v2747 = vpop.permute.xlu0 %2746
        %2748 = vrot.lane.b32.xlu0 %v2342, 16
        %v2749 = vpop.permute.xlu0 %2748
        %vm2750 = vcmask 130048
        %v2751 = vsel %vm2750, %v2687, %v2689
        %v2752 = vsel %vm2750, %v2691, %v2693
        %v2753 = vsel %vm2750, %v2695, %v2697
        %v2754 = vsel %vm2750, %v2699, %v2701
        %v2755 = vsel %vm2750, %v2703, %v2705
        %v2756 = vsel %vm2750, %v2707, %v2709
        %v2757 = vsel %vm2750, %v2711, %v2713
        %v2758 = vsel %vm2750, %v2715, %v2717
        %v2759 = vsel %vm2750, %v2719, %v2721
        %v2760 = vsel %vm2750, %v2723, %v2725
        %v2761 = vsel %vm2750, %v2727, %v2729
        %v2762 = vsel %vm2750, %v2731, %v2733
        %v2763 = vsel %vm2750, %v2735, %v2737
        %v2764 = vsel %vm2750, %v2739, %v2741
        %v2765 = vsel %vm2750, %v2743, %v2745
        %v2766 = vsel %vm2750, %v2747, %v2749
        %v2799 = vsel %vm2750, 0.0, %v2687
        %v2800 = vsel %vm2750, 0.0, %v2691
        %v2801 = vsel %vm2750, 0.0, %v2695
        %v2802 = vsel %vm2750, 0.0, %v2699
        %v2803 = vsel %vm2750, 0.0, %v2703
        %v2804 = vsel %vm2750, 0.0, %v2707
        %v2805 = vsel %vm2750, 0.0, %v2711
        %v2806 = vsel %vm2750, 0.0, %v2715
        %v2807 = vsel %vm2750, 0.0, %v2719
        %v2808 = vsel %vm2750, 0.0, %v2723
        %v2809 = vsel %vm2750, 0.0, %v2727
        %v2810 = vsel %vm2750, 0.0, %v2731
        %v2811 = vsel %vm2750, 0.0, %v2735
        %v2812 = vsel %vm2750, 0.0, %v2739
        %v2813 = vsel %vm2750, 0.0, %v2743
        %v2814 = vsel %vm2750, 0.0, %v2747
        %2815 = vset.pattern.permute.xlu0 1
        %2816 = vperm.xlu0 %2815, %v2343
        %v2817 = vpop.permute.xlu0 %2816
        %2819 = vset.pattern.permute.xlu0 1
        %2820 = vperm.xlu0 %2819, %v2344
        %v2821 = vpop.permute.xlu0 %2820
        %2823 = vset.pattern.permute.xlu0 1
        %2824 = vperm.xlu0 %2823, %v2345
        %v2825 = vpop.permute.xlu0 %2824
        %2827 = vset.pattern.permute.xlu0 1
        %2828 = vperm.xlu0 %2827, %v2346
        %v2829 = vpop.permute.xlu0 %2828
        %2831 = vset.pattern.permute.xlu0 1
        %2832 = vperm.xlu0 %2831, %v2347
        %v2833 = vpop.permute.xlu0 %2832
        %2835 = vset.pattern.permute.xlu0 1
        %2836 = vperm.xlu0 %2835, %v2348
        %v2837 = vpop.permute.xlu0 %2836
        %2839 = vset.pattern.permute.xlu0 1
        %2840 = vperm.xlu0 %2839, %v2349
        %v2841 = vpop.permute.xlu0 %2840
        %2843 = vset.pattern.permute.xlu0 1
        %2844 = vperm.xlu0 %2843, %v2350
        %v2845 = vpop.permute.xlu0 %2844
        %2847 = vset.pattern.permute.xlu0 1
        %2848 = vperm.xlu0 %2847, %v2351
        %v2849 = vpop.permute.xlu0 %2848
        %2851 = vset.pattern.permute.xlu0 1
        %2852 = vperm.xlu0 %2851, %v2352
        %v2853 = vpop.permute.xlu0 %2852
        %2855 = vset.pattern.permute.xlu0 1
        %2856 = vperm.xlu0 %2855, %v2353
        %v2857 = vpop.permute.xlu0 %2856
        %2859 = vset.pattern.permute.xlu0 1
        %2860 = vperm.xlu0 %2859, %v2354
        %v2861 = vpop.permute.xlu0 %2860
        %2863 = vset.pattern.permute.xlu0 1
        %2864 = vperm.xlu0 %2863, %v2355
        %v2865 = vpop.permute.xlu0 %2864
        %2867 = vset.pattern.permute.xlu0 1
        %2868 = vperm.xlu0 %2867, %v2356
        %v2869 = vpop.permute.xlu0 %2868
        %2871 = vset.pattern.permute.xlu0 1
        %2872 = vperm.xlu0 %2871, %v2357
        %v2873 = vpop.permute.xlu0 %2872
        %2875 = vset.pattern.permute.xlu0 1
        %2876 = vperm.xlu0 %2875, %v2358
        %v2877 = vpop.permute.xlu0 %2876
        %v2879 = vmul.f32 %v2817, %v2799
        %v2880 = vmul.f32 %v2817, %v2751
        %v2881 = vmul.f32 %v2821, %v2800
        %v2882 = vmul.f32 %v2821, %v2752
        %v2883 = vmul.f32 %v2825, %v2801
        %v2884 = vmul.f32 %v2825, %v2753
        %v2885 = vmul.f32 %v2829, %v2802
        %v2886 = vmul.f32 %v2829, %v2754
        %v2887 = vmul.f32 %v2833, %v2803
        %v2888 = vmul.f32 %v2833, %v2755
        %v2889 = vmul.f32 %v2837, %v2804
        %v2890 = vmul.f32 %v2837, %v2756
        %v2891 = vmul.f32 %v2841, %v2805
        %v2892 = vmul.f32 %v2841, %v2757
        %v2893 = vmul.f32 %v2845, %v2806
        %v2894 = vmul.f32 %v2845, %v2758
        %v2895 = vmul.f32 %v2849, %v2807
        %v2896 = vmul.f32 %v2849, %v2759
        %v2897 = vmul.f32 %v2853, %v2808
        %v2898 = vmul.f32 %v2853, %v2760
        %v2899 = vmul.f32 %v2857, %v2809
        %v2900 = vmul.f32 %v2857, %v2761
        %v2901 = vmul.f32 %v2861, %v2810
        %v2902 = vmul.f32 %v2861, %v2762
        %v2903 = vmul.f32 %v2865, %v2811
        %v2904 = vmul.f32 %v2865, %v2763
        %v2905 = vmul.f32 %v2869, %v2812
        %v2906 = vmul.f32 %v2869, %v2764
        %v2907 = vmul.f32 %v2873, %v2813
        %v2908 = vmul.f32 %v2873, %v2765
        %v2909 = vmul.f32 %v2877, %v2814
        %v2910 = vmul.f32 %v2877, %v2766
        %v2911 = vadd.f32 %v2654, %v2879
        %v2912 = vadd.f32 %v2655, %v2880
        %v2913 = vadd.f32 %v2656, %v2881
        %v2914 = vadd.f32 %v2657, %v2882
        %v2915 = vadd.f32 %v2658, %v2883
        %v2916 = vadd.f32 %v2659, %v2884
        %v2917 = vadd.f32 %v2660, %v2885
        %v2918 = vadd.f32 %v2661, %v2886
        %v2919 = vadd.f32 %v2662, %v2887
        %v2920 = vadd.f32 %v2663, %v2888
        %v2921 = vadd.f32 %v2664, %v2889
        %v2922 = vadd.f32 %v2665, %v2890
        %v2923 = vadd.f32 %v2666, %v2891
        %v2924 = vadd.f32 %v2667, %v2892
        %v2925 = vadd.f32 %v2668, %v2893
        %v2926 = vadd.f32 %v2669, %v2894
        %v2927 = vadd.f32 %v2670, %v2895
        %v2928 = vadd.f32 %v2671, %v2896
        %v2929 = vadd.f32 %v2672, %v2897
        %v2930 = vadd.f32 %v2673, %v2898
        %v2931 = vadd.f32 %v2674, %v2899
        %v2932 = vadd.f32 %v2675, %v2900
        %v2933 = vadd.f32 %v2676, %v2901
        %v2934 = vadd.f32 %v2677, %v2902
        %v2935 = vadd.f32 %v2678, %v2903
        %v2936 = vadd.f32 %v2679, %v2904
        %v2937 = vadd.f32 %v2680, %v2905
        %v2938 = vadd.f32 %v2681, %v2906
        %v2939 = vadd.f32 %v2682, %v2907
        %v2940 = vadd.f32 %v2683, %v2908
        %v2941 = vadd.f32 %v2684, %v2909
        %v2942 = vadd.f32 %v2685, %v2910
        %2943 = vrot.lane.b32.xlu0 %v1540, 15
        %v2944 = vpop.permute.xlu0 %2943
        %2945 = vrot.lane.b32.xlu0 %v1541, 15
        %v2946 = vpop.permute.xlu0 %2945
        %2947 = vrot.lane.b32.xlu0 %v1542, 15
        %v2948 = vpop.permute.xlu0 %2947
        %2949 = vrot.lane.b32.xlu0 %v1543, 15
        %v2950 = vpop.permute.xlu0 %2949
        %2951 = vrot.lane.b32.xlu0 %v1544, 15
        %v2952 = vpop.permute.xlu0 %2951
        %2953 = vrot.lane.b32.xlu0 %v1545, 15
        %v2954 = vpop.permute.xlu0 %2953
        %2955 = vrot.lane.b32.xlu0 %v1546, 15
        %v2956 = vpop.permute.xlu0 %2955
        %2957 = vrot.lane.b32.xlu0 %v1547, 15
        %v2958 = vpop.permute.xlu0 %2957
        %2959 = vrot.lane.b32.xlu0 %v1548, 15
        %v2960 = vpop.permute.xlu0 %2959
        %2961 = vrot.lane.b32.xlu0 %v1549, 15
        %v2962 = vpop.permute.xlu0 %2961
        %2963 = vrot.lane.b32.xlu0 %v1550, 15
        %v2964 = vpop.permute.xlu0 %2963
        %2965 = vrot.lane.b32.xlu0 %v1551, 15
        %v2966 = vpop.permute.xlu0 %2965
        %2967 = vrot.lane.b32.xlu0 %v1552, 15
        %v2968 = vpop.permute.xlu0 %2967
        %2969 = vrot.lane.b32.xlu0 %v1553, 15
        %v2970 = vpop.permute.xlu0 %2969
        %2971 = vrot.lane.b32.xlu0 %v1554, 15
        %v2972 = vpop.permute.xlu0 %2971
        %2973 = vrot.lane.b32.xlu0 %v1555, 15
        %v2974 = vpop.permute.xlu0 %2973
        %2975 = vrot.lane.b32.xlu0 %v2327, 15
        %v2976 = vpop.permute.xlu0 %2975
        %2977 = vrot.lane.b32.xlu0 %v2328, 15
        %v2978 = vpop.permute.xlu0 %2977
        %2979 = vrot.lane.b32.xlu0 %v2329, 15
        %v2980 = vpop.permute.xlu0 %2979
        %2981 = vrot.lane.b32.xlu0 %v2330, 15
        %v2982 = vpop.permute.xlu0 %2981
        %2983 = vrot.lane.b32.xlu0 %v2331, 15
        %v2984 = vpop.permute.xlu0 %2983
        %2985 = vrot.lane.b32.xlu0 %v2332, 15
        %v2986 = vpop.permute.xlu0 %2985
        %2987 = vrot.lane.b32.xlu0 %v2333, 15
        %v2988 = vpop.permute.xlu0 %2987
        %2989 = vrot.lane.b32.xlu0 %v2334, 15
        %v2990 = vpop.permute.xlu0 %2989
        %2991 = vrot.lane.b32.xlu0 %v2335, 15
        %v2992 = vpop.permute.xlu0 %2991
        %2993 = vrot.lane.b32.xlu0 %v2336, 15
        %v2994 = vpop.permute.xlu0 %2993
        %2995 = vrot.lane.b32.xlu0 %v2337, 15
        %v2996 = vpop.permute.xlu0 %2995
        %2997 = vrot.lane.b32.xlu0 %v2338, 15
        %v2998 = vpop.permute.xlu0 %2997
        %2999 = vrot.lane.b32.xlu0 %v2339, 15
        %v3000 = vpop.permute.xlu0 %2999
        %3001 = vrot.lane.b32.xlu0 %v2340, 15
        %v3002 = vpop.permute.xlu0 %3001
        %3003 = vrot.lane.b32.xlu0 %v2341, 15
        %v3004 = vpop.permute.xlu0 %3003
        %3005 = vrot.lane.b32.xlu0 %v2342, 15
        %v3006 = vpop.permute.xlu0 %3005
        %vm3007 = vcmask 121856
        %v3008 = vsel %vm3007, %v2944, %v2946
        %v3009 = vsel %vm3007, %v2948, %v2950
        %v3010 = vsel %vm3007, %v2952, %v2954
        %v3011 = vsel %vm3007, %v2956, %v2958
        %v3012 = vsel %vm3007, %v2960, %v2962
        %v3013 = vsel %vm3007, %v2964, %v2966
        %v3014 = vsel %vm3007, %v2968, %v2970
        %v3015 = vsel %vm3007, %v2972, %v2974
        %v3016 = vsel %vm3007, %v2976, %v2978
        %v3017 = vsel %vm3007, %v2980, %v2982
        %v3018 = vsel %vm3007, %v2984, %v2986
        %v3019 = vsel %vm3007, %v2988, %v2990
        %v3020 = vsel %vm3007, %v2992, %v2994
        %v3021 = vsel %vm3007, %v2996, %v2998
        %v3022 = vsel %vm3007, %v3000, %v3002
        %v3023 = vsel %vm3007, %v3004, %v3006
        %v3056 = vsel %vm3007, 0.0, %v2944
        %v3057 = vsel %vm3007, 0.0, %v2948
        %v3058 = vsel %vm3007, 0.0, %v2952
        %v3059 = vsel %vm3007, 0.0, %v2956
        %v3060 = vsel %vm3007, 0.0, %v2960
        %v3061 = vsel %vm3007, 0.0, %v2964
        %v3062 = vsel %vm3007, 0.0, %v2968
        %v3063 = vsel %vm3007, 0.0, %v2972
        %v3064 = vsel %vm3007, 0.0, %v2976
        %v3065 = vsel %vm3007, 0.0, %v2980
        %v3066 = vsel %vm3007, 0.0, %v2984
        %v3067 = vsel %vm3007, 0.0, %v2988
        %v3068 = vsel %vm3007, 0.0, %v2992
        %v3069 = vsel %vm3007, 0.0, %v2996
        %v3070 = vsel %vm3007, 0.0, %v3000
        %v3071 = vsel %vm3007, 0.0, %v3004
        %vm3072 = vcmp.lt.s32.totalorder %v416, 15
        %vm3073 = vcmp.lt.s32.totalorder %v417, 15
        %v3074 = vsel %vm3072, 1, 0
        %v3075 = vsel %vm3073, 1, 0
        %vm3076 = vcmp.eq.s32.totalorder %v3074, 1
        %vm3077 = vcmp.eq.s32.totalorder %v3075, 1
        %v3078 = vsel %vm3076, %v3056, 0.0
        %v3079 = vsel %vm3077, %v3008, 0.0
        %v3080 = vsel %vm3076, %v3057, 0.0
        %v3081 = vsel %vm3077, %v3009, 0.0
        %v3082 = vsel %vm3076, %v3058, 0.0
        %v3083 = vsel %vm3077, %v3010, 0.0
        %v3084 = vsel %vm3076, %v3059, 0.0
        %v3085 = vsel %vm3077, %v3011, 0.0
        %v3086 = vsel %vm3076, %v3060, 0.0
        %v3087 = vsel %vm3077, %v3012, 0.0
        %v3088 = vsel %vm3076, %v3061, 0.0
        %v3089 = vsel %vm3077, %v3013, 0.0
        %v3090 = vsel %vm3076, %v3062, 0.0
        %v3091 = vsel %vm3077, %v3014, 0.0
        %v3092 = vsel %vm3076, %v3063, 0.0
        %v3093 = vsel %vm3077, %v3015, 0.0
        %v3094 = vsel %vm3076, %v3064, 0.0
        %v3095 = vsel %vm3077, %v3016, 0.0
        %v3096 = vsel %vm3076, %v3065, 0.0
        %v3097 = vsel %vm3077, %v3017, 0.0
        %v3098 = vsel %vm3076, %v3066, 0.0
        %v3099 = vsel %vm3077, %v3018, 0.0
        %v3100 = vsel %vm3076, %v3067, 0.0
        %v3101 = vsel %vm3077, %v3019, 0.0
        %v3102 = vsel %vm3076, %v3068, 0.0
        %v3103 = vsel %vm3077, %v3020, 0.0
        %v3104 = vsel %vm3076, %v3069, 0.0
        %v3105 = vsel %vm3077, %v3021, 0.0
        %v3106 = vsel %vm3076, %v3070, 0.0
        %v3107 = vsel %vm3077, %v3022, 0.0
        %v3108 = vsel %vm3076, %v3071, 0.0
        %v3109 = vsel %vm3077, %v3023, 0.0
        %3110 = vset.pattern.permute.xlu0 2
        %3111 = vperm.xlu0 %3110, %v2343
        %v3112 = vpop.permute.xlu0 %3111
        %3114 = vset.pattern.permute.xlu0 2
        %3115 = vperm.xlu0 %3114, %v2344
        %v3116 = vpop.permute.xlu0 %3115
        %3118 = vset.pattern.permute.xlu0 2
        %3119 = vperm.xlu0 %3118, %v2345
        %v3120 = vpop.permute.xlu0 %3119
        %3122 = vset.pattern.permute.xlu0 2
        %3123 = vperm.xlu0 %3122, %v2346
        %v3124 = vpop.permute.xlu0 %3123
        %3126 = vset.pattern.permute.xlu0 2
        %3127 = vperm.xlu0 %3126, %v2347
        %v3128 = vpop.permute.xlu0 %3127
        %3130 = vset.pattern.permute.xlu0 2
        %3131 = vperm.xlu0 %3130, %v2348
        %v3132 = vpop.permute.xlu0 %3131
        %3134 = vset.pattern.permute.xlu0 2
        %3135 = vperm.xlu0 %3134, %v2349
        %v3136 = vpop.permute.xlu0 %3135
        %3138 = vset.pattern.permute.xlu0 2
        %3139 = vperm.xlu0 %3138, %v2350
        %v3140 = vpop.permute.xlu0 %3139
        %3142 = vset.pattern.permute.xlu0 2
        %3143 = vperm.xlu0 %3142, %v2351
        %v3144 = vpop.permute.xlu0 %3143
        %3146 = vset.pattern.permute.xlu0 2
        %3147 = vperm.xlu0 %3146, %v2352
        %v3148 = vpop.permute.xlu0 %3147
        %3150 = vset.pattern.permute.xlu0 2
        %3151 = vperm.xlu0 %3150, %v2353
        %v3152 = vpop.permute.xlu0 %3151
        %3154 = vset.pattern.permute.xlu0 2
        %3155 = vperm.xlu0 %3154, %v2354
        %v3156 = vpop.permute.xlu0 %3155
        %3158 = vset.pattern.permute.xlu0 2
        %3159 = vperm.xlu0 %3158, %v2355
        %v3160 = vpop.permute.xlu0 %3159
        %3162 = vset.pattern.permute.xlu0 2
        %3163 = vperm.xlu0 %3162, %v2356
        %v3164 = vpop.permute.xlu0 %3163
        %3166 = vset.pattern.permute.xlu0 2
        %3167 = vperm.xlu0 %3166, %v2357
        %v3168 = vpop.permute.xlu0 %3167
        %3170 = vset.pattern.permute.xlu0 2
        %3171 = vperm.xlu0 %3170, %v2358
        %v3172 = vpop.permute.xlu0 %3171
        %v3174 = vmul.f32 %v3112, %v3078
        %v3175 = vmul.f32 %v3112, %v3079
        %v3176 = vmul.f32 %v3116, %v3080
        %v3177 = vmul.f32 %v3116, %v3081
        %v3178 = vmul.f32 %v3120, %v3082
        %v3179 = vmul.f32 %v3120, %v3083
        %v3180 = vmul.f32 %v3124, %v3084
        %v3181 = vmul.f32 %v3124, %v3085
        %v3182 = vmul.f32 %v3128, %v3086
        %v3183 = vmul.f32 %v3128, %v3087
        %v3184 = vmul.f32 %v3132, %v3088
        %v3185 = vmul.f32 %v3132, %v3089
        %v3186 = vmul.f32 %v3136, %v3090
        %v3187 = vmul.f32 %v3136, %v3091
        %v3188 = vmul.f32 %v3140, %v3092
        %v3189 = vmul.f32 %v3140, %v3093
        %v3190 = vmul.f32 %v3144, %v3094
        %v3191 = vmul.f32 %v3144, %v3095
        %v3192 = vmul.f32 %v3148, %v3096
        %v3193 = vmul.f32 %v3148, %v3097
        %v3194 = vmul.f32 %v3152, %v3098
        %v3195 = vmul.f32 %v3152, %v3099
        %v3196 = vmul.f32 %v3156, %v3100
        %v3197 = vmul.f32 %v3156, %v3101
        %v3198 = vmul.f32 %v3160, %v3102
        %v3199 = vmul.f32 %v3160, %v3103
        %v3200 = vmul.f32 %v3164, %v3104
        %v3201 = vmul.f32 %v3164, %v3105
        %v3202 = vmul.f32 %v3168, %v3106
        %v3203 = vmul.f32 %v3168, %v3107
        %v3204 = vmul.f32 %v3172, %v3108
        %v3205 = vmul.f32 %v3172, %v3109
        %v3206 = vadd.f32 %v2911, %v3174
        %v3207 = vadd.f32 %v2912, %v3175
        %v3208 = vadd.f32 %v2913, %v3176
        %v3209 = vadd.f32 %v2914, %v3177
        %v3210 = vadd.f32 %v2915, %v3178
        %v3211 = vadd.f32 %v2916, %v3179
        %v3212 = vadd.f32 %v2917, %v3180
        %v3213 = vadd.f32 %v2918, %v3181
        %v3214 = vadd.f32 %v2919, %v3182
        %v3215 = vadd.f32 %v2920, %v3183
        %v3216 = vadd.f32 %v2921, %v3184
        %v3217 = vadd.f32 %v2922, %v3185
        %v3218 = vadd.f32 %v2923, %v3186
        %v3219 = vadd.f32 %v2924, %v3187
        %v3220 = vadd.f32 %v2925, %v3188
        %v3221 = vadd.f32 %v2926, %v3189
        %v3222 = vadd.f32 %v2927, %v3190
        %v3223 = vadd.f32 %v2928, %v3191
        %v3224 = vadd.f32 %v2929, %v3192
        %v3225 = vadd.f32 %v2930, %v3193
        %v3226 = vadd.f32 %v2931, %v3194
        %v3227 = vadd.f32 %v2932, %v3195
        %v3228 = vadd.f32 %v2933, %v3196
        %v3229 = vadd.f32 %v2934, %v3197
        %v3230 = vadd.f32 %v2935, %v3198
        %v3231 = vadd.f32 %v2936, %v3199
        %v3232 = vadd.f32 %v2937, %v3200
        %v3233 = vadd.f32 %v2938, %v3201
        %v3234 = vadd.f32 %v2939, %v3202
        %v3235 = vadd.f32 %v2940, %v3203
        %v3236 = vadd.f32 %v2941, %v3204
        %v3237 = vadd.f32 %v2942, %v3205
        %3238 = vrot.lane.b32.xlu0 %v1540, 1
        %v3239 = vpop.permute.xlu0 %3238
        %3240 = vrot.lane.b32.xlu0 %v1541, 1
        %v3241 = vpop.permute.xlu0 %3240
        %3242 = vrot.lane.b32.xlu0 %v1542, 1
        %v3243 = vpop.permute.xlu0 %3242
        %3244 = vrot.lane.b32.xlu0 %v1543, 1
        %v3245 = vpop.permute.xlu0 %3244
        %3246 = vrot.lane.b32.xlu0 %v1544, 1
        %v3247 = vpop.permute.xlu0 %3246
        %3248 = vrot.lane.b32.xlu0 %v1545, 1
        %v3249 = vpop.permute.xlu0 %3248
        %3250 = vrot.lane.b32.xlu0 %v1546, 1
        %v3251 = vpop.permute.xlu0 %3250
        %3252 = vrot.lane.b32.xlu0 %v1547, 1
        %v3253 = vpop.permute.xlu0 %3252
        %3254 = vrot.lane.b32.xlu0 %v1548, 1
        %v3255 = vpop.permute.xlu0 %3254
        %3256 = vrot.lane.b32.xlu0 %v1549, 1
        %v3257 = vpop.permute.xlu0 %3256
        %3258 = vrot.lane.b32.xlu0 %v1550, 1
        %v3259 = vpop.permute.xlu0 %3258
        %3260 = vrot.lane.b32.xlu0 %v1551, 1
        %v3261 = vpop.permute.xlu0 %3260
        %3262 = vrot.lane.b32.xlu0 %v1552, 1
        %v3263 = vpop.permute.xlu0 %3262
        %3264 = vrot.lane.b32.xlu0 %v1553, 1
        %v3265 = vpop.permute.xlu0 %3264
        %3266 = vrot.lane.b32.xlu0 %v1554, 1
        %v3267 = vpop.permute.xlu0 %3266
        %3268 = vrot.lane.b32.xlu0 %v1555, 1
        %v3269 = vpop.permute.xlu0 %3268
        %3270 = vrot.lane.b32.xlu0 %v2327, 1
        %v3271 = vpop.permute.xlu0 %3270
        %3272 = vrot.lane.b32.xlu0 %v2328, 1
        %v3273 = vpop.permute.xlu0 %3272
        %3274 = vrot.lane.b32.xlu0 %v2329, 1
        %v3275 = vpop.permute.xlu0 %3274
        %3276 = vrot.lane.b32.xlu0 %v2330, 1
        %v3277 = vpop.permute.xlu0 %3276
        %3278 = vrot.lane.b32.xlu0 %v2331, 1
        %v3279 = vpop.permute.xlu0 %3278
        %3280 = vrot.lane.b32.xlu0 %v2332, 1
        %v3281 = vpop.permute.xlu0 %3280
        %3282 = vrot.lane.b32.xlu0 %v2333, 1
        %v3283 = vpop.permute.xlu0 %3282
        %3284 = vrot.lane.b32.xlu0 %v2334, 1
        %v3285 = vpop.permute.xlu0 %3284
        %3286 = vrot.lane.b32.xlu0 %v2335, 1
        %v3287 = vpop.permute.xlu0 %3286
        %3288 = vrot.lane.b32.xlu0 %v2336, 1
        %v3289 = vpop.permute.xlu0 %3288
        %3290 = vrot.lane.b32.xlu0 %v2337, 1
        %v3291 = vpop.permute.xlu0 %3290
        %3292 = vrot.lane.b32.xlu0 %v2338, 1
        %v3293 = vpop.permute.xlu0 %3292
        %3294 = vrot.lane.b32.xlu0 %v2339, 1
        %v3295 = vpop.permute.xlu0 %3294
        %3296 = vrot.lane.b32.xlu0 %v2340, 1
        %v3297 = vpop.permute.xlu0 %3296
        %3298 = vrot.lane.b32.xlu0 %v2341, 1
        %v3299 = vpop.permute.xlu0 %3298
        %3300 = vrot.lane.b32.xlu0 %v2342, 1
        %v3301 = vpop.permute.xlu0 %3300
        %vm3302 = vcmask 7168
        %v3303 = vsel %vm3302, %v3239, %v3241
        %v3304 = vsel %vm3302, %v3243, %v3245
        %v3305 = vsel %vm3302, %v3247, %v3249
        %v3306 = vsel %vm3302, %v3251, %v3253
        %v3307 = vsel %vm3302, %v3255, %v3257
        %v3308 = vsel %vm3302, %v3259, %v3261
        %v3309 = vsel %vm3302, %v3263, %v3265
        %v3310 = vsel %vm3302, %v3267, %v3269
        %v3311 = vsel %vm3302, %v3271, %v3273
        %v3312 = vsel %vm3302, %v3275, %v3277
        %v3313 = vsel %vm3302, %v3279, %v3281
        %v3314 = vsel %vm3302, %v3283, %v3285
        %v3315 = vsel %vm3302, %v3287, %v3289
        %v3316 = vsel %vm3302, %v3291, %v3293
        %v3317 = vsel %vm3302, %v3295, %v3297
        %v3318 = vsel %vm3302, %v3299, %v3301
        %v3351 = vsel %vm3302, 0.0, %v3239
        %v3352 = vsel %vm3302, 0.0, %v3243
        %v3353 = vsel %vm3302, 0.0, %v3247
        %v3354 = vsel %vm3302, 0.0, %v3251
        %v3355 = vsel %vm3302, 0.0, %v3255
        %v3356 = vsel %vm3302, 0.0, %v3259
        %v3357 = vsel %vm3302, 0.0, %v3263
        %v3358 = vsel %vm3302, 0.0, %v3267
        %v3359 = vsel %vm3302, 0.0, %v3271
        %v3360 = vsel %vm3302, 0.0, %v3275
        %v3361 = vsel %vm3302, 0.0, %v3279
        %v3362 = vsel %vm3302, 0.0, %v3283
        %v3363 = vsel %vm3302, 0.0, %v3287
        %v3364 = vsel %vm3302, 0.0, %v3291
        %v3365 = vsel %vm3302, 0.0, %v3295
        %v3366 = vsel %vm3302, 0.0, %v3299
        %v3367 = vsel %vm2540, %v3351, 0.0
        %v3368 = vsel %vm2541, %v3303, 0.0
        %v3369 = vsel %vm2540, %v3352, 0.0
        %v3370 = vsel %vm2541, %v3304, 0.0
        %v3371 = vsel %vm2540, %v3353, 0.0
        %v3372 = vsel %vm2541, %v3305, 0.0
        %v3373 = vsel %vm2540, %v3354, 0.0
        %v3374 = vsel %vm2541, %v3306, 0.0
        %v3375 = vsel %vm2540, %v3355, 0.0
        %v3376 = vsel %vm2541, %v3307, 0.0
        %v3377 = vsel %vm2540, %v3356, 0.0
        %v3378 = vsel %vm2541, %v3308, 0.0
        %v3379 = vsel %vm2540, %v3357, 0.0
        %v3380 = vsel %vm2541, %v3309, 0.0
        %v3381 = vsel %vm2540, %v3358, 0.0
        %v3382 = vsel %vm2541, %v3310, 0.0
        %v3383 = vsel %vm2540, %v3359, 0.0
        %v3384 = vsel %vm2541, %v3311, 0.0
        %v3385 = vsel %vm2540, %v3360, 0.0
        %v3386 = vsel %vm2541, %v3312, 0.0
        %v3387 = vsel %vm2540, %v3361, 0.0
        %v3388 = vsel %vm2541, %v3313, 0.0
        %v3389 = vsel %vm2540, %v3362, 0.0
        %v3390 = vsel %vm2541, %v3314, 0.0
        %v3391 = vsel %vm2540, %v3363, 0.0
        %v3392 = vsel %vm2541, %v3315, 0.0
        %v3393 = vsel %vm2540, %v3364, 0.0
        %v3394 = vsel %vm2541, %v3316, 0.0
        %v3395 = vsel %vm2540, %v3365, 0.0
        %v3396 = vsel %vm2541, %v3317, 0.0
        %v3397 = vsel %vm2540, %v3366, 0.0
        %v3398 = vsel %vm2541, %v3318, 0.0
        %3399 = vset.pattern.permute.xlu0 3
        %3400 = vperm.xlu0 %3399, %v2343
        %v3401 = vpop.permute.xlu0 %3400
        %3403 = vset.pattern.permute.xlu0 3
        %3404 = vperm.xlu0 %3403, %v2344
        %v3405 = vpop.permute.xlu0 %3404
        %3407 = vset.pattern.permute.xlu0 3
        %3408 = vperm.xlu0 %3407, %v2345
        %v3409 = vpop.permute.xlu0 %3408
        %3411 = vset.pattern.permute.xlu0 3
        %3412 = vperm.xlu0 %3411, %v2346
        %v3413 = vpop.permute.xlu0 %3412
        %3415 = vset.pattern.permute.xlu0 3
        %3416 = vperm.xlu0 %3415, %v2347
        %v3417 = vpop.permute.xlu0 %3416
        %3419 = vset.pattern.permute.xlu0 3
        %3420 = vperm.xlu0 %3419, %v2348
        %v3421 = vpop.permute.xlu0 %3420
        %3423 = vset.pattern.permute.xlu0 3
        %3424 = vperm.xlu0 %3423, %v2349
        %v3425 = vpop.permute.xlu0 %3424
        %3427 = vset.pattern.permute.xlu0 3
        %3428 = vperm.xlu0 %3427, %v2350
        %v3429 = vpop.permute.xlu0 %3428
        %3431 = vset.pattern.permute.xlu0 3
        %3432 = vperm.xlu0 %3431, %v2351
        %v3433 = vpop.permute.xlu0 %3432
        %3435 = vset.pattern.permute.xlu0 3
        %3436 = vperm.xlu0 %3435, %v2352
        %v3437 = vpop.permute.xlu0 %3436
        %3439 = vset.pattern.permute.xlu0 3
        %3440 = vperm.xlu0 %3439, %v2353
        %v3441 = vpop.permute.xlu0 %3440
        %3443 = vset.pattern.permute.xlu0 3
        %3444 = vperm.xlu0 %3443, %v2354
        %v3445 = vpop.permute.xlu0 %3444
        %3447 = vset.pattern.permute.xlu0 3
        %3448 = vperm.xlu0 %3447, %v2355
        %v3449 = vpop.permute.xlu0 %3448
        %3451 = vset.pattern.permute.xlu0 3
        %3452 = vperm.xlu0 %3451, %v2356
        %v3453 = vpop.permute.xlu0 %3452
        %3455 = vset.pattern.permute.xlu0 3
        %3456 = vperm.xlu0 %3455, %v2357
        %v3457 = vpop.permute.xlu0 %3456
        %3459 = vset.pattern.permute.xlu0 3
        %3460 = vperm.xlu0 %3459, %v2358
        %v3461 = vpop.permute.xlu0 %3460
        %v3463 = vmul.f32 %v3401, %v3367
        %v3464 = vmul.f32 %v3401, %v3368
        %v3465 = vmul.f32 %v3405, %v3369
        %v3466 = vmul.f32 %v3405, %v3370
        %v3467 = vmul.f32 %v3409, %v3371
        %v3468 = vmul.f32 %v3409, %v3372
        %v3469 = vmul.f32 %v3413, %v3373
        %v3470 = vmul.f32 %v3413, %v3374
        %v3471 = vmul.f32 %v3417, %v3375
        %v3472 = vmul.f32 %v3417, %v3376
        %v3473 = vmul.f32 %v3421, %v3377
        %v3474 = vmul.f32 %v3421, %v3378
        %v3475 = vmul.f32 %v3425, %v3379
        %v3476 = vmul.f32 %v3425, %v3380
        %v3477 = vmul.f32 %v3429, %v3381
        %v3478 = vmul.f32 %v3429, %v3382
        %v3479 = vmul.f32 %v3433, %v3383
        %v3480 = vmul.f32 %v3433, %v3384
        %v3481 = vmul.f32 %v3437, %v3385
        %v3482 = vmul.f32 %v3437, %v3386
        %v3483 = vmul.f32 %v3441, %v3387
        %v3484 = vmul.f32 %v3441, %v3388
        %v3485 = vmul.f32 %v3445, %v3389
        %v3486 = vmul.f32 %v3445, %v3390
        %v3487 = vmul.f32 %v3449, %v3391
        %v3488 = vmul.f32 %v3449, %v3392
        %v3489 = vmul.f32 %v3453, %v3393
        %v3490 = vmul.f32 %v3453, %v3394
        %v3491 = vmul.f32 %v3457, %v3395
        %v3492 = vmul.f32 %v3457, %v3396
        %v3493 = vmul.f32 %v3461, %v3397
        %v3494 = vmul.f32 %v3461, %v3398
        %v3495 = vadd.f32 %v3206, %v3463
        %v3496 = vadd.f32 %v3207, %v3464
        %v3497 = vadd.f32 %v3208, %v3465
        %v3498 = vadd.f32 %v3209, %v3466
        %v3499 = vadd.f32 %v3210, %v3467
        %v3500 = vadd.f32 %v3211, %v3468
        %v3501 = vadd.f32 %v3212, %v3469
        %v3502 = vadd.f32 %v3213, %v3470
        %v3503 = vadd.f32 %v3214, %v3471
        %v3504 = vadd.f32 %v3215, %v3472
        %v3505 = vadd.f32 %v3216, %v3473
        %v3506 = vadd.f32 %v3217, %v3474
        %v3507 = vadd.f32 %v3218, %v3475
        %v3508 = vadd.f32 %v3219, %v3476
        %v3509 = vadd.f32 %v3220, %v3477
        %v3510 = vadd.f32 %v3221, %v3478
        %v3511 = vadd.f32 %v3222, %v3479
        %v3512 = vadd.f32 %v3223, %v3480
        %v3513 = vadd.f32 %v3224, %v3481
        %v3514 = vadd.f32 %v3225, %v3482
        %v3515 = vadd.f32 %v3226, %v3483
        %v3516 = vadd.f32 %v3227, %v3484
        %v3517 = vadd.f32 %v3228, %v3485
        %v3518 = vadd.f32 %v3229, %v3486
        %v3519 = vadd.f32 %v3230, %v3487
        %v3520 = vadd.f32 %v3231, %v3488
        %v3521 = vadd.f32 %v3232, %v3489
        %v3522 = vadd.f32 %v3233, %v3490
        %v3523 = vadd.f32 %v3234, %v3491
        %v3524 = vadd.f32 %v3235, %v3492
        %v3525 = vadd.f32 %v3236, %v3493
        %v3526 = vadd.f32 %v3237, %v3494
        %3527 = vset.pattern.permute.xlu0 4
        %3528 = vperm.xlu0 %3527, %v2343
        %v3529 = vpop.permute.xlu0 %3528
        %3531 = vset.pattern.permute.xlu0 4
        %3532 = vperm.xlu0 %3531, %v2344
        %v3533 = vpop.permute.xlu0 %3532
        %3535 = vset.pattern.permute.xlu0 4
        %3536 = vperm.xlu0 %3535, %v2345
        %v3537 = vpop.permute.xlu0 %3536
        %3539 = vset.pattern.permute.xlu0 4
        %3540 = vperm.xlu0 %3539, %v2346
        %v3541 = vpop.permute.xlu0 %3540
        %3543 = vset.pattern.permute.xlu0 4
        %3544 = vperm.xlu0 %3543, %v2347
        %v3545 = vpop.permute.xlu0 %3544
        %3547 = vset.pattern.permute.xlu0 4
        %3548 = vperm.xlu0 %3547, %v2348
        %v3549 = vpop.permute.xlu0 %3548
        %3551 = vset.pattern.permute.xlu0 4
        %3552 = vperm.xlu0 %3551, %v2349
        %v3553 = vpop.permute.xlu0 %3552
        %3555 = vset.pattern.permute.xlu0 4
        %3556 = vperm.xlu0 %3555, %v2350
        %v3557 = vpop.permute.xlu0 %3556
        %3559 = vset.pattern.permute.xlu0 4
        %3560 = vperm.xlu0 %3559, %v2351
        %v3561 = vpop.permute.xlu0 %3560
        %3563 = vset.pattern.permute.xlu0 4
        %3564 = vperm.xlu0 %3563, %v2352
        %v3565 = vpop.permute.xlu0 %3564
        %3567 = vset.pattern.permute.xlu0 4
        %3568 = vperm.xlu0 %3567, %v2353
        %v3569 = vpop.permute.xlu0 %3568
        %3571 = vset.pattern.permute.xlu0 4
        %3572 = vperm.xlu0 %3571, %v2354
        %v3573 = vpop.permute.xlu0 %3572
        %3575 = vset.pattern.permute.xlu0 4
        %3576 = vperm.xlu0 %3575, %v2355
        %v3577 = vpop.permute.xlu0 %3576
        %3579 = vset.pattern.permute.xlu0 4
        %3580 = vperm.xlu0 %3579, %v2356
        %v3581 = vpop.permute.xlu0 %3580
        %3583 = vset.pattern.permute.xlu0 4
        %3584 = vperm.xlu0 %3583, %v2357
        %v3585 = vpop.permute.xlu0 %3584
        %3587 = vset.pattern.permute.xlu0 4
        %3588 = vperm.xlu0 %3587, %v2358
        %v3589 = vpop.permute.xlu0 %3588
        %v3591 = vmul.f32 %v3529, %v1540
        %v3592 = vmul.f32 %v3529, %v1541
        %v3593 = vmul.f32 %v3533, %v1542
        %v3594 = vmul.f32 %v3533, %v1543
        %v3595 = vmul.f32 %v3537, %v1544
        %v3596 = vmul.f32 %v3537, %v1545
        %v3597 = vmul.f32 %v3541, %v1546
        %v3598 = vmul.f32 %v3541, %v1547
        %v3599 = vmul.f32 %v3545, %v1548
        %v3600 = vmul.f32 %v3545, %v1549
        %v3601 = vmul.f32 %v3549, %v1550
        %v3602 = vmul.f32 %v3549, %v1551
        %v3603 = vmul.f32 %v3553, %v1552
        %v3604 = vmul.f32 %v3553, %v1553
        %v3605 = vmul.f32 %v3557, %v1554
        %v3606 = vmul.f32 %v3557, %v1555
        %v3607 = vmul.f32 %v3561, %v2327
        %v3608 = vmul.f32 %v3561, %v2328
        %v3609 = vmul.f32 %v3565, %v2329
        %v3610 = vmul.f32 %v3565, %v2330
        %v3611 = vmul.f32 %v3569, %v2331
        %v3612 = vmul.f32 %v3569, %v2332
        %v3613 = vmul.f32 %v3573, %v2333
        %v3614 = vmul.f32 %v3573, %v2334
        %v3615 = vmul.f32 %v3577, %v2335
        %v3616 = vmul.f32 %v3577, %v2336
        %v3617 = vmul.f32 %v3581, %v2337
        %v3618 = vmul.f32 %v3581, %v2338
        %v3619 = vmul.f32 %v3585, %v2339
        %v3620 = vmul.f32 %v3585, %v2340
        %v3621 = vmul.f32 %v3589, %v2341
        %v3622 = vmul.f32 %v3589, %v2342
        %v3623 = vadd.f32 %v3495, %v3591
        %v3624 = vadd.f32 %v3496, %v3592
        %v3625 = vadd.f32 %v3497, %v3593
        %v3626 = vadd.f32 %v3498, %v3594
        %v3627 = vadd.f32 %v3499, %v3595
        %v3628 = vadd.f32 %v3500, %v3596
        %v3629 = vadd.f32 %v3501, %v3597
        %v3630 = vadd.f32 %v3502, %v3598
        %v3631 = vadd.f32 %v3503, %v3599
        %v3632 = vadd.f32 %v3504, %v3600
        %v3633 = vadd.f32 %v3505, %v3601
        %v3634 = vadd.f32 %v3506, %v3602
        %v3635 = vadd.f32 %v3507, %v3603
        %v3636 = vadd.f32 %v3508, %v3604
        %v3637 = vadd.f32 %v3509, %v3605
        %v3638 = vadd.f32 %v3510, %v3606
        %v3639 = vadd.f32 %v3511, %v3607
        %v3640 = vadd.f32 %v3512, %v3608
        %v3641 = vadd.f32 %v3513, %v3609
        %v3642 = vadd.f32 %v3514, %v3610
        %v3643 = vadd.f32 %v3515, %v3611
        %v3644 = vadd.f32 %v3516, %v3612
        %v3645 = vadd.f32 %v3517, %v3613
        %v3646 = vadd.f32 %v3518, %v3614
        %v3647 = vadd.f32 %v3519, %v3615
        %v3648 = vadd.f32 %v3520, %v3616
        %v3649 = vadd.f32 %v3521, %v3617
        %v3650 = vadd.f32 %v3522, %v3618
        %v3651 = vadd.f32 %v3523, %v3619
        %v3652 = vadd.f32 %v3524, %v3620
        %v3653 = vadd.f32 %v3525, %v3621
        %v3654 = vadd.f32 %v3526, %v3622
        %3655 = vrot.lane.b32.xlu0 %v1540, 127
        %v3656 = vpop.permute.xlu0 %3655
        %3657 = vrot.lane.b32.xlu0 %v1541, 127
        %v3658 = vpop.permute.xlu0 %3657
        %3659 = vrot.lane.b32.xlu0 %v1542, 127
        %v3660 = vpop.permute.xlu0 %3659
        %3661 = vrot.lane.b32.xlu0 %v1543, 127
        %v3662 = vpop.permute.xlu0 %3661
        %3663 = vrot.lane.b32.xlu0 %v1544, 127
        %v3664 = vpop.permute.xlu0 %3663
        %3665 = vrot.lane.b32.xlu0 %v1545, 127
        %v3666 = vpop.permute.xlu0 %3665
        %3667 = vrot.lane.b32.xlu0 %v1546, 127
        %v3668 = vpop.permute.xlu0 %3667
        %3669 = vrot.lane.b32.xlu0 %v1547, 127
        %v3670 = vpop.permute.xlu0 %3669
        %3671 = vrot.lane.b32.xlu0 %v1548, 127
        %v3672 = vpop.permute.xlu0 %3671
        %3673 = vrot.lane.b32.xlu0 %v1549, 127
        %v3674 = vpop.permute.xlu0 %3673
        %3675 = vrot.lane.b32.xlu0 %v1550, 127
        %v3676 = vpop.permute.xlu0 %3675
        %3677 = vrot.lane.b32.xlu0 %v1551, 127
        %v3678 = vpop.permute.xlu0 %3677
        %3679 = vrot.lane.b32.xlu0 %v1552, 127
        %v3680 = vpop.permute.xlu0 %3679
        %3681 = vrot.lane.b32.xlu0 %v1553, 127
        %v3682 = vpop.permute.xlu0 %3681
        %3683 = vrot.lane.b32.xlu0 %v1554, 127
        %v3684 = vpop.permute.xlu0 %3683
        %3685 = vrot.lane.b32.xlu0 %v1555, 127
        %v3686 = vpop.permute.xlu0 %3685
        %3687 = vrot.lane.b32.xlu0 %v2327, 127
        %v3688 = vpop.permute.xlu0 %3687
        %3689 = vrot.lane.b32.xlu0 %v2328, 127
        %v3690 = vpop.permute.xlu0 %3689
        %3691 = vrot.lane.b32.xlu0 %v2329, 127
        %v3692 = vpop.permute.xlu0 %3691
        %3693 = vrot.lane.b32.xlu0 %v2330, 127
        %v3694 = vpop.permute.xlu0 %3693
        %3695 = vrot.lane.b32.xlu0 %v2331, 127
        %v3696 = vpop.permute.xlu0 %3695
        %3697 = vrot.lane.b32.xlu0 %v2332, 127
        %v3698 = vpop.permute.xlu0 %3697
        %3699 = vrot.lane.b32.xlu0 %v2333, 127
        %v3700 = vpop.permute.xlu0 %3699
        %3701 = vrot.lane.b32.xlu0 %v2334, 127
        %v3702 = vpop.permute.xlu0 %3701
        %3703 = vrot.lane.b32.xlu0 %v2335, 127
        %v3704 = vpop.permute.xlu0 %3703
        %3705 = vrot.lane.b32.xlu0 %v2336, 127
        %v3706 = vpop.permute.xlu0 %3705
        %3707 = vrot.lane.b32.xlu0 %v2337, 127
        %v3708 = vpop.permute.xlu0 %3707
        %3709 = vrot.lane.b32.xlu0 %v2338, 127
        %v3710 = vpop.permute.xlu0 %3709
        %3711 = vrot.lane.b32.xlu0 %v2339, 127
        %v3712 = vpop.permute.xlu0 %3711
        %3713 = vrot.lane.b32.xlu0 %v2340, 127
        %v3714 = vpop.permute.xlu0 %3713
        %3715 = vrot.lane.b32.xlu0 %v2341, 127
        %v3716 = vpop.permute.xlu0 %3715
        %3717 = vrot.lane.b32.xlu0 %v2342, 127
        %v3718 = vpop.permute.xlu0 %3717
        %vm3719 = vcmask 1039360
        %v3720 = vsel %vm3719, %v3656, %v3658
        %v3721 = vsel %vm3719, %v3660, %v3662
        %v3722 = vsel %vm3719, %v3664, %v3666
        %v3723 = vsel %vm3719, %v3668, %v3670
        %v3724 = vsel %vm3719, %v3672, %v3674
        %v3725 = vsel %vm3719, %v3676, %v3678
        %v3726 = vsel %vm3719, %v3680, %v3682
        %v3727 = vsel %vm3719, %v3684, %v3686
        %v3728 = vsel %vm3719, %v3688, %v3690
        %v3729 = vsel %vm3719, %v3692, %v3694
        %v3730 = vsel %vm3719, %v3696, %v3698
        %v3731 = vsel %vm3719, %v3700, %v3702
        %v3732 = vsel %vm3719, %v3704, %v3706
        %v3733 = vsel %vm3719, %v3708, %v3710
        %v3734 = vsel %vm3719, %v3712, %v3714
        %v3735 = vsel %vm3719, %v3716, %v3718
        %v3768 = vsel %vm3719, %v3658, 0.0
        %v3769 = vsel %vm3719, %v3662, 0.0
        %v3770 = vsel %vm3719, %v3666, 0.0
        %v3771 = vsel %vm3719, %v3670, 0.0
        %v3772 = vsel %vm3719, %v3674, 0.0
        %v3773 = vsel %vm3719, %v3678, 0.0
        %v3774 = vsel %vm3719, %v3682, 0.0
        %v3775 = vsel %vm3719, %v3686, 0.0
        %v3776 = vsel %vm3719, %v3690, 0.0
        %v3777 = vsel %vm3719, %v3694, 0.0
        %v3778 = vsel %vm3719, %v3698, 0.0
        %v3779 = vsel %vm3719, %v3702, 0.0
        %v3780 = vsel %vm3719, %v3706, 0.0
        %v3781 = vsel %vm3719, %v3710, 0.0
        %v3782 = vsel %vm3719, %v3714, 0.0
        %v3783 = vsel %vm3719, %v3718, 0.0
        %v3784 = vsel %vm3076, %v3720, 0.0
        %v3785 = vsel %vm3077, %v3768, 0.0
        %v3786 = vsel %vm3076, %v3721, 0.0
        %v3787 = vsel %vm3077, %v3769, 0.0
        %v3788 = vsel %vm3076, %v3722, 0.0
        %v3789 = vsel %vm3077, %v3770, 0.0
        %v3790 = vsel %vm3076, %v3723, 0.0
        %v3791 = vsel %vm3077, %v3771, 0.0
        %v3792 = vsel %vm3076, %v3724, 0.0
        %v3793 = vsel %vm3077, %v3772, 0.0
        %v3794 = vsel %vm3076, %v3725, 0.0
        %v3795 = vsel %vm3077, %v3773, 0.0
        %v3796 = vsel %vm3076, %v3726, 0.0
        %v3797 = vsel %vm3077, %v3774, 0.0
        %v3798 = vsel %vm3076, %v3727, 0.0
        %v3799 = vsel %vm3077, %v3775, 0.0
        %v3800 = vsel %vm3076, %v3728, 0.0
        %v3801 = vsel %vm3077, %v3776, 0.0
        %v3802 = vsel %vm3076, %v3729, 0.0
        %v3803 = vsel %vm3077, %v3777, 0.0
        %v3804 = vsel %vm3076, %v3730, 0.0
        %v3805 = vsel %vm3077, %v3778, 0.0
        %v3806 = vsel %vm3076, %v3731, 0.0
        %v3807 = vsel %vm3077, %v3779, 0.0
        %v3808 = vsel %vm3076, %v3732, 0.0
        %v3809 = vsel %vm3077, %v3780, 0.0
        %v3810 = vsel %vm3076, %v3733, 0.0
        %v3811 = vsel %vm3077, %v3781, 0.0
        %v3812 = vsel %vm3076, %v3734, 0.0
        %v3813 = vsel %vm3077, %v3782, 0.0
        %v3814 = vsel %vm3076, %v3735, 0.0
        %v3815 = vsel %vm3077, %v3783, 0.0
        %3816 = vset.pattern.permute.xlu0 5
        %3817 = vperm.xlu0 %3816, %v2343
        %v3818 = vpop.permute.xlu0 %3817
        %3820 = vset.pattern.permute.xlu0 5
        %3821 = vperm.xlu0 %3820, %v2344
        %v3822 = vpop.permute.xlu0 %3821
        %3824 = vset.pattern.permute.xlu0 5
        %3825 = vperm.xlu0 %3824, %v2345
        %v3826 = vpop.permute.xlu0 %3825
        %3828 = vset.pattern.permute.xlu0 5
        %3829 = vperm.xlu0 %3828, %v2346
        %v3830 = vpop.permute.xlu0 %3829
        %3832 = vset.pattern.permute.xlu0 5
        %3833 = vperm.xlu0 %3832, %v2347
        %v3834 = vpop.permute.xlu0 %3833
        %3836 = vset.pattern.permute.xlu0 5
        %3837 = vperm.xlu0 %3836, %v2348
        %v3838 = vpop.permute.xlu0 %3837
        %3840 = vset.pattern.permute.xlu0 5
        %3841 = vperm.xlu0 %3840, %v2349
        %v3842 = vpop.permute.xlu0 %3841
        %3844 = vset.pattern.permute.xlu0 5
        %3845 = vperm.xlu0 %3844, %v2350
        %v3846 = vpop.permute.xlu0 %3845
        %3848 = vset.pattern.permute.xlu0 5
        %3849 = vperm.xlu0 %3848, %v2351
        %v3850 = vpop.permute.xlu0 %3849
        %3852 = vset.pattern.permute.xlu0 5
        %3853 = vperm.xlu0 %3852, %v2352
        %v3854 = vpop.permute.xlu0 %3853
        %3856 = vset.pattern.permute.xlu0 5
        %3857 = vperm.xlu0 %3856, %v2353
        %v3858 = vpop.permute.xlu0 %3857
        %3860 = vset.pattern.permute.xlu0 5
        %3861 = vperm.xlu0 %3860, %v2354
        %v3862 = vpop.permute.xlu0 %3861
        %3864 = vset.pattern.permute.xlu0 5
        %3865 = vperm.xlu0 %3864, %v2355
        %v3866 = vpop.permute.xlu0 %3865
        %3868 = vset.pattern.permute.xlu0 5
        %3869 = vperm.xlu0 %3868, %v2356
        %v3870 = vpop.permute.xlu0 %3869
        %3872 = vset.pattern.permute.xlu0 5
        %3873 = vperm.xlu0 %3872, %v2357
        %v3874 = vpop.permute.xlu0 %3873
        %3876 = vset.pattern.permute.xlu0 5
        %3877 = vperm.xlu0 %3876, %v2358
        %v3878 = vpop.permute.xlu0 %3877
        %v3880 = vmul.f32 %v3818, %v3784
        %v3881 = vmul.f32 %v3818, %v3785
        %v3882 = vmul.f32 %v3822, %v3786
        %v3883 = vmul.f32 %v3822, %v3787
        %v3884 = vmul.f32 %v3826, %v3788
        %v3885 = vmul.f32 %v3826, %v3789
        %v3886 = vmul.f32 %v3830, %v3790
        %v3887 = vmul.f32 %v3830, %v3791
        %v3888 = vmul.f32 %v3834, %v3792
        %v3889 = vmul.f32 %v3834, %v3793
        %v3890 = vmul.f32 %v3838, %v3794
        %v3891 = vmul.f32 %v3838, %v3795
        %v3892 = vmul.f32 %v3842, %v3796
        %v3893 = vmul.f32 %v3842, %v3797
        %v3894 = vmul.f32 %v3846, %v3798
        %v3895 = vmul.f32 %v3846, %v3799
        %v3896 = vmul.f32 %v3850, %v3800
        %v3897 = vmul.f32 %v3850, %v3801
        %v3898 = vmul.f32 %v3854, %v3802
        %v3899 = vmul.f32 %v3854, %v3803
        %v3900 = vmul.f32 %v3858, %v3804
        %v3901 = vmul.f32 %v3858, %v3805
        %v3902 = vmul.f32 %v3862, %v3806
        %v3903 = vmul.f32 %v3862, %v3807
        %v3904 = vmul.f32 %v3866, %v3808
        %v3905 = vmul.f32 %v3866, %v3809
        %v3906 = vmul.f32 %v3870, %v3810
        %v3907 = vmul.f32 %v3870, %v3811
        %v3908 = vmul.f32 %v3874, %v3812
        %v3909 = vmul.f32 %v3874, %v3813
        %v3910 = vmul.f32 %v3878, %v3814
        %v3911 = vmul.f32 %v3878, %v3815
        %v3912 = vadd.f32 %v3623, %v3880
        %v3913 = vadd.f32 %v3624, %v3881
        %v3914 = vadd.f32 %v3625, %v3882
        %v3915 = vadd.f32 %v3626, %v3883
        %v3916 = vadd.f32 %v3627, %v3884
        %v3917 = vadd.f32 %v3628, %v3885
        %v3918 = vadd.f32 %v3629, %v3886
        %v3919 = vadd.f32 %v3630, %v3887
        %v3920 = vadd.f32 %v3631, %v3888
        %v3921 = vadd.f32 %v3632, %v3889
        %v3922 = vadd.f32 %v3633, %v3890
        %v3923 = vadd.f32 %v3634, %v3891
        %v3924 = vadd.f32 %v3635, %v3892
        %v3925 = vadd.f32 %v3636, %v3893
        %v3926 = vadd.f32 %v3637, %v3894
        %v3927 = vadd.f32 %v3638, %v3895
        %v3928 = vadd.f32 %v3639, %v3896
        %v3929 = vadd.f32 %v3640, %v3897
        %v3930 = vadd.f32 %v3641, %v3898
        %v3931 = vadd.f32 %v3642, %v3899
        %v3932 = vadd.f32 %v3643, %v3900
        %v3933 = vadd.f32 %v3644, %v3901
        %v3934 = vadd.f32 %v3645, %v3902
        %v3935 = vadd.f32 %v3646, %v3903
        %v3936 = vadd.f32 %v3647, %v3904
        %v3937 = vadd.f32 %v3648, %v3905
        %v3938 = vadd.f32 %v3649, %v3906
        %v3939 = vadd.f32 %v3650, %v3907
        %v3940 = vadd.f32 %v3651, %v3908
        %v3941 = vadd.f32 %v3652, %v3909
        %v3942 = vadd.f32 %v3653, %v3910
        %v3943 = vadd.f32 %v3654, %v3911
        %3944 = vrot.lane.b32.xlu0 %v1540, 113
        %v3945 = vpop.permute.xlu0 %3944
        %3946 = vrot.lane.b32.xlu0 %v1541, 113
        %v3947 = vpop.permute.xlu0 %3946
        %3948 = vrot.lane.b32.xlu0 %v1542, 113
        %v3949 = vpop.permute.xlu0 %3948
        %3950 = vrot.lane.b32.xlu0 %v1543, 113
        %v3951 = vpop.permute.xlu0 %3950
        %3952 = vrot.lane.b32.xlu0 %v1544, 113
        %v3953 = vpop.permute.xlu0 %3952
        %3954 = vrot.lane.b32.xlu0 %v1545, 113
        %v3955 = vpop.permute.xlu0 %3954
        %3956 = vrot.lane.b32.xlu0 %v1546, 113
        %v3957 = vpop.permute.xlu0 %3956
        %3958 = vrot.lane.b32.xlu0 %v1547, 113
        %v3959 = vpop.permute.xlu0 %3958
        %3960 = vrot.lane.b32.xlu0 %v1548, 113
        %v3961 = vpop.permute.xlu0 %3960
        %3962 = vrot.lane.b32.xlu0 %v1549, 113
        %v3963 = vpop.permute.xlu0 %3962
        %3964 = vrot.lane.b32.xlu0 %v1550, 113
        %v3965 = vpop.permute.xlu0 %3964
        %3966 = vrot.lane.b32.xlu0 %v1551, 113
        %v3967 = vpop.permute.xlu0 %3966
        %3968 = vrot.lane.b32.xlu0 %v1552, 113
        %v3969 = vpop.permute.xlu0 %3968
        %3970 = vrot.lane.b32.xlu0 %v1553, 113
        %v3971 = vpop.permute.xlu0 %3970
        %3972 = vrot.lane.b32.xlu0 %v1554, 113
        %v3973 = vpop.permute.xlu0 %3972
        %3974 = vrot.lane.b32.xlu0 %v1555, 113
        %v3975 = vpop.permute.xlu0 %3974
        %3976 = vrot.lane.b32.xlu0 %v2327, 113
        %v3977 = vpop.permute.xlu0 %3976
        %3978 = vrot.lane.b32.xlu0 %v2328, 113
        %v3979 = vpop.permute.xlu0 %3978
        %3980 = vrot.lane.b32.xlu0 %v2329, 113
        %v3981 = vpop.permute.xlu0 %3980
        %3982 = vrot.lane.b32.xlu0 %v2330, 113
        %v3983 = vpop.permute.xlu0 %3982
        %3984 = vrot.lane.b32.xlu0 %v2331, 113
        %v3985 = vpop.permute.xlu0 %3984
        %3986 = vrot.lane.b32.xlu0 %v2332, 113
        %v3987 = vpop.permute.xlu0 %3986
        %3988 = vrot.lane.b32.xlu0 %v2333, 113
        %v3989 = vpop.permute.xlu0 %3988
        %3990 = vrot.lane.b32.xlu0 %v2334, 113
        %v3991 = vpop.permute.xlu0 %3990
        %3992 = vrot.lane.b32.xlu0 %v2335, 113
        %v3993 = vpop.permute.xlu0 %3992
        %3994 = vrot.lane.b32.xlu0 %v2336, 113
        %v3995 = vpop.permute.xlu0 %3994
        %3996 = vrot.lane.b32.xlu0 %v2337, 113
        %v3997 = vpop.permute.xlu0 %3996
        %3998 = vrot.lane.b32.xlu0 %v2338, 113
        %v3999 = vpop.permute.xlu0 %3998
        %4000 = vrot.lane.b32.xlu0 %v2339, 113
        %v4001 = vpop.permute.xlu0 %4000
        %4002 = vrot.lane.b32.xlu0 %v2340, 113
        %v4003 = vpop.permute.xlu0 %4002
        %4004 = vrot.lane.b32.xlu0 %v2341, 113
        %v4005 = vpop.permute.xlu0 %4004
        %4006 = vrot.lane.b32.xlu0 %v2342, 113
        %v4007 = vpop.permute.xlu0 %4006
        %vm4008 = vcmask 924672
        %v4009 = vsel %vm4008, %v3945, %v3947
        %v4010 = vsel %vm4008, %v3949, %v3951
        %v4011 = vsel %vm4008, %v3953, %v3955
        %v4012 = vsel %vm4008, %v3957, %v3959
        %v4013 = vsel %vm4008, %v3961, %v3963
        %v4014 = vsel %vm4008, %v3965, %v3967
        %v4015 = vsel %vm4008, %v3969, %v3971
        %v4016 = vsel %vm4008, %v3973, %v3975
        %v4017 = vsel %vm4008, %v3977, %v3979
        %v4018 = vsel %vm4008, %v3981, %v3983
        %v4019 = vsel %vm4008, %v3985, %v3987
        %v4020 = vsel %vm4008, %v3989, %v3991
        %v4021 = vsel %vm4008, %v3993, %v3995
        %v4022 = vsel %vm4008, %v3997, %v3999
        %v4023 = vsel %vm4008, %v4001, %v4003
        %v4024 = vsel %vm4008, %v4005, %v4007
        %v4057 = vsel %vm4008, %v3947, 0.0
        %v4058 = vsel %vm4008, %v3951, 0.0
        %v4059 = vsel %vm4008, %v3955, 0.0
        %v4060 = vsel %vm4008, %v3959, 0.0
        %v4061 = vsel %vm4008, %v3963, 0.0
        %v4062 = vsel %vm4008, %v3967, 0.0
        %v4063 = vsel %vm4008, %v3971, 0.0
        %v4064 = vsel %vm4008, %v3975, 0.0
        %v4065 = vsel %vm4008, %v3979, 0.0
        %v4066 = vsel %vm4008, %v3983, 0.0
        %v4067 = vsel %vm4008, %v3987, 0.0
        %v4068 = vsel %vm4008, %v3991, 0.0
        %v4069 = vsel %vm4008, %v3995, 0.0
        %v4070 = vsel %vm4008, %v3999, 0.0
        %v4071 = vsel %vm4008, %v4003, 0.0
        %v4072 = vsel %vm4008, %v4007, 0.0
        %v4073 = vsel %vm2540, %v4009, 0.0
        %v4074 = vsel %vm2541, %v4057, 0.0
        %v4075 = vsel %vm2540, %v4010, 0.0
        %v4076 = vsel %vm2541, %v4058, 0.0
        %v4077 = vsel %vm2540, %v4011, 0.0
        %v4078 = vsel %vm2541, %v4059, 0.0
        %v4079 = vsel %vm2540, %v4012, 0.0
        %v4080 = vsel %vm2541, %v4060, 0.0
        %v4081 = vsel %vm2540, %v4013, 0.0
        %v4082 = vsel %vm2541, %v4061, 0.0
        %v4083 = vsel %vm2540, %v4014, 0.0
        %v4084 = vsel %vm2541, %v4062, 0.0
        %v4085 = vsel %vm2540, %v4015, 0.0
        %v4086 = vsel %vm2541, %v4063, 0.0
        %v4087 = vsel %vm2540, %v4016, 0.0
        %v4088 = vsel %vm2541, %v4064, 0.0
        %v4089 = vsel %vm2540, %v4017, 0.0
        %v4090 = vsel %vm2541, %v4065, 0.0
        %v4091 = vsel %vm2540, %v4018, 0.0
        %v4092 = vsel %vm2541, %v4066, 0.0
        %v4093 = vsel %vm2540, %v4019, 0.0
        %v4094 = vsel %vm2541, %v4067, 0.0
        %v4095 = vsel %vm2540, %v4020, 0.0
        %v4096 = vsel %vm2541, %v4068, 0.0
        %v4097 = vsel %vm2540, %v4021, 0.0
        %v4098 = vsel %vm2541, %v4069, 0.0
        %v4099 = vsel %vm2540, %v4022, 0.0
        %v4100 = vsel %vm2541, %v4070, 0.0
        %v4101 = vsel %vm2540, %v4023, 0.0
        %v4102 = vsel %vm2541, %v4071, 0.0
        %v4103 = vsel %vm2540, %v4024, 0.0
        %v4104 = vsel %vm2541, %v4072, 0.0
        %4105 = vset.pattern.permute.xlu0 6
        %4106 = vperm.xlu0 %4105, %v2343
        %v4107 = vpop.permute.xlu0 %4106
        %4109 = vset.pattern.permute.xlu0 6
        %4110 = vperm.xlu0 %4109, %v2344
        %v4111 = vpop.permute.xlu0 %4110
        %4113 = vset.pattern.permute.xlu0 6
        %4114 = vperm.xlu0 %4113, %v2345
        %v4115 = vpop.permute.xlu0 %4114
        %4117 = vset.pattern.permute.xlu0 6
        %4118 = vperm.xlu0 %4117, %v2346
        %v4119 = vpop.permute.xlu0 %4118
        %4121 = vset.pattern.permute.xlu0 6
        %4122 = vperm.xlu0 %4121, %v2347
        %v4123 = vpop.permute.xlu0 %4122
        %4125 = vset.pattern.permute.xlu0 6
        %4126 = vperm.xlu0 %4125, %v2348
        %v4127 = vpop.permute.xlu0 %4126
        %4129 = vset.pattern.permute.xlu0 6
        %4130 = vperm.xlu0 %4129, %v2349
        %v4131 = vpop.permute.xlu0 %4130
        %4133 = vset.pattern.permute.xlu0 6
        %4134 = vperm.xlu0 %4133, %v2350
        %v4135 = vpop.permute.xlu0 %4134
        %4137 = vset.pattern.permute.xlu0 6
        %4138 = vperm.xlu0 %4137, %v2351
        %v4139 = vpop.permute.xlu0 %4138
        %4141 = vset.pattern.permute.xlu0 6
        %4142 = vperm.xlu0 %4141, %v2352
        %v4143 = vpop.permute.xlu0 %4142
        %4145 = vset.pattern.permute.xlu0 6
        %4146 = vperm.xlu0 %4145, %v2353
        %v4147 = vpop.permute.xlu0 %4146
        %4149 = vset.pattern.permute.xlu0 6
        %4150 = vperm.xlu0 %4149, %v2354
        %v4151 = vpop.permute.xlu0 %4150
        %4153 = vset.pattern.permute.xlu0 6
        %4154 = vperm.xlu0 %4153, %v2355
        %v4155 = vpop.permute.xlu0 %4154
        %4157 = vset.pattern.permute.xlu0 6
        %4158 = vperm.xlu0 %4157, %v2356
        %v4159 = vpop.permute.xlu0 %4158
        %4161 = vset.pattern.permute.xlu0 6
        %4162 = vperm.xlu0 %4161, %v2357
        %v4163 = vpop.permute.xlu0 %4162
        %4165 = vset.pattern.permute.xlu0 6
        %4166 = vperm.xlu0 %4165, %v2358
        %v4167 = vpop.permute.xlu0 %4166
        %v4169 = vmul.f32 %v4107, %v4073
        %v4170 = vmul.f32 %v4107, %v4074
        %v4171 = vmul.f32 %v4111, %v4075
        %v4172 = vmul.f32 %v4111, %v4076
        %v4173 = vmul.f32 %v4115, %v4077
        %v4174 = vmul.f32 %v4115, %v4078
        %v4175 = vmul.f32 %v4119, %v4079
        %v4176 = vmul.f32 %v4119, %v4080
        %v4177 = vmul.f32 %v4123, %v4081
        %v4178 = vmul.f32 %v4123, %v4082
        %v4179 = vmul.f32 %v4127, %v4083
        %v4180 = vmul.f32 %v4127, %v4084
        %v4181 = vmul.f32 %v4131, %v4085
        %v4182 = vmul.f32 %v4131, %v4086
        %v4183 = vmul.f32 %v4135, %v4087
        %v4184 = vmul.f32 %v4135, %v4088
        %v4185 = vmul.f32 %v4139, %v4089
        %v4186 = vmul.f32 %v4139, %v4090
        %v4187 = vmul.f32 %v4143, %v4091
        %v4188 = vmul.f32 %v4143, %v4092
        %v4189 = vmul.f32 %v4147, %v4093
        %v4190 = vmul.f32 %v4147, %v4094
        %v4191 = vmul.f32 %v4151, %v4095
        %v4192 = vmul.f32 %v4151, %v4096
        %v4193 = vmul.f32 %v4155, %v4097
        %v4194 = vmul.f32 %v4155, %v4098
        %v4195 = vmul.f32 %v4159, %v4099
        %v4196 = vmul.f32 %v4159, %v4100
        %v4197 = vmul.f32 %v4163, %v4101
        %v4198 = vmul.f32 %v4163, %v4102
        %v4199 = vmul.f32 %v4167, %v4103
        %v4200 = vmul.f32 %v4167, %v4104
        %v4201 = vadd.f32 %v3912, %v4169
        %v4202 = vadd.f32 %v3913, %v4170
        %v4203 = vadd.f32 %v3914, %v4171
        %v4204 = vadd.f32 %v3915, %v4172
        %v4205 = vadd.f32 %v3916, %v4173
        %v4206 = vadd.f32 %v3917, %v4174
        %v4207 = vadd.f32 %v3918, %v4175
        %v4208 = vadd.f32 %v3919, %v4176
        %v4209 = vadd.f32 %v3920, %v4177
        %v4210 = vadd.f32 %v3921, %v4178
        %v4211 = vadd.f32 %v3922, %v4179
        %v4212 = vadd.f32 %v3923, %v4180
        %v4213 = vadd.f32 %v3924, %v4181
        %v4214 = vadd.f32 %v3925, %v4182
        %v4215 = vadd.f32 %v3926, %v4183
        %v4216 = vadd.f32 %v3927, %v4184
        %v4217 = vadd.f32 %v3928, %v4185
        %v4218 = vadd.f32 %v3929, %v4186
        %v4219 = vadd.f32 %v3930, %v4187
        %v4220 = vadd.f32 %v3931, %v4188
        %v4221 = vadd.f32 %v3932, %v4189
        %v4222 = vadd.f32 %v3933, %v4190
        %v4223 = vadd.f32 %v3934, %v4191
        %v4224 = vadd.f32 %v3935, %v4192
        %v4225 = vadd.f32 %v3936, %v4193
        %v4226 = vadd.f32 %v3937, %v4194
        %v4227 = vadd.f32 %v3938, %v4195
        %v4228 = vadd.f32 %v3939, %v4196
        %v4229 = vadd.f32 %v3940, %v4197
        %v4230 = vadd.f32 %v3941, %v4198
        %v4231 = vadd.f32 %v3942, %v4199
        %v4232 = vadd.f32 %v3943, %v4200
        %4233 = vrot.lane.b32.xlu0 %v1540, 112
        %v4234 = vpop.permute.xlu0 %4233
        %4235 = vrot.lane.b32.xlu0 %v1541, 112
        %v4236 = vpop.permute.xlu0 %4235
        %4237 = vrot.lane.b32.xlu0 %v1542, 112
        %v4238 = vpop.permute.xlu0 %4237
        %4239 = vrot.lane.b32.xlu0 %v1543, 112
        %v4240 = vpop.permute.xlu0 %4239
        %4241 = vrot.lane.b32.xlu0 %v1544, 112
        %v4242 = vpop.permute.xlu0 %4241
        %4243 = vrot.lane.b32.xlu0 %v1545, 112
        %v4244 = vpop.permute.xlu0 %4243
        %4245 = vrot.lane.b32.xlu0 %v1546, 112
        %v4246 = vpop.permute.xlu0 %4245
        %4247 = vrot.lane.b32.xlu0 %v1547, 112
        %v4248 = vpop.permute.xlu0 %4247
        %4249 = vrot.lane.b32.xlu0 %v1548, 112
        %v4250 = vpop.permute.xlu0 %4249
        %4251 = vrot.lane.b32.xlu0 %v1549, 112
        %v4252 = vpop.permute.xlu0 %4251
        %4253 = vrot.lane.b32.xlu0 %v1550, 112
        %v4254 = vpop.permute.xlu0 %4253
        %4255 = vrot.lane.b32.xlu0 %v1551, 112
        %v4256 = vpop.permute.xlu0 %4255
        %4257 = vrot.lane.b32.xlu0 %v1552, 112
        %v4258 = vpop.permute.xlu0 %4257
        %4259 = vrot.lane.b32.xlu0 %v1553, 112
        %v4260 = vpop.permute.xlu0 %4259
        %4261 = vrot.lane.b32.xlu0 %v1554, 112
        %v4262 = vpop.permute.xlu0 %4261
        %4263 = vrot.lane.b32.xlu0 %v1555, 112
        %v4264 = vpop.permute.xlu0 %4263
        %4265 = vrot.lane.b32.xlu0 %v2327, 112
        %v4266 = vpop.permute.xlu0 %4265
        %4267 = vrot.lane.b32.xlu0 %v2328, 112
        %v4268 = vpop.permute.xlu0 %4267
        %4269 = vrot.lane.b32.xlu0 %v2329, 112
        %v4270 = vpop.permute.xlu0 %4269
        %4271 = vrot.lane.b32.xlu0 %v2330, 112
        %v4272 = vpop.permute.xlu0 %4271
        %4273 = vrot.lane.b32.xlu0 %v2331, 112
        %v4274 = vpop.permute.xlu0 %4273
        %4275 = vrot.lane.b32.xlu0 %v2332, 112
        %v4276 = vpop.permute.xlu0 %4275
        %4277 = vrot.lane.b32.xlu0 %v2333, 112
        %v4278 = vpop.permute.xlu0 %4277
        %4279 = vrot.lane.b32.xlu0 %v2334, 112
        %v4280 = vpop.permute.xlu0 %4279
        %4281 = vrot.lane.b32.xlu0 %v2335, 112
        %v4282 = vpop.permute.xlu0 %4281
        %4283 = vrot.lane.b32.xlu0 %v2336, 112
        %v4284 = vpop.permute.xlu0 %4283
        %4285 = vrot.lane.b32.xlu0 %v2337, 112
        %v4286 = vpop.permute.xlu0 %4285
        %4287 = vrot.lane.b32.xlu0 %v2338, 112
        %v4288 = vpop.permute.xlu0 %4287
        %4289 = vrot.lane.b32.xlu0 %v2339, 112
        %v4290 = vpop.permute.xlu0 %4289
        %4291 = vrot.lane.b32.xlu0 %v2340, 112
        %v4292 = vpop.permute.xlu0 %4291
        %4293 = vrot.lane.b32.xlu0 %v2341, 112
        %v4294 = vpop.permute.xlu0 %4293
        %4295 = vrot.lane.b32.xlu0 %v2342, 112
        %v4296 = vpop.permute.xlu0 %4295
        %vm4297 = vcmask 916480
        %v4298 = vsel %vm4297, %v4234, %v4236
        %v4299 = vsel %vm4297, %v4238, %v4240
        %v4300 = vsel %vm4297, %v4242, %v4244
        %v4301 = vsel %vm4297, %v4246, %v4248
        %v4302 = vsel %vm4297, %v4250, %v4252
        %v4303 = vsel %vm4297, %v4254, %v4256
        %v4304 = vsel %vm4297, %v4258, %v4260
        %v4305 = vsel %vm4297, %v4262, %v4264
        %v4306 = vsel %vm4297, %v4266, %v4268
        %v4307 = vsel %vm4297, %v4270, %v4272
        %v4308 = vsel %vm4297, %v4274, %v4276
        %v4309 = vsel %vm4297, %v4278, %v4280
        %v4310 = vsel %vm4297, %v4282, %v4284
        %v4311 = vsel %vm4297, %v4286, %v4288
        %v4312 = vsel %vm4297, %v4290, %v4292
        %v4313 = vsel %vm4297, %v4294, %v4296
        %v4346 = vsel %vm4297, %v4236, 0.0
        %v4347 = vsel %vm4297, %v4240, 0.0
        %v4348 = vsel %vm4297, %v4244, 0.0
        %v4349 = vsel %vm4297, %v4248, 0.0
        %v4350 = vsel %vm4297, %v4252, 0.0
        %v4351 = vsel %vm4297, %v4256, 0.0
        %v4352 = vsel %vm4297, %v4260, 0.0
        %v4353 = vsel %vm4297, %v4264, 0.0
        %v4354 = vsel %vm4297, %v4268, 0.0
        %v4355 = vsel %vm4297, %v4272, 0.0
        %v4356 = vsel %vm4297, %v4276, 0.0
        %v4357 = vsel %vm4297, %v4280, 0.0
        %v4358 = vsel %vm4297, %v4284, 0.0
        %v4359 = vsel %vm4297, %v4288, 0.0
        %v4360 = vsel %vm4297, %v4292, 0.0
        %v4361 = vsel %vm4297, %v4296, 0.0
        %4362 = vset.pattern.permute.xlu0 7
        %4363 = vperm.xlu0 %4362, %v2343
        %v4364 = vpop.permute.xlu0 %4363
        %4366 = vset.pattern.permute.xlu0 7
        %4367 = vperm.xlu0 %4366, %v2344
        %v4368 = vpop.permute.xlu0 %4367
        %4370 = vset.pattern.permute.xlu0 7
        %4371 = vperm.xlu0 %4370, %v2345
        %v4372 = vpop.permute.xlu0 %4371
        %4374 = vset.pattern.permute.xlu0 7
        %4375 = vperm.xlu0 %4374, %v2346
        %v4376 = vpop.permute.xlu0 %4375
        %4378 = vset.pattern.permute.xlu0 7
        %4379 = vperm.xlu0 %4378, %v2347
        %v4380 = vpop.permute.xlu0 %4379
        %4382 = vset.pattern.permute.xlu0 7
        %4383 = vperm.xlu0 %4382, %v2348
        %v4384 = vpop.permute.xlu0 %4383
        %4386 = vset.pattern.permute.xlu0 7
        %4387 = vperm.xlu0 %4386, %v2349
        %v4388 = vpop.permute.xlu0 %4387
        %4390 = vset.pattern.permute.xlu0 7
        %4391 = vperm.xlu0 %4390, %v2350
        %v4392 = vpop.permute.xlu0 %4391
        %4394 = vset.pattern.permute.xlu0 7
        %4395 = vperm.xlu0 %4394, %v2351
        %v4396 = vpop.permute.xlu0 %4395
        %4398 = vset.pattern.permute.xlu0 7
        %4399 = vperm.xlu0 %4398, %v2352
        %v4400 = vpop.permute.xlu0 %4399
        %4402 = vset.pattern.permute.xlu0 7
        %4403 = vperm.xlu0 %4402, %v2353
        %v4404 = vpop.permute.xlu0 %4403
        %4406 = vset.pattern.permute.xlu0 7
        %4407 = vperm.xlu0 %4406, %v2354
        %v4408 = vpop.permute.xlu0 %4407
        %4410 = vset.pattern.permute.xlu0 7
        %4411 = vperm.xlu0 %4410, %v2355
        %v4412 = vpop.permute.xlu0 %4411
        %4414 = vset.pattern.permute.xlu0 7
        %4415 = vperm.xlu0 %4414, %v2356
        %v4416 = vpop.permute.xlu0 %4415
        %4418 = vset.pattern.permute.xlu0 7
        %4419 = vperm.xlu0 %4418, %v2357
        %v4420 = vpop.permute.xlu0 %4419
        %4422 = vset.pattern.permute.xlu0 7
        %4423 = vperm.xlu0 %4422, %v2358
        %v4424 = vpop.permute.xlu0 %4423
        %v4426 = vmul.f32 %v4364, %v4298
        %v4427 = vmul.f32 %v4364, %v4346
        %v4428 = vmul.f32 %v4368, %v4299
        %v4429 = vmul.f32 %v4368, %v4347
        %v4430 = vmul.f32 %v4372, %v4300
        %v4431 = vmul.f32 %v4372, %v4348
        %v4432 = vmul.f32 %v4376, %v4301
        %v4433 = vmul.f32 %v4376, %v4349
        %v4434 = vmul.f32 %v4380, %v4302
        %v4435 = vmul.f32 %v4380, %v4350
        %v4436 = vmul.f32 %v4384, %v4303
        %v4437 = vmul.f32 %v4384, %v4351
        %v4438 = vmul.f32 %v4388, %v4304
        %v4439 = vmul.f32 %v4388, %v4352
        %v4440 = vmul.f32 %v4392, %v4305
        %v4441 = vmul.f32 %v4392, %v4353
        %v4442 = vmul.f32 %v4396, %v4306
        %v4443 = vmul.f32 %v4396, %v4354
        %v4444 = vmul.f32 %v4400, %v4307
        %v4445 = vmul.f32 %v4400, %v4355
        %v4446 = vmul.f32 %v4404, %v4308
        %v4447 = vmul.f32 %v4404, %v4356
        %v4448 = vmul.f32 %v4408, %v4309
        %v4449 = vmul.f32 %v4408, %v4357
        %v4450 = vmul.f32 %v4412, %v4310
        %v4451 = vmul.f32 %v4412, %v4358
        %v4452 = vmul.f32 %v4416, %v4311
        %v4453 = vmul.f32 %v4416, %v4359
        %v4454 = vmul.f32 %v4420, %v4312
        %v4455 = vmul.f32 %v4420, %v4360
        %v4456 = vmul.f32 %v4424, %v4313
        %v4457 = vmul.f32 %v4424, %v4361
        %v4458 = vadd.f32 %v4201, %v4426
        %v4459 = vadd.f32 %v4202, %v4427
        %v4460 = vadd.f32 %v4203, %v4428
        %v4461 = vadd.f32 %v4204, %v4429
        %v4462 = vadd.f32 %v4205, %v4430
        %v4463 = vadd.f32 %v4206, %v4431
        %v4464 = vadd.f32 %v4207, %v4432
        %v4465 = vadd.f32 %v4208, %v4433
        %v4466 = vadd.f32 %v4209, %v4434
        %v4467 = vadd.f32 %v4210, %v4435
        %v4468 = vadd.f32 %v4211, %v4436
        %v4469 = vadd.f32 %v4212, %v4437
        %v4470 = vadd.f32 %v4213, %v4438
        %v4471 = vadd.f32 %v4214, %v4439
        %v4472 = vadd.f32 %v4215, %v4440
        %v4473 = vadd.f32 %v4216, %v4441
        %v4474 = vadd.f32 %v4217, %v4442
        %v4475 = vadd.f32 %v4218, %v4443
        %v4476 = vadd.f32 %v4219, %v4444
        %v4477 = vadd.f32 %v4220, %v4445
        %v4478 = vadd.f32 %v4221, %v4446
        %v4479 = vadd.f32 %v4222, %v4447
        %v4480 = vadd.f32 %v4223, %v4448
        %v4481 = vadd.f32 %v4224, %v4449
        %v4482 = vadd.f32 %v4225, %v4450
        %v4483 = vadd.f32 %v4226, %v4451
        %v4484 = vadd.f32 %v4227, %v4452
        %v4485 = vadd.f32 %v4228, %v4453
        %v4486 = vadd.f32 %v4229, %v4454
        %v4487 = vadd.f32 %v4230, %v4455
        %v4488 = vadd.f32 %v4231, %v4456
        %v4489 = vadd.f32 %v4232, %v4457
        %4490 = vrot.lane.b32.xlu0 %v1540, 111
        %v4491 = vpop.permute.xlu0 %4490
        %4492 = vrot.lane.b32.xlu0 %v1541, 111
        %v4493 = vpop.permute.xlu0 %4492
        %4494 = vrot.lane.b32.xlu0 %v1542, 111
        %v4495 = vpop.permute.xlu0 %4494
        %4496 = vrot.lane.b32.xlu0 %v1543, 111
        %v4497 = vpop.permute.xlu0 %4496
        %4498 = vrot.lane.b32.xlu0 %v1544, 111
        %v4499 = vpop.permute.xlu0 %4498
        %4500 = vrot.lane.b32.xlu0 %v1545, 111
        %v4501 = vpop.permute.xlu0 %4500
        %4502 = vrot.lane.b32.xlu0 %v1546, 111
        %v4503 = vpop.permute.xlu0 %4502
        %4504 = vrot.lane.b32.xlu0 %v1547, 111
        %v4505 = vpop.permute.xlu0 %4504
        %4506 = vrot.lane.b32.xlu0 %v1548, 111
        %v4507 = vpop.permute.xlu0 %4506
        %4508 = vrot.lane.b32.xlu0 %v1549, 111
        %v4509 = vpop.permute.xlu0 %4508
        %4510 = vrot.lane.b32.xlu0 %v1550, 111
        %v4511 = vpop.permute.xlu0 %4510
        %4512 = vrot.lane.b32.xlu0 %v1551, 111
        %v4513 = vpop.permute.xlu0 %4512
        %4514 = vrot.lane.b32.xlu0 %v1552, 111
        %v4515 = vpop.permute.xlu0 %4514
        %4516 = vrot.lane.b32.xlu0 %v1553, 111
        %v4517 = vpop.permute.xlu0 %4516
        %4518 = vrot.lane.b32.xlu0 %v1554, 111
        %v4519 = vpop.permute.xlu0 %4518
        %4520 = vrot.lane.b32.xlu0 %v1555, 111
        %v4521 = vpop.permute.xlu0 %4520
        %4522 = vrot.lane.b32.xlu0 %v2327, 111
        %v4523 = vpop.permute.xlu0 %4522
        %4524 = vrot.lane.b32.xlu0 %v2328, 111
        %v4525 = vpop.permute.xlu0 %4524
        %4526 = vrot.lane.b32.xlu0 %v2329, 111
        %v4527 = vpop.permute.xlu0 %4526
        %4528 = vrot.lane.b32.xlu0 %v2330, 111
        %v4529 = vpop.permute.xlu0 %4528
        %4530 = vrot.lane.b32.xlu0 %v2331, 111
        %v4531 = vpop.permute.xlu0 %4530
        %4532 = vrot.lane.b32.xlu0 %v2332, 111
        %v4533 = vpop.permute.xlu0 %4532
        %4534 = vrot.lane.b32.xlu0 %v2333, 111
        %v4535 = vpop.permute.xlu0 %4534
        %4536 = vrot.lane.b32.xlu0 %v2334, 111
        %v4537 = vpop.permute.xlu0 %4536
        %4538 = vrot.lane.b32.xlu0 %v2335, 111
        %v4539 = vpop.permute.xlu0 %4538
        %4540 = vrot.lane.b32.xlu0 %v2336, 111
        %v4541 = vpop.permute.xlu0 %4540
        %4542 = vrot.lane.b32.xlu0 %v2337, 111
        %v4543 = vpop.permute.xlu0 %4542
        %4544 = vrot.lane.b32.xlu0 %v2338, 111
        %v4545 = vpop.permute.xlu0 %4544
        %4546 = vrot.lane.b32.xlu0 %v2339, 111
        %v4547 = vpop.permute.xlu0 %4546
        %4548 = vrot.lane.b32.xlu0 %v2340, 111
        %v4549 = vpop.permute.xlu0 %4548
        %4550 = vrot.lane.b32.xlu0 %v2341, 111
        %v4551 = vpop.permute.xlu0 %4550
        %4552 = vrot.lane.b32.xlu0 %v2342, 111
        %v4553 = vpop.permute.xlu0 %4552
        %vm4554 = vcmask 908288
        %v4555 = vsel %vm4554, %v4491, %v4493
        %v4556 = vsel %vm4554, %v4495, %v4497
        %v4557 = vsel %vm4554, %v4499, %v4501
        %v4558 = vsel %vm4554, %v4503, %v4505
        %v4559 = vsel %vm4554, %v4507, %v4509
        %v4560 = vsel %vm4554, %v4511, %v4513
        %v4561 = vsel %vm4554, %v4515, %v4517
        %v4562 = vsel %vm4554, %v4519, %v4521
        %v4563 = vsel %vm4554, %v4523, %v4525
        %v4564 = vsel %vm4554, %v4527, %v4529
        %v4565 = vsel %vm4554, %v4531, %v4533
        %v4566 = vsel %vm4554, %v4535, %v4537
        %v4567 = vsel %vm4554, %v4539, %v4541
        %v4568 = vsel %vm4554, %v4543, %v4545
        %v4569 = vsel %vm4554, %v4547, %v4549
        %v4570 = vsel %vm4554, %v4551, %v4553
        %v4603 = vsel %vm4554, %v4493, 0.0
        %v4604 = vsel %vm4554, %v4497, 0.0
        %v4605 = vsel %vm4554, %v4501, 0.0
        %v4606 = vsel %vm4554, %v4505, 0.0
        %v4607 = vsel %vm4554, %v4509, 0.0
        %v4608 = vsel %vm4554, %v4513, 0.0
        %v4609 = vsel %vm4554, %v4517, 0.0
        %v4610 = vsel %vm4554, %v4521, 0.0
        %v4611 = vsel %vm4554, %v4525, 0.0
        %v4612 = vsel %vm4554, %v4529, 0.0
        %v4613 = vsel %vm4554, %v4533, 0.0
        %v4614 = vsel %vm4554, %v4537, 0.0
        %v4615 = vsel %vm4554, %v4541, 0.0
        %v4616 = vsel %vm4554, %v4545, 0.0
        %v4617 = vsel %vm4554, %v4549, 0.0
        %v4618 = vsel %vm4554, %v4553, 0.0
        %v4619 = vsel %vm3076, %v4555, 0.0
        %v4620 = vsel %vm3077, %v4603, 0.0
        %v4621 = vsel %vm3076, %v4556, 0.0
        %v4622 = vsel %vm3077, %v4604, 0.0
        %v4623 = vsel %vm3076, %v4557, 0.0
        %v4624 = vsel %vm3077, %v4605, 0.0
        %v4625 = vsel %vm3076, %v4558, 0.0
        %v4626 = vsel %vm3077, %v4606, 0.0
        %v4627 = vsel %vm3076, %v4559, 0.0
        %v4628 = vsel %vm3077, %v4607, 0.0
        %v4629 = vsel %vm3076, %v4560, 0.0
        %v4630 = vsel %vm3077, %v4608, 0.0
        %v4631 = vsel %vm3076, %v4561, 0.0
        %v4632 = vsel %vm3077, %v4609, 0.0
        %v4633 = vsel %vm3076, %v4562, 0.0
        %v4634 = vsel %vm3077, %v4610, 0.0
        %v4635 = vsel %vm3076, %v4563, 0.0
        %v4636 = vsel %vm3077, %v4611, 0.0
        %v4637 = vsel %vm3076, %v4564, 0.0
        %v4638 = vsel %vm3077, %v4612, 0.0
        %v4639 = vsel %vm3076, %v4565, 0.0
        %v4640 = vsel %vm3077, %v4613, 0.0
        %v4641 = vsel %vm3076, %v4566, 0.0
        %v4642 = vsel %vm3077, %v4614, 0.0
        %v4643 = vsel %vm3076, %v4567, 0.0
        %v4644 = vsel %vm3077, %v4615, 0.0
        %v4645 = vsel %vm3076, %v4568, 0.0
        %v4646 = vsel %vm3077, %v4616, 0.0
        %v4647 = vsel %vm3076, %v4569, 0.0
        %v4648 = vsel %vm3077, %v4617, 0.0
        %v4649 = vsel %vm3076, %v4570, 0.0
        %v4650 = vsel %vm3077, %v4618, 0.0
        %4651 = vset.pattern.permute.xlu0 8
        %4652 = vperm.xlu0 %4651, %v2343
        %v4653 = vpop.permute.xlu0 %4652
        %4655 = vset.pattern.permute.xlu0 8
        %4656 = vperm.xlu0 %4655, %v2344
        %v4657 = vpop.permute.xlu0 %4656
        %4659 = vset.pattern.permute.xlu0 8
        %4660 = vperm.xlu0 %4659, %v2345
        %v4661 = vpop.permute.xlu0 %4660
        %4663 = vset.pattern.permute.xlu0 8
        %4664 = vperm.xlu0 %4663, %v2346
        %v4665 = vpop.permute.xlu0 %4664
        %4667 = vset.pattern.permute.xlu0 8
        %4668 = vperm.xlu0 %4667, %v2347
        %v4669 = vpop.permute.xlu0 %4668
        %4671 = vset.pattern.permute.xlu0 8
        %4672 = vperm.xlu0 %4671, %v2348
        %v4673 = vpop.permute.xlu0 %4672
        %4675 = vset.pattern.permute.xlu0 8
        %4676 = vperm.xlu0 %4675, %v2349
        %v4677 = vpop.permute.xlu0 %4676
        %4679 = vset.pattern.permute.xlu0 8
        %4680 = vperm.xlu0 %4679, %v2350
        %v4681 = vpop.permute.xlu0 %4680
        %4683 = vset.pattern.permute.xlu0 8
        %4684 = vperm.xlu0 %4683, %v2351
        %v4685 = vpop.permute.xlu0 %4684
        %4687 = vset.pattern.permute.xlu0 8
        %4688 = vperm.xlu0 %4687, %v2352
        %v4689 = vpop.permute.xlu0 %4688
        %4691 = vset.pattern.permute.xlu0 8
        %4692 = vperm.xlu0 %4691, %v2353
        %v4693 = vpop.permute.xlu0 %4692
        %4695 = vset.pattern.permute.xlu0 8
        %4696 = vperm.xlu0 %4695, %v2354
        %v4697 = vpop.permute.xlu0 %4696
        %4699 = vset.pattern.permute.xlu0 8
        %4700 = vperm.xlu0 %4699, %v2355
        %v4701 = vpop.permute.xlu0 %4700
        %4703 = vset.pattern.permute.xlu0 8
        %4704 = vperm.xlu0 %4703, %v2356
        %v4705 = vpop.permute.xlu0 %4704
        %4707 = vset.pattern.permute.xlu0 8
        %4708 = vperm.xlu0 %4707, %v2357
        %v4709 = vpop.permute.xlu0 %4708
        %4711 = vset.pattern.permute.xlu0 8
        %4712 = vperm.xlu0 %4711, %v2358
        %v4713 = vpop.permute.xlu0 %4712
        %v4715 = vmul.f32 %v4653, %v4619
        %v4716 = vmul.f32 %v4653, %v4620
        %v4717 = vmul.f32 %v4657, %v4621
        %v4718 = vmul.f32 %v4657, %v4622
        %v4719 = vmul.f32 %v4661, %v4623
        %v4720 = vmul.f32 %v4661, %v4624
        %v4721 = vmul.f32 %v4665, %v4625
        %v4722 = vmul.f32 %v4665, %v4626
        %v4723 = vmul.f32 %v4669, %v4627
        %v4724 = vmul.f32 %v4669, %v4628
        %v4725 = vmul.f32 %v4673, %v4629
        %v4726 = vmul.f32 %v4673, %v4630
        %v4727 = vmul.f32 %v4677, %v4631
        %v4728 = vmul.f32 %v4677, %v4632
        %v4729 = vmul.f32 %v4681, %v4633
        %v4730 = vmul.f32 %v4681, %v4634
        %v4731 = vmul.f32 %v4685, %v4635
        %v4732 = vmul.f32 %v4685, %v4636
        %v4733 = vmul.f32 %v4689, %v4637
        %v4734 = vmul.f32 %v4689, %v4638
        %v4735 = vmul.f32 %v4693, %v4639
        %v4736 = vmul.f32 %v4693, %v4640
        %v4737 = vmul.f32 %v4697, %v4641
        %v4738 = vmul.f32 %v4697, %v4642
        %v4739 = vmul.f32 %v4701, %v4643
        %v4740 = vmul.f32 %v4701, %v4644
        %v4741 = vmul.f32 %v4705, %v4645
        %v4742 = vmul.f32 %v4705, %v4646
        %v4743 = vmul.f32 %v4709, %v4647
        %v4744 = vmul.f32 %v4709, %v4648
        %v4745 = vmul.f32 %v4713, %v4649
        %v4746 = vmul.f32 %v4713, %v4650
        %v4747 = vadd.f32 %v4458, %v4715
        %v4748 = vadd.f32 %v4459, %v4716
        %v4749 = vadd.f32 %v4460, %v4717
        %v4750 = vadd.f32 %v4461, %v4718
        %v4751 = vadd.f32 %v4462, %v4719
        %v4752 = vadd.f32 %v4463, %v4720
        %v4753 = vadd.f32 %v4464, %v4721
        %v4754 = vadd.f32 %v4465, %v4722
        %v4755 = vadd.f32 %v4466, %v4723
        %v4756 = vadd.f32 %v4467, %v4724
        %v4757 = vadd.f32 %v4468, %v4725
        %v4758 = vadd.f32 %v4469, %v4726
        %v4759 = vadd.f32 %v4470, %v4727
        %v4760 = vadd.f32 %v4471, %v4728
        %v4761 = vadd.f32 %v4472, %v4729
        %v4762 = vadd.f32 %v4473, %v4730
        %v4763 = vadd.f32 %v4474, %v4731
        %v4764 = vadd.f32 %v4475, %v4732
        %v4765 = vadd.f32 %v4476, %v4733
        %v4766 = vadd.f32 %v4477, %v4734
        %v4767 = vadd.f32 %v4478, %v4735
        %v4768 = vadd.f32 %v4479, %v4736
        %v4769 = vadd.f32 %v4480, %v4737
        %v4770 = vadd.f32 %v4481, %v4738
        %v4771 = vadd.f32 %v4482, %v4739
        %v4772 = vadd.f32 %v4483, %v4740
        %v4773 = vadd.f32 %v4484, %v4741
        %v4774 = vadd.f32 %v4485, %v4742
        %v4775 = vadd.f32 %v4486, %v4743
        %v4776 = vadd.f32 %v4487, %v4744
        %v4777 = vadd.f32 %v4488, %v4745
        %v4778 = vadd.f32 %v4489, %v4746
        %4780 = vset.pattern.permute.xlu0 0
        %4781 = vperm.xlu0 %4780, %v2359
        %v4782 = vpop.permute.xlu0 %4781
        %4785 = vset.pattern.permute.xlu0 0
        %4786 = vperm.xlu0 %4785, %v2360
        %v4787 = vpop.permute.xlu0 %4786
        %4790 = vset.pattern.permute.xlu0 0
        %4791 = vperm.xlu0 %4790, %v2361
        %v4792 = vpop.permute.xlu0 %4791
        %4795 = vset.pattern.permute.xlu0 0
        %4796 = vperm.xlu0 %4795, %v2362
        %v4797 = vpop.permute.xlu0 %4796
        %4800 = vset.pattern.permute.xlu0 0
        %4801 = vperm.xlu0 %4800, %v2363
        %v4802 = vpop.permute.xlu0 %4801
        %4805 = vset.pattern.permute.xlu0 0
        %4806 = vperm.xlu0 %4805, %v2364
        %v4807 = vpop.permute.xlu0 %4806
        %4810 = vset.pattern.permute.xlu0 0
        %4811 = vperm.xlu0 %4810, %v2365
        %v4812 = vpop.permute.xlu0 %4811
        %4815 = vset.pattern.permute.xlu0 0
        %4816 = vperm.xlu0 %4815, %v2366
        %v4817 = vpop.permute.xlu0 %4816
        %4820 = vset.pattern.permute.xlu0 0
        %4821 = vperm.xlu0 %4820, %v2367
        %v4822 = vpop.permute.xlu0 %4821
        %4825 = vset.pattern.permute.xlu0 0
        %4826 = vperm.xlu0 %4825, %v2368
        %v4827 = vpop.permute.xlu0 %4826
        %4830 = vset.pattern.permute.xlu0 0
        %4831 = vperm.xlu0 %4830, %v2369
        %v4832 = vpop.permute.xlu0 %4831
        %4835 = vset.pattern.permute.xlu0 0
        %4836 = vperm.xlu0 %4835, %v2370
        %v4837 = vpop.permute.xlu0 %4836
        %4840 = vset.pattern.permute.xlu0 0
        %4841 = vperm.xlu0 %4840, %v2371
        %v4842 = vpop.permute.xlu0 %4841
        %4845 = vset.pattern.permute.xlu0 0
        %4846 = vperm.xlu0 %4845, %v2372
        %v4847 = vpop.permute.xlu0 %4846
        %4850 = vset.pattern.permute.xlu0 0
        %4851 = vperm.xlu0 %4850, %v2373
        %v4852 = vpop.permute.xlu0 %4851
        %4855 = vset.pattern.permute.xlu0 0
        %4856 = vperm.xlu0 %4855, %v2374
        %v4857 = vpop.permute.xlu0 %4856
        %v4859 = vadd.f32 %v4747, %v4782
        %v4860 = vadd.f32 %v4748, %v4782
        %v4861 = vadd.f32 %v4749, %v4787
        %v4862 = vadd.f32 %v4750, %v4787
        %v4863 = vadd.f32 %v4751, %v4792
        %v4864 = vadd.f32 %v4752, %v4792
        %v4865 = vadd.f32 %v4753, %v4797
        %v4866 = vadd.f32 %v4754, %v4797
        %v4867 = vadd.f32 %v4755, %v4802
        %v4868 = vadd.f32 %v4756, %v4802
        %v4869 = vadd.f32 %v4757, %v4807
        %v4870 = vadd.f32 %v4758, %v4807
        %v4871 = vadd.f32 %v4759, %v4812
        %v4872 = vadd.f32 %v4760, %v4812
        %v4873 = vadd.f32 %v4761, %v4817
        %v4874 = vadd.f32 %v4762, %v4817
        %v4875 = vadd.f32 %v4763, %v4822
        %v4876 = vadd.f32 %v4764, %v4822
        %v4877 = vadd.f32 %v4765, %v4827
        %v4878 = vadd.f32 %v4766, %v4827
        %v4879 = vadd.f32 %v4767, %v4832
        %v4880 = vadd.f32 %v4768, %v4832
        %v4881 = vadd.f32 %v4769, %v4837
        %v4882 = vadd.f32 %v4770, %v4837
        %v4883 = vadd.f32 %v4771, %v4842
        %v4884 = vadd.f32 %v4772, %v4842
        %v4885 = vadd.f32 %v4773, %v4847
        %v4886 = vadd.f32 %v4774, %v4847
        %v4887 = vadd.f32 %v4775, %v4852
        %v4888 = vadd.f32 %v4776, %v4852
        %v4889 = vadd.f32 %v4777, %v4857
        %v4890 = vadd.f32 %v4778, %v4857
        %v4891 = vadd.f32 %v4859, %v4875
        %v4892 = vadd.f32 %v4860, %v4876
        %v4893 = vadd.f32 %v4861, %v4877
        %v4894 = vadd.f32 %v4862, %v4878
        %v4895 = vadd.f32 %v4863, %v4879
        %v4896 = vadd.f32 %v4864, %v4880
        %v4897 = vadd.f32 %v4865, %v4881
        %v4898 = vadd.f32 %v4866, %v4882
        %v4899 = vadd.f32 %v4867, %v4883
        %v4900 = vadd.f32 %v4868, %v4884
        %v4901 = vadd.f32 %v4869, %v4885
        %v4902 = vadd.f32 %v4870, %v4886
        %v4903 = vadd.f32 %v4871, %v4887
        %v4904 = vadd.f32 %v4872, %v4888
        %v4905 = vadd.f32 %v4873, %v4889
        %v4906 = vadd.f32 %v4874, %v4890
        %v4907 = vadd.f32 %v4891, %v4892
        %4908 = vadd.xlane.f32.xlu0 %v4907
        %v4909 = vpop.xlane.xlu0 %4908
        %v4910 = vadd.f32 %v4893, %v4894
        %4911 = vadd.xlane.f32.xlu0 %v4910
        %v4912 = vpop.xlane.xlu0 %4911
        %v4913 = vadd.f32 %v4895, %v4896
        %4914 = vadd.xlane.f32.xlu0 %v4913
        %v4915 = vpop.xlane.xlu0 %4914
        %v4916 = vadd.f32 %v4897, %v4898
        %4917 = vadd.xlane.f32.xlu0 %v4916
        %v4918 = vpop.xlane.xlu0 %4917
        %v4919 = vadd.f32 %v4899, %v4900
        %4920 = vadd.xlane.f32.xlu0 %v4919
        %v4921 = vpop.xlane.xlu0 %4920
        %v4922 = vadd.f32 %v4901, %v4902
        %4923 = vadd.xlane.f32.xlu0 %v4922
        %v4924 = vpop.xlane.xlu0 %4923
        %v4925 = vadd.f32 %v4903, %v4904
        %4926 = vadd.xlane.f32.xlu0 %v4925
        %v4927 = vpop.xlane.xlu0 %4926
        %v4928 = vadd.f32 %v4905, %v4906
        %4929 = vadd.xlane.f32.xlu0 %v4928
        %v4930 = vpop.xlane.xlu0 %4929
        %v4931 = vadd.f32 %v4909, %v4912
        %v4932 = vadd.f32 %v4931, %v4915
        %v4933 = vadd.f32 %v4932, %v4918
        %v4934 = vadd.f32 %v4933, %v4921
        %v4935 = vadd.f32 %v4934, %v4924
        %v4936 = vadd.f32 %v4935, %v4927
        %v4937 = vadd.f32 %v4936, %v4930
        %v4938 = vrot.slane %v4937, 4
        %v4939 = vadd.f32 %v4937, %v4938
        %v4940 = vrot.slane %v4939, 2
        %v4941 = vadd.f32 %v4939, %v4940
        %v4942 = vrot.slane %v4941, 1
        %v4943 = vadd.f32 %v4941, %v4942
        %v4944 = vmul.f32 %v4891, %v4891
        %v4945 = vmul.f32 %v4892, %v4892
        %v4946 = vmul.f32 %v4893, %v4893
        %v4947 = vmul.f32 %v4894, %v4894
        %v4948 = vmul.f32 %v4895, %v4895
        %v4949 = vmul.f32 %v4896, %v4896
        %v4950 = vmul.f32 %v4897, %v4897
        %v4951 = vmul.f32 %v4898, %v4898
        %v4952 = vmul.f32 %v4899, %v4899
        %v4953 = vmul.f32 %v4900, %v4900
        %v4954 = vmul.f32 %v4901, %v4901
        %v4955 = vmul.f32 %v4902, %v4902
        %v4956 = vmul.f32 %v4903, %v4903
        %v4957 = vmul.f32 %v4904, %v4904
        %v4958 = vmul.f32 %v4905, %v4905
        %v4959 = vmul.f32 %v4906, %v4906
        %v4960 = vadd.f32 %v4944, %v4945
        %4961 = vadd.xlane.f32.xlu0 %v4960
        %v4962 = vpop.xlane.xlu0 %4961
        %v4963 = vadd.f32 %v4946, %v4947
        %4964 = vadd.xlane.f32.xlu0 %v4963
        %v4965 = vpop.xlane.xlu0 %4964
        %v4966 = vadd.f32 %v4948, %v4949
        %4967 = vadd.xlane.f32.xlu0 %v4966
        %v4968 = vpop.xlane.xlu0 %4967
        %v4969 = vadd.f32 %v4950, %v4951
        %4970 = vadd.xlane.f32.xlu0 %v4969
        %v4971 = vpop.xlane.xlu0 %4970
        %v4972 = vadd.f32 %v4952, %v4953
        %4973 = vadd.xlane.f32.xlu0 %v4972
        %v4974 = vpop.xlane.xlu0 %4973
        %v4975 = vadd.f32 %v4954, %v4955
        %4976 = vadd.xlane.f32.xlu0 %v4975
        %v4977 = vpop.xlane.xlu0 %4976
        %v4978 = vadd.f32 %v4956, %v4957
        %4979 = vadd.xlane.f32.xlu0 %v4978
        %v4980 = vpop.xlane.xlu0 %4979
        %v4981 = vadd.f32 %v4958, %v4959
        %4982 = vadd.xlane.f32.xlu0 %v4981
        %v4983 = vpop.xlane.xlu0 %4982
        %v4984 = vadd.f32 %v4962, %v4965
        %v4985 = vadd.f32 %v4984, %v4968
        %v4986 = vadd.f32 %v4985, %v4971
        %v4987 = vadd.f32 %v4986, %v4974
        %v4988 = vadd.f32 %v4987, %v4977
        %v4989 = vadd.f32 %v4988, %v4980
        %v4990 = vadd.f32 %v4989, %v4983
        %v4991 = vrot.slane %v4990, 4
        %v4992 = vadd.f32 %v4990, %v4991
        %v4993 = vrot.slane %v4992, 2
        %v4994 = vadd.f32 %v4992, %v4993
        %v4995 = vrot.slane %v4994, 1
        %v4996 = vadd.f32 %v4994, %v4995
        %v4997 = vrcp.pop 16384.0
        %v4998 = vmul.f32 16384.0, %v4997
        %v4999 = vsub.f32 1.0, %v4998
        %v5000 = vmul.f32 %v4997, %v4999
        %v5001 = vadd.f32 %v4997, %v5000
        %vm5002 = vweird.f32 %v4997
        %v5003 = vsel %vm5002, %v4997, %v5001
        %v5004 = vmul.f32 %v4943, %v5003
        %v5005 = vmul.f32 %v4996, %v5003
        %v5006 = vmul.f32 %v5004, %v5004
        %v5007 = vsub.f32 %v5005, %v5006
        %v5008 = vadd.f32 %v5007, 1e-05
        %v5009 = vrsqrt.pop %v5008
        %v5010 = vmul.f32 %v5009, %v5008
        %v5011 = vmul.f32 %v5010, %v5009
        %v5012 = vmul.f32 0.5, %v5011
        %v5013 = vsub.f32 1.5, %v5012
        %v5014 = vmul.f32 %v5009, %v5013
        %vm5015 = vweird.f32 %v5008
        %vm5016 = vweird.f32 %v5009
        %vm5017 = vmor %vm5015, %vm5016
        %v5018 = vsel %vm5017, %v5009, %v5014
        %v5019 = vsub.f32 %v4891, %v5004
        %v5020 = vsub.f32 %v4892, %v5004
        %v5021 = vsub.f32 %v4893, %v5004
        %v5022 = vsub.f32 %v4894, %v5004
        %v5023 = vsub.f32 %v4895, %v5004
        %v5024 = vsub.f32 %v4896, %v5004
        %v5025 = vsub.f32 %v4897, %v5004
        %v5026 = vsub.f32 %v4898, %v5004
        %v5027 = vsub.f32 %v4899, %v5004
        %v5028 = vsub.f32 %v4900, %v5004
        %v5029 = vsub.f32 %v4901, %v5004
        %v5030 = vsub.f32 %v4902, %v5004
        %v5031 = vsub.f32 %v4903, %v5004
        %v5032 = vsub.f32 %v4904, %v5004
        %v5033 = vsub.f32 %v4905, %v5004
        %v5034 = vsub.f32 %v4906, %v5004
        %v5035 = vmul.f32 %v5019, %v5018
        %v5036 = vmul.f32 %v5020, %v5018
        %v5037 = vmul.f32 %v5021, %v5018
        %v5038 = vmul.f32 %v5022, %v5018
        %v5039 = vmul.f32 %v5023, %v5018
        %v5040 = vmul.f32 %v5024, %v5018
        %v5041 = vmul.f32 %v5025, %v5018
        %v5042 = vmul.f32 %v5026, %v5018
        %v5043 = vmul.f32 %v5027, %v5018
        %v5044 = vmul.f32 %v5028, %v5018
        %v5045 = vmul.f32 %v5029, %v5018
        %v5046 = vmul.f32 %v5030, %v5018
        %v5047 = vmul.f32 %v5031, %v5018
        %v5048 = vmul.f32 %v5032, %v5018
        %v5049 = vmul.f32 %v5033, %v5018
        %v5050 = vmul.f32 %v5034, %v5018
        %v5051 = vld [vmem:[%s8] sm:$0xff]
        %v5052 = vld [vmem:[%s8 + $0x8] sm:$0xff]
        %v5053 = vld [vmem:[%s8 + $0x10] sm:$0xff]
        %v5054 = vld [vmem:[%s8 + $0x18] sm:$0xff]
        %v5055 = vld [vmem:[%s8 + $0x20] sm:$0xff]
        %v5056 = vld [vmem:[%s8 + $0x28] sm:$0xff]
        %v5057 = vld [vmem:[%s8 + $0x30] sm:$0xff]
        %v5058 = vld [vmem:[%s8 + $0x38] sm:$0xff]
        %5060 = vset.pattern.permute.xlu0 0
        %5061 = vperm.xlu0 %5060, %v5051
        %v5062 = vpop.permute.xlu0 %5061
        %5065 = vset.pattern.permute.xlu0 0
        %5066 = vperm.xlu0 %5065, %v5052
        %v5067 = vpop.permute.xlu0 %5066
        %5070 = vset.pattern.permute.xlu0 0
        %5071 = vperm.xlu0 %5070, %v5053
        %v5072 = vpop.permute.xlu0 %5071
        %5075 = vset.pattern.permute.xlu0 0
        %5076 = vperm.xlu0 %5075, %v5054
        %v5077 = vpop.permute.xlu0 %5076
        %5080 = vset.pattern.permute.xlu0 0
        %5081 = vperm.xlu0 %5080, %v5055
        %v5082 = vpop.permute.xlu0 %5081
        %5085 = vset.pattern.permute.xlu0 0
        %5086 = vperm.xlu0 %5085, %v5056
        %v5087 = vpop.permute.xlu0 %5086
        %5090 = vset.pattern.permute.xlu0 0
        %5091 = vperm.xlu0 %5090, %v5057
        %v5092 = vpop.permute.xlu0 %5091
        %5095 = vset.pattern.permute.xlu0 0
        %5096 = vperm.xlu0 %5095, %v5058
        %v5097 = vpop.permute.xlu0 %5096
        %v5099 = vmul.f32 %v5035, %v5062
        %v5100 = vmul.f32 %v5036, %v5062
        %v5101 = vmul.f32 %v5037, %v5067
        %v5102 = vmul.f32 %v5038, %v5067
        %v5103 = vmul.f32 %v5039, %v5072
        %v5104 = vmul.f32 %v5040, %v5072
        %v5105 = vmul.f32 %v5041, %v5077
        %v5106 = vmul.f32 %v5042, %v5077
        %v5107 = vmul.f32 %v5043, %v5082
        %v5108 = vmul.f32 %v5044, %v5082
        %v5109 = vmul.f32 %v5045, %v5087
        %v5110 = vmul.f32 %v5046, %v5087
        %v5111 = vmul.f32 %v5047, %v5092
        %v5112 = vmul.f32 %v5048, %v5092
        %v5113 = vmul.f32 %v5049, %v5097
        %v5114 = vmul.f32 %v5050, %v5097
        %v5115 = vld [vmem:[%s9] sm:$0xff]
        %v5116 = vld [vmem:[%s9 + $0x8] sm:$0xff]
        %v5117 = vld [vmem:[%s9 + $0x10] sm:$0xff]
        %v5118 = vld [vmem:[%s9 + $0x18] sm:$0xff]
        %v5119 = vld [vmem:[%s9 + $0x20] sm:$0xff]
        %v5120 = vld [vmem:[%s9 + $0x28] sm:$0xff]
        %v5121 = vld [vmem:[%s9 + $0x30] sm:$0xff]
        %v5122 = vld [vmem:[%s9 + $0x38] sm:$0xff]
        %5124 = vset.pattern.permute.xlu0 0
        %5125 = vperm.xlu0 %5124, %v5115
        %v5126 = vpop.permute.xlu0 %5125
        %5129 = vset.pattern.permute.xlu0 0
        %5130 = vperm.xlu0 %5129, %v5116
        %v5131 = vpop.permute.xlu0 %5130
        %5134 = vset.pattern.permute.xlu0 0
        %5135 = vperm.xlu0 %5134, %v5117
        %v5136 = vpop.permute.xlu0 %5135
        %5139 = vset.pattern.permute.xlu0 0
        %5140 = vperm.xlu0 %5139, %v5118
        %v5141 = vpop.permute.xlu0 %5140
        %5144 = vset.pattern.permute.xlu0 0
        %5145 = vperm.xlu0 %5144, %v5119
        %v5146 = vpop.permute.xlu0 %5145
        %5149 = vset.pattern.permute.xlu0 0
        %5150 = vperm.xlu0 %5149, %v5120
        %v5151 = vpop.permute.xlu0 %5150
        %5154 = vset.pattern.permute.xlu0 0
        %5155 = vperm.xlu0 %5154, %v5121
        %v5156 = vpop.permute.xlu0 %5155
        %5159 = vset.pattern.permute.xlu0 0
        %5160 = vperm.xlu0 %5159, %v5122
        %v5161 = vpop.permute.xlu0 %5160
        %v5163 = vadd.f32 %v5099, %v5126
        %v5164 = vadd.f32 %v5100, %v5126
        %v5165 = vadd.f32 %v5101, %v5131
        %v5166 = vadd.f32 %v5102, %v5131
        %v5167 = vadd.f32 %v5103, %v5136
        %v5168 = vadd.f32 %v5104, %v5136
        %v5169 = vadd.f32 %v5105, %v5141
        %v5170 = vadd.f32 %v5106, %v5141
        %v5171 = vadd.f32 %v5107, %v5146
        %v5172 = vadd.f32 %v5108, %v5146
        %v5173 = vadd.f32 %v5109, %v5151
        %v5174 = vadd.f32 %v5110, %v5151
        %v5175 = vadd.f32 %v5111, %v5156
        %v5176 = vadd.f32 %v5112, %v5156
        %v5177 = vadd.f32 %v5113, %v5161
        %v5178 = vadd.f32 %v5114, %v5161
        %v5179 = vld [vmem:[%s6] sm:$0xff]
        %v5180 = vld [vmem:[%s6 + $0x8] sm:$0xff]
        %v5181 = vld [vmem:[%s6 + $0x10] sm:$0xff]
        %v5182 = vld [vmem:[%s6 + $0x18] sm:$0xff]
        %v5183 = vld [vmem:[%s6 + $0x20] sm:$0xff]
        %v5184 = vld [vmem:[%s6 + $0x28] sm:$0xff]
        %v5185 = vld [vmem:[%s6 + $0x30] sm:$0xff]
        %v5186 = vld [vmem:[%s6 + $0x38] sm:$0xff]
        %v5187 = vld [vmem:[%s7] sm:$0xff]
        %v5188 = vld [vmem:[%s7 + $0x8] sm:$0xff]
        %v5189 = vld [vmem:[%s7 + $0x10] sm:$0xff]
        %v5190 = vld [vmem:[%s7 + $0x18] sm:$0xff]
        %v5191 = vld [vmem:[%s7 + $0x20] sm:$0xff]
        %v5192 = vld [vmem:[%s7 + $0x28] sm:$0xff]
        %v5193 = vld [vmem:[%s7 + $0x30] sm:$0xff]
        %v5194 = vld [vmem:[%s7 + $0x38] sm:$0xff]
        %5211 = vrot.lane.b32.xlu0 %v5163, 17
        %v5212 = vpop.permute.xlu0 %5211
        %5213 = vrot.lane.b32.xlu0 %v5164, 17
        %v5214 = vpop.permute.xlu0 %5213
        %5215 = vrot.lane.b32.xlu0 %v5165, 17
        %v5216 = vpop.permute.xlu0 %5215
        %5217 = vrot.lane.b32.xlu0 %v5166, 17
        %v5218 = vpop.permute.xlu0 %5217
        %5219 = vrot.lane.b32.xlu0 %v5167, 17
        %v5220 = vpop.permute.xlu0 %5219
        %5221 = vrot.lane.b32.xlu0 %v5168, 17
        %v5222 = vpop.permute.xlu0 %5221
        %5223 = vrot.lane.b32.xlu0 %v5169, 17
        %v5224 = vpop.permute.xlu0 %5223
        %5225 = vrot.lane.b32.xlu0 %v5170, 17
        %v5226 = vpop.permute.xlu0 %5225
        %5227 = vrot.lane.b32.xlu0 %v5171, 17
        %v5228 = vpop.permute.xlu0 %5227
        %5229 = vrot.lane.b32.xlu0 %v5172, 17
        %v5230 = vpop.permute.xlu0 %5229
        %5231 = vrot.lane.b32.xlu0 %v5173, 17
        %v5232 = vpop.permute.xlu0 %5231
        %5233 = vrot.lane.b32.xlu0 %v5174, 17
        %v5234 = vpop.permute.xlu0 %5233
        %5235 = vrot.lane.b32.xlu0 %v5175, 17
        %v5236 = vpop.permute.xlu0 %5235
        %5237 = vrot.lane.b32.xlu0 %v5176, 17
        %v5238 = vpop.permute.xlu0 %5237
        %5239 = vrot.lane.b32.xlu0 %v5177, 17
        %v5240 = vpop.permute.xlu0 %5239
        %5241 = vrot.lane.b32.xlu0 %v5178, 17
        %v5242 = vpop.permute.xlu0 %5241
        %v5243 = vsel %vm2471, %v5212, %v5214
        %v5244 = vsel %vm2471, %v5216, %v5218
        %v5245 = vsel %vm2471, %v5220, %v5222
        %v5246 = vsel %vm2471, %v5224, %v5226
        %v5247 = vsel %vm2471, %v5228, %v5230
        %v5248 = vsel %vm2471, %v5232, %v5234
        %v5249 = vsel %vm2471, %v5236, %v5238
        %v5250 = vsel %vm2471, %v5240, %v5242
        %v5267 = vsel %vm2471, 0.0, %v5212
        %v5268 = vsel %vm2471, 0.0, %v5216
        %v5269 = vsel %vm2471, 0.0, %v5220
        %v5270 = vsel %vm2471, 0.0, %v5224
        %v5271 = vsel %vm2471, 0.0, %v5228
        %v5272 = vsel %vm2471, 0.0, %v5232
        %v5273 = vsel %vm2471, 0.0, %v5236
        %v5274 = vsel %vm2471, 0.0, %v5240
        %v5275 = vsel %vm2540, %v5267, 0.0
        %v5276 = vsel %vm2541, %v5243, 0.0
        %v5277 = vsel %vm2540, %v5268, 0.0
        %v5278 = vsel %vm2541, %v5244, 0.0
        %v5279 = vsel %vm2540, %v5269, 0.0
        %v5280 = vsel %vm2541, %v5245, 0.0
        %v5281 = vsel %vm2540, %v5270, 0.0
        %v5282 = vsel %vm2541, %v5246, 0.0
        %v5283 = vsel %vm2540, %v5271, 0.0
        %v5284 = vsel %vm2541, %v5247, 0.0
        %v5285 = vsel %vm2540, %v5272, 0.0
        %v5286 = vsel %vm2541, %v5248, 0.0
        %v5287 = vsel %vm2540, %v5273, 0.0
        %v5288 = vsel %vm2541, %v5249, 0.0
        %v5289 = vsel %vm2540, %v5274, 0.0
        %v5290 = vsel %vm2541, %v5250, 0.0
        %5292 = vset.pattern.permute.xlu0 0
        %5293 = vperm.xlu0 %5292, %v5179
        %v5294 = vpop.permute.xlu0 %5293
        %5297 = vset.pattern.permute.xlu0 0
        %5298 = vperm.xlu0 %5297, %v5180
        %v5299 = vpop.permute.xlu0 %5298
        %5302 = vset.pattern.permute.xlu0 0
        %5303 = vperm.xlu0 %5302, %v5181
        %v5304 = vpop.permute.xlu0 %5303
        %5307 = vset.pattern.permute.xlu0 0
        %5308 = vperm.xlu0 %5307, %v5182
        %v5309 = vpop.permute.xlu0 %5308
        %5312 = vset.pattern.permute.xlu0 0
        %5313 = vperm.xlu0 %5312, %v5183
        %v5314 = vpop.permute.xlu0 %5313
        %5317 = vset.pattern.permute.xlu0 0
        %5318 = vperm.xlu0 %5317, %v5184
        %v5319 = vpop.permute.xlu0 %5318
        %5322 = vset.pattern.permute.xlu0 0
        %5323 = vperm.xlu0 %5322, %v5185
        %v5324 = vpop.permute.xlu0 %5323
        %5327 = vset.pattern.permute.xlu0 0
        %5328 = vperm.xlu0 %5327, %v5186
        %v5329 = vpop.permute.xlu0 %5328
        %v5331 = vmul.f32 %v5294, %v5275
        %v5332 = vmul.f32 %v5294, %v5276
        %v5333 = vmul.f32 %v5299, %v5277
        %v5334 = vmul.f32 %v5299, %v5278
        %v5335 = vmul.f32 %v5304, %v5279
        %v5336 = vmul.f32 %v5304, %v5280
        %v5337 = vmul.f32 %v5309, %v5281
        %v5338 = vmul.f32 %v5309, %v5282
        %v5339 = vmul.f32 %v5314, %v5283
        %v5340 = vmul.f32 %v5314, %v5284
        %v5341 = vmul.f32 %v5319, %v5285
        %v5342 = vmul.f32 %v5319, %v5286
        %v5343 = vmul.f32 %v5324, %v5287
        %v5344 = vmul.f32 %v5324, %v5288
        %v5345 = vmul.f32 %v5329, %v5289
        %v5346 = vmul.f32 %v5329, %v5290
        %5347 = vrot.lane.b32.xlu0 %v5163, 16
        %v5348 = vpop.permute.xlu0 %5347
        %5349 = vrot.lane.b32.xlu0 %v5164, 16
        %v5350 = vpop.permute.xlu0 %5349
        %5351 = vrot.lane.b32.xlu0 %v5165, 16
        %v5352 = vpop.permute.xlu0 %5351
        %5353 = vrot.lane.b32.xlu0 %v5166, 16
        %v5354 = vpop.permute.xlu0 %5353
        %5355 = vrot.lane.b32.xlu0 %v5167, 16
        %v5356 = vpop.permute.xlu0 %5355
        %5357 = vrot.lane.b32.xlu0 %v5168, 16
        %v5358 = vpop.permute.xlu0 %5357
        %5359 = vrot.lane.b32.xlu0 %v5169, 16
        %v5360 = vpop.permute.xlu0 %5359
        %5361 = vrot.lane.b32.xlu0 %v5170, 16
        %v5362 = vpop.permute.xlu0 %5361
        %5363 = vrot.lane.b32.xlu0 %v5171, 16
        %v5364 = vpop.permute.xlu0 %5363
        %5365 = vrot.lane.b32.xlu0 %v5172, 16
        %v5366 = vpop.permute.xlu0 %5365
        %5367 = vrot.lane.b32.xlu0 %v5173, 16
        %v5368 = vpop.permute.xlu0 %5367
        %5369 = vrot.lane.b32.xlu0 %v5174, 16
        %v5370 = vpop.permute.xlu0 %5369
        %5371 = vrot.lane.b32.xlu0 %v5175, 16
        %v5372 = vpop.permute.xlu0 %5371
        %5373 = vrot.lane.b32.xlu0 %v5176, 16
        %v5374 = vpop.permute.xlu0 %5373
        %5375 = vrot.lane.b32.xlu0 %v5177, 16
        %v5376 = vpop.permute.xlu0 %5375
        %5377 = vrot.lane.b32.xlu0 %v5178, 16
        %v5378 = vpop.permute.xlu0 %5377
        %v5379 = vsel %vm2750, %v5348, %v5350
        %v5380 = vsel %vm2750, %v5352, %v5354
        %v5381 = vsel %vm2750, %v5356, %v5358
        %v5382 = vsel %vm2750, %v5360, %v5362
        %v5383 = vsel %vm2750, %v5364, %v5366
        %v5384 = vsel %vm2750, %v5368, %v5370
        %v5385 = vsel %vm2750, %v5372, %v5374
        %v5386 = vsel %vm2750, %v5376, %v5378
        %v5403 = vsel %vm2750, 0.0, %v5348
        %v5404 = vsel %vm2750, 0.0, %v5352
        %v5405 = vsel %vm2750, 0.0, %v5356
        %v5406 = vsel %vm2750, 0.0, %v5360
        %v5407 = vsel %vm2750, 0.0, %v5364
        %v5408 = vsel %vm2750, 0.0, %v5368
        %v5409 = vsel %vm2750, 0.0, %v5372
        %v5410 = vsel %vm2750, 0.0, %v5376
        %5411 = vset.pattern.permute.xlu0 1
        %5412 = vperm.xlu0 %5411, %v5179
        %v5413 = vpop.permute.xlu0 %5412
        %5415 = vset.pattern.permute.xlu0 1
        %5416 = vperm.xlu0 %5415, %v5180
        %v5417 = vpop.permute.xlu0 %5416
        %5419 = vset.pattern.permute.xlu0 1
        %5420 = vperm.xlu0 %5419, %v5181
        %v5421 = vpop.permute.xlu0 %5420
        %5423 = vset.pattern.permute.xlu0 1
        %5424 = vperm.xlu0 %5423, %v5182
        %v5425 = vpop.permute.xlu0 %5424
        %5427 = vset.pattern.permute.xlu0 1
        %5428 = vperm.xlu0 %5427, %v5183
        %v5429 = vpop.permute.xlu0 %5428
        %5431 = vset.pattern.permute.xlu0 1
        %5432 = vperm.xlu0 %5431, %v5184
        %v5433 = vpop.permute.xlu0 %5432
        %5435 = vset.pattern.permute.xlu0 1
        %5436 = vperm.xlu0 %5435, %v5185
        %v5437 = vpop.permute.xlu0 %5436
        %5439 = vset.pattern.permute.xlu0 1
        %5440 = vperm.xlu0 %5439, %v5186
        %v5441 = vpop.permute.xlu0 %5440
        %v5443 = vmul.f32 %v5413, %v5403
        %v5444 = vmul.f32 %v5413, %v5379
        %v5445 = vmul.f32 %v5417, %v5404
        %v5446 = vmul.f32 %v5417, %v5380
        %v5447 = vmul.f32 %v5421, %v5405
        %v5448 = vmul.f32 %v5421, %v5381
        %v5449 = vmul.f32 %v5425, %v5406
        %v5450 = vmul.f32 %v5425, %v5382
        %v5451 = vmul.f32 %v5429, %v5407
        %v5452 = vmul.f32 %v5429, %v5383
        %v5453 = vmul.f32 %v5433, %v5408
        %v5454 = vmul.f32 %v5433, %v5384
        %v5455 = vmul.f32 %v5437, %v5409
        %v5456 = vmul.f32 %v5437, %v5385
        %v5457 = vmul.f32 %v5441, %v5410
        %v5458 = vmul.f32 %v5441, %v5386
        %v5459 = vadd.f32 %v5331, %v5443
        %v5460 = vadd.f32 %v5332, %v5444
        %v5461 = vadd.f32 %v5333, %v5445
        %v5462 = vadd.f32 %v5334, %v5446
        %v5463 = vadd.f32 %v5335, %v5447
        %v5464 = vadd.f32 %v5336, %v5448
        %v5465 = vadd.f32 %v5337, %v5449
        %v5466 = vadd.f32 %v5338, %v5450
        %v5467 = vadd.f32 %v5339, %v5451
        %v5468 = vadd.f32 %v5340, %v5452
        %v5469 = vadd.f32 %v5341, %v5453
        %v5470 = vadd.f32 %v5342, %v5454
        %v5471 = vadd.f32 %v5343, %v5455
        %v5472 = vadd.f32 %v5344, %v5456
        %v5473 = vadd.f32 %v5345, %v5457
        %v5474 = vadd.f32 %v5346, %v5458
        %5475 = vrot.lane.b32.xlu0 %v5163, 15
        %v5476 = vpop.permute.xlu0 %5475
        %5477 = vrot.lane.b32.xlu0 %v5164, 15
        %v5478 = vpop.permute.xlu0 %5477
        %5479 = vrot.lane.b32.xlu0 %v5165, 15
        %v5480 = vpop.permute.xlu0 %5479
        %5481 = vrot.lane.b32.xlu0 %v5166, 15
        %v5482 = vpop.permute.xlu0 %5481
        %5483 = vrot.lane.b32.xlu0 %v5167, 15
        %v5484 = vpop.permute.xlu0 %5483
        %5485 = vrot.lane.b32.xlu0 %v5168, 15
        %v5486 = vpop.permute.xlu0 %5485
        %5487 = vrot.lane.b32.xlu0 %v5169, 15
        %v5488 = vpop.permute.xlu0 %5487
        %5489 = vrot.lane.b32.xlu0 %v5170, 15
        %v5490 = vpop.permute.xlu0 %5489
        %5491 = vrot.lane.b32.xlu0 %v5171, 15
        %v5492 = vpop.permute.xlu0 %5491
        %5493 = vrot.lane.b32.xlu0 %v5172, 15
        %v5494 = vpop.permute.xlu0 %5493
        %5495 = vrot.lane.b32.xlu0 %v5173, 15
        %v5496 = vpop.permute.xlu0 %5495
        %5497 = vrot.lane.b32.xlu0 %v5174, 15
        %v5498 = vpop.permute.xlu0 %5497
        %5499 = vrot.lane.b32.xlu0 %v5175, 15
        %v5500 = vpop.permute.xlu0 %5499
        %5501 = vrot.lane.b32.xlu0 %v5176, 15
        %v5502 = vpop.permute.xlu0 %5501
        %5503 = vrot.lane.b32.xlu0 %v5177, 15
        %v5504 = vpop.permute.xlu0 %5503
        %5505 = vrot.lane.b32.xlu0 %v5178, 15
        %v5506 = vpop.permute.xlu0 %5505
        %v5507 = vsel %vm3007, %v5476, %v5478
        %v5508 = vsel %vm3007, %v5480, %v5482
        %v5509 = vsel %vm3007, %v5484, %v5486
        %v5510 = vsel %vm3007, %v5488, %v5490
        %v5511 = vsel %vm3007, %v5492, %v5494
        %v5512 = vsel %vm3007, %v5496, %v5498
        %v5513 = vsel %vm3007, %v5500, %v5502
        %v5514 = vsel %vm3007, %v5504, %v5506
        %v5531 = vsel %vm3007, 0.0, %v5476
        %v5532 = vsel %vm3007, 0.0, %v5480
        %v5533 = vsel %vm3007, 0.0, %v5484
        %v5534 = vsel %vm3007, 0.0, %v5488
        %v5535 = vsel %vm3007, 0.0, %v5492
        %v5536 = vsel %vm3007, 0.0, %v5496
        %v5537 = vsel %vm3007, 0.0, %v5500
        %v5538 = vsel %vm3007, 0.0, %v5504
        %v5539 = vsel %vm3076, %v5531, 0.0
        %v5540 = vsel %vm3077, %v5507, 0.0
        %v5541 = vsel %vm3076, %v5532, 0.0
        %v5542 = vsel %vm3077, %v5508, 0.0
        %v5543 = vsel %vm3076, %v5533, 0.0
        %v5544 = vsel %vm3077, %v5509, 0.0
        %v5545 = vsel %vm3076, %v5534, 0.0
        %v5546 = vsel %vm3077, %v5510, 0.0
        %v5547 = vsel %vm3076, %v5535, 0.0
        %v5548 = vsel %vm3077, %v5511, 0.0
        %v5549 = vsel %vm3076, %v5536, 0.0
        %v5550 = vsel %vm3077, %v5512, 0.0
        %v5551 = vsel %vm3076, %v5537, 0.0
        %v5552 = vsel %vm3077, %v5513, 0.0
        %v5553 = vsel %vm3076, %v5538, 0.0
        %v5554 = vsel %vm3077, %v5514, 0.0
        %5555 = vset.pattern.permute.xlu0 2
        %5556 = vperm.xlu0 %5555, %v5179
        %v5557 = vpop.permute.xlu0 %5556
        %5559 = vset.pattern.permute.xlu0 2
        %5560 = vperm.xlu0 %5559, %v5180
        %v5561 = vpop.permute.xlu0 %5560
        %5563 = vset.pattern.permute.xlu0 2
        %5564 = vperm.xlu0 %5563, %v5181
        %v5565 = vpop.permute.xlu0 %5564
        %5567 = vset.pattern.permute.xlu0 2
        %5568 = vperm.xlu0 %5567, %v5182
        %v5569 = vpop.permute.xlu0 %5568
        %5571 = vset.pattern.permute.xlu0 2
        %5572 = vperm.xlu0 %5571, %v5183
        %v5573 = vpop.permute.xlu0 %5572
        %5575 = vset.pattern.permute.xlu0 2
        %5576 = vperm.xlu0 %5575, %v5184
        %v5577 = vpop.permute.xlu0 %5576
        %5579 = vset.pattern.permute.xlu0 2
        %5580 = vperm.xlu0 %5579, %v5185
        %v5581 = vpop.permute.xlu0 %5580
        %5583 = vset.pattern.permute.xlu0 2
        %5584 = vperm.xlu0 %5583, %v5186
        %v5585 = vpop.permute.xlu0 %5584
        %v5587 = vmul.f32 %v5557, %v5539
        %v5588 = vmul.f32 %v5557, %v5540
        %v5589 = vmul.f32 %v5561, %v5541
        %v5590 = vmul.f32 %v5561, %v5542
        %v5591 = vmul.f32 %v5565, %v5543
        %v5592 = vmul.f32 %v5565, %v5544
        %v5593 = vmul.f32 %v5569, %v5545
        %v5594 = vmul.f32 %v5569, %v5546
        %v5595 = vmul.f32 %v5573, %v5547
        %v5596 = vmul.f32 %v5573, %v5548
        %v5597 = vmul.f32 %v5577, %v5549
        %v5598 = vmul.f32 %v5577, %v5550
        %v5599 = vmul.f32 %v5581, %v5551
        %v5600 = vmul.f32 %v5581, %v5552
        %v5601 = vmul.f32 %v5585, %v5553
        %v5602 = vmul.f32 %v5585, %v5554
        %v5603 = vadd.f32 %v5459, %v5587
        %v5604 = vadd.f32 %v5460, %v5588
        %v5605 = vadd.f32 %v5461, %v5589
        %v5606 = vadd.f32 %v5462, %v5590
        %v5607 = vadd.f32 %v5463, %v5591
        %v5608 = vadd.f32 %v5464, %v5592
        %v5609 = vadd.f32 %v5465, %v5593
        %v5610 = vadd.f32 %v5466, %v5594
        %v5611 = vadd.f32 %v5467, %v5595
        %v5612 = vadd.f32 %v5468, %v5596
        %v5613 = vadd.f32 %v5469, %v5597
        %v5614 = vadd.f32 %v5470, %v5598
        %v5615 = vadd.f32 %v5471, %v5599
        %v5616 = vadd.f32 %v5472, %v5600
        %v5617 = vadd.f32 %v5473, %v5601
        %v5618 = vadd.f32 %v5474, %v5602
        %5619 = vrot.lane.b32.xlu0 %v5163, 1
        %v5620 = vpop.permute.xlu0 %5619
        %5621 = vrot.lane.b32.xlu0 %v5164, 1
        %v5622 = vpop.permute.xlu0 %5621
        %5623 = vrot.lane.b32.xlu0 %v5165, 1
        %v5624 = vpop.permute.xlu0 %5623
        %5625 = vrot.lane.b32.xlu0 %v5166, 1
        %v5626 = vpop.permute.xlu0 %5625
        %5627 = vrot.lane.b32.xlu0 %v5167, 1
        %v5628 = vpop.permute.xlu0 %5627
        %5629 = vrot.lane.b32.xlu0 %v5168, 1
        %v5630 = vpop.permute.xlu0 %5629
        %5631 = vrot.lane.b32.xlu0 %v5169, 1
        %v5632 = vpop.permute.xlu0 %5631
        %5633 = vrot.lane.b32.xlu0 %v5170, 1
        %v5634 = vpop.permute.xlu0 %5633
        %5635 = vrot.lane.b32.xlu0 %v5171, 1
        %v5636 = vpop.permute.xlu0 %5635
        %5637 = vrot.lane.b32.xlu0 %v5172, 1
        %v5638 = vpop.permute.xlu0 %5637
        %5639 = vrot.lane.b32.xlu0 %v5173, 1
        %v5640 = vpop.permute.xlu0 %5639
        %5641 = vrot.lane.b32.xlu0 %v5174, 1
        %v5642 = vpop.permute.xlu0 %5641
        %5643 = vrot.lane.b32.xlu0 %v5175, 1
        %v5644 = vpop.permute.xlu0 %5643
        %5645 = vrot.lane.b32.xlu0 %v5176, 1
        %v5646 = vpop.permute.xlu0 %5645
        %5647 = vrot.lane.b32.xlu0 %v5177, 1
        %v5648 = vpop.permute.xlu0 %5647
        %5649 = vrot.lane.b32.xlu0 %v5178, 1
        %v5650 = vpop.permute.xlu0 %5649
        %v5651 = vsel %vm3302, %v5620, %v5622
        %v5652 = vsel %vm3302, %v5624, %v5626
        %v5653 = vsel %vm3302, %v5628, %v5630
        %v5654 = vsel %vm3302, %v5632, %v5634
        %v5655 = vsel %vm3302, %v5636, %v5638
        %v5656 = vsel %vm3302, %v5640, %v5642
        %v5657 = vsel %vm3302, %v5644, %v5646
        %v5658 = vsel %vm3302, %v5648, %v5650
        %v5675 = vsel %vm3302, 0.0, %v5620
        %v5676 = vsel %vm3302, 0.0, %v5624
        %v5677 = vsel %vm3302, 0.0, %v5628
        %v5678 = vsel %vm3302, 0.0, %v5632
        %v5679 = vsel %vm3302, 0.0, %v5636
        %v5680 = vsel %vm3302, 0.0, %v5640
        %v5681 = vsel %vm3302, 0.0, %v5644
        %v5682 = vsel %vm3302, 0.0, %v5648
        %v5683 = vsel %vm2540, %v5675, 0.0
        %v5684 = vsel %vm2541, %v5651, 0.0
        %v5685 = vsel %vm2540, %v5676, 0.0
        %v5686 = vsel %vm2541, %v5652, 0.0
        %v5687 = vsel %vm2540, %v5677, 0.0
        %v5688 = vsel %vm2541, %v5653, 0.0
        %v5689 = vsel %vm2540, %v5678, 0.0
        %v5690 = vsel %vm2541, %v5654, 0.0
        %v5691 = vsel %vm2540, %v5679, 0.0
        %v5692 = vsel %vm2541, %v5655, 0.0
        %v5693 = vsel %vm2540, %v5680, 0.0
        %v5694 = vsel %vm2541, %v5656, 0.0
        %v5695 = vsel %vm2540, %v5681, 0.0
        %v5696 = vsel %vm2541, %v5657, 0.0
        %v5697 = vsel %vm2540, %v5682, 0.0
        %v5698 = vsel %vm2541, %v5658, 0.0
        %5699 = vset.pattern.permute.xlu0 3
        %5700 = vperm.xlu0 %5699, %v5179
        %v5701 = vpop.permute.xlu0 %5700
        %5703 = vset.pattern.permute.xlu0 3
        %5704 = vperm.xlu0 %5703, %v5180
        %v5705 = vpop.permute.xlu0 %5704
        %5707 = vset.pattern.permute.xlu0 3
        %5708 = vperm.xlu0 %5707, %v5181
        %v5709 = vpop.permute.xlu0 %5708
        %5711 = vset.pattern.permute.xlu0 3
        %5712 = vperm.xlu0 %5711, %v5182
        %v5713 = vpop.permute.xlu0 %5712
        %5715 = vset.pattern.permute.xlu0 3
        %5716 = vperm.xlu0 %5715, %v5183
        %v5717 = vpop.permute.xlu0 %5716
        %5719 = vset.pattern.permute.xlu0 3
        %5720 = vperm.xlu0 %5719, %v5184
        %v5721 = vpop.permute.xlu0 %5720
        %5723 = vset.pattern.permute.xlu0 3
        %5724 = vperm.xlu0 %5723, %v5185
        %v5725 = vpop.permute.xlu0 %5724
        %5727 = vset.pattern.permute.xlu0 3
        %5728 = vperm.xlu0 %5727, %v5186
        %v5729 = vpop.permute.xlu0 %5728
        %v5731 = vmul.f32 %v5701, %v5683
        %v5732 = vmul.f32 %v5701, %v5684
        %v5733 = vmul.f32 %v5705, %v5685
        %v5734 = vmul.f32 %v5705, %v5686
        %v5735 = vmul.f32 %v5709, %v5687
        %v5736 = vmul.f32 %v5709, %v5688
        %v5737 = vmul.f32 %v5713, %v5689
        %v5738 = vmul.f32 %v5713, %v5690
        %v5739 = vmul.f32 %v5717, %v5691
        %v5740 = vmul.f32 %v5717, %v5692
        %v5741 = vmul.f32 %v5721, %v5693
        %v5742 = vmul.f32 %v5721, %v5694
        %v5743 = vmul.f32 %v5725, %v5695
        %v5744 = vmul.f32 %v5725, %v5696
        %v5745 = vmul.f32 %v5729, %v5697
        %v5746 = vmul.f32 %v5729, %v5698
        %v5747 = vadd.f32 %v5603, %v5731
        %v5748 = vadd.f32 %v5604, %v5732
        %v5749 = vadd.f32 %v5605, %v5733
        %v5750 = vadd.f32 %v5606, %v5734
        %v5751 = vadd.f32 %v5607, %v5735
        %v5752 = vadd.f32 %v5608, %v5736
        %v5753 = vadd.f32 %v5609, %v5737
        %v5754 = vadd.f32 %v5610, %v5738
        %v5755 = vadd.f32 %v5611, %v5739
        %v5756 = vadd.f32 %v5612, %v5740
        %v5757 = vadd.f32 %v5613, %v5741
        %v5758 = vadd.f32 %v5614, %v5742
        %v5759 = vadd.f32 %v5615, %v5743
        %v5760 = vadd.f32 %v5616, %v5744
        %v5761 = vadd.f32 %v5617, %v5745
        %v5762 = vadd.f32 %v5618, %v5746
        %5763 = vset.pattern.permute.xlu0 4
        %5764 = vperm.xlu0 %5763, %v5179
        %v5765 = vpop.permute.xlu0 %5764
        %5767 = vset.pattern.permute.xlu0 4
        %5768 = vperm.xlu0 %5767, %v5180
        %v5769 = vpop.permute.xlu0 %5768
        %5771 = vset.pattern.permute.xlu0 4
        %5772 = vperm.xlu0 %5771, %v5181
        %v5773 = vpop.permute.xlu0 %5772
        %5775 = vset.pattern.permute.xlu0 4
        %5776 = vperm.xlu0 %5775, %v5182
        %v5777 = vpop.permute.xlu0 %5776
        %5779 = vset.pattern.permute.xlu0 4
        %5780 = vperm.xlu0 %5779, %v5183
        %v5781 = vpop.permute.xlu0 %5780
        %5783 = vset.pattern.permute.xlu0 4
        %5784 = vperm.xlu0 %5783, %v5184
        %v5785 = vpop.permute.xlu0 %5784
        %5787 = vset.pattern.permute.xlu0 4
        %5788 = vperm.xlu0 %5787, %v5185
        %v5789 = vpop.permute.xlu0 %5788
        %5791 = vset.pattern.permute.xlu0 4
        %5792 = vperm.xlu0 %5791, %v5186
        %v5793 = vpop.permute.xlu0 %5792
        %v5795 = vmul.f32 %v5765, %v5163
        %v5796 = vmul.f32 %v5765, %v5164
        %v5797 = vmul.f32 %v5769, %v5165
        %v5798 = vmul.f32 %v5769, %v5166
        %v5799 = vmul.f32 %v5773, %v5167
        %v5800 = vmul.f32 %v5773, %v5168
        %v5801 = vmul.f32 %v5777, %v5169
        %v5802 = vmul.f32 %v5777, %v5170
        %v5803 = vmul.f32 %v5781, %v5171
        %v5804 = vmul.f32 %v5781, %v5172
        %v5805 = vmul.f32 %v5785, %v5173
        %v5806 = vmul.f32 %v5785, %v5174
        %v5807 = vmul.f32 %v5789, %v5175
        %v5808 = vmul.f32 %v5789, %v5176
        %v5809 = vmul.f32 %v5793, %v5177
        %v5810 = vmul.f32 %v5793, %v5178
        %v5811 = vadd.f32 %v5747, %v5795
        %v5812 = vadd.f32 %v5748, %v5796
        %v5813 = vadd.f32 %v5749, %v5797
        %v5814 = vadd.f32 %v5750, %v5798
        %v5815 = vadd.f32 %v5751, %v5799
        %v5816 = vadd.f32 %v5752, %v5800
        %v5817 = vadd.f32 %v5753, %v5801
        %v5818 = vadd.f32 %v5754, %v5802
        %v5819 = vadd.f32 %v5755, %v5803
        %v5820 = vadd.f32 %v5756, %v5804
        %v5821 = vadd.f32 %v5757, %v5805
        %v5822 = vadd.f32 %v5758, %v5806
        %v5823 = vadd.f32 %v5759, %v5807
        %v5824 = vadd.f32 %v5760, %v5808
        %v5825 = vadd.f32 %v5761, %v5809
        %v5826 = vadd.f32 %v5762, %v5810
        %5827 = vrot.lane.b32.xlu0 %v5163, 127
        %v5828 = vpop.permute.xlu0 %5827
        %5829 = vrot.lane.b32.xlu0 %v5164, 127
        %v5830 = vpop.permute.xlu0 %5829
        %5831 = vrot.lane.b32.xlu0 %v5165, 127
        %v5832 = vpop.permute.xlu0 %5831
        %5833 = vrot.lane.b32.xlu0 %v5166, 127
        %v5834 = vpop.permute.xlu0 %5833
        %5835 = vrot.lane.b32.xlu0 %v5167, 127
        %v5836 = vpop.permute.xlu0 %5835
        %5837 = vrot.lane.b32.xlu0 %v5168, 127
        %v5838 = vpop.permute.xlu0 %5837
        %5839 = vrot.lane.b32.xlu0 %v5169, 127
        %v5840 = vpop.permute.xlu0 %5839
        %5841 = vrot.lane.b32.xlu0 %v5170, 127
        %v5842 = vpop.permute.xlu0 %5841
        %5843 = vrot.lane.b32.xlu0 %v5171, 127
        %v5844 = vpop.permute.xlu0 %5843
        %5845 = vrot.lane.b32.xlu0 %v5172, 127
        %v5846 = vpop.permute.xlu0 %5845
        %5847 = vrot.lane.b32.xlu0 %v5173, 127
        %v5848 = vpop.permute.xlu0 %5847
        %5849 = vrot.lane.b32.xlu0 %v5174, 127
        %v5850 = vpop.permute.xlu0 %5849
        %5851 = vrot.lane.b32.xlu0 %v5175, 127
        %v5852 = vpop.permute.xlu0 %5851
        %5853 = vrot.lane.b32.xlu0 %v5176, 127
        %v5854 = vpop.permute.xlu0 %5853
        %5855 = vrot.lane.b32.xlu0 %v5177, 127
        %v5856 = vpop.permute.xlu0 %5855
        %5857 = vrot.lane.b32.xlu0 %v5178, 127
        %v5858 = vpop.permute.xlu0 %5857
        %v5859 = vsel %vm3719, %v5828, %v5830
        %v5860 = vsel %vm3719, %v5832, %v5834
        %v5861 = vsel %vm3719, %v5836, %v5838
        %v5862 = vsel %vm3719, %v5840, %v5842
        %v5863 = vsel %vm3719, %v5844, %v5846
        %v5864 = vsel %vm3719, %v5848, %v5850
        %v5865 = vsel %vm3719, %v5852, %v5854
        %v5866 = vsel %vm3719, %v5856, %v5858
        %v5883 = vsel %vm3719, %v5830, 0.0
        %v5884 = vsel %vm3719, %v5834, 0.0
        %v5885 = vsel %vm3719, %v5838, 0.0
        %v5886 = vsel %vm3719, %v5842, 0.0
        %v5887 = vsel %vm3719, %v5846, 0.0
        %v5888 = vsel %vm3719, %v5850, 0.0
        %v5889 = vsel %vm3719, %v5854, 0.0
        %v5890 = vsel %vm3719, %v5858, 0.0
        %v5891 = vsel %vm3076, %v5859, 0.0
        %v5892 = vsel %vm3077, %v5883, 0.0
        %v5893 = vsel %vm3076, %v5860, 0.0
        %v5894 = vsel %vm3077, %v5884, 0.0
        %v5895 = vsel %vm3076, %v5861, 0.0
        %v5896 = vsel %vm3077, %v5885, 0.0
        %v5897 = vsel %vm3076, %v5862, 0.0
        %v5898 = vsel %vm3077, %v5886, 0.0
        %v5899 = vsel %vm3076, %v5863, 0.0
        %v5900 = vsel %vm3077, %v5887, 0.0
        %v5901 = vsel %vm3076, %v5864, 0.0
        %v5902 = vsel %vm3077, %v5888, 0.0
        %v5903 = vsel %vm3076, %v5865, 0.0
        %v5904 = vsel %vm3077, %v5889, 0.0
        %v5905 = vsel %vm3076, %v5866, 0.0
        %v5906 = vsel %vm3077, %v5890, 0.0
        %5907 = vset.pattern.permute.xlu0 5
        %5908 = vperm.xlu0 %5907, %v5179
        %v5909 = vpop.permute.xlu0 %5908
        %5911 = vset.pattern.permute.xlu0 5
        %5912 = vperm.xlu0 %5911, %v5180
        %v5913 = vpop.permute.xlu0 %5912
        %5915 = vset.pattern.permute.xlu0 5
        %5916 = vperm.xlu0 %5915, %v5181
        %v5917 = vpop.permute.xlu0 %5916
        %5919 = vset.pattern.permute.xlu0 5
        %5920 = vperm.xlu0 %5919, %v5182
        %v5921 = vpop.permute.xlu0 %5920
        %5923 = vset.pattern.permute.xlu0 5
        %5924 = vperm.xlu0 %5923, %v5183
        %v5925 = vpop.permute.xlu0 %5924
        %5927 = vset.pattern.permute.xlu0 5
        %5928 = vperm.xlu0 %5927, %v5184
        %v5929 = vpop.permute.xlu0 %5928
        %5931 = vset.pattern.permute.xlu0 5
        %5932 = vperm.xlu0 %5931, %v5185
        %v5933 = vpop.permute.xlu0 %5932
        %5935 = vset.pattern.permute.xlu0 5
        %5936 = vperm.xlu0 %5935, %v5186
        %v5937 = vpop.permute.xlu0 %5936
        %v5939 = vmul.f32 %v5909, %v5891
        %v5940 = vmul.f32 %v5909, %v5892
        %v5941 = vmul.f32 %v5913, %v5893
        %v5942 = vmul.f32 %v5913, %v5894
        %v5943 = vmul.f32 %v5917, %v5895
        %v5944 = vmul.f32 %v5917, %v5896
        %v5945 = vmul.f32 %v5921, %v5897
        %v5946 = vmul.f32 %v5921, %v5898
        %v5947 = vmul.f32 %v5925, %v5899
        %v5948 = vmul.f32 %v5925, %v5900
        %v5949 = vmul.f32 %v5929, %v5901
        %v5950 = vmul.f32 %v5929, %v5902
        %v5951 = vmul.f32 %v5933, %v5903
        %v5952 = vmul.f32 %v5933, %v5904
        %v5953 = vmul.f32 %v5937, %v5905
        %v5954 = vmul.f32 %v5937, %v5906
        %v5955 = vadd.f32 %v5811, %v5939
        %v5956 = vadd.f32 %v5812, %v5940
        %v5957 = vadd.f32 %v5813, %v5941
        %v5958 = vadd.f32 %v5814, %v5942
        %v5959 = vadd.f32 %v5815, %v5943
        %v5960 = vadd.f32 %v5816, %v5944
        %v5961 = vadd.f32 %v5817, %v5945
        %v5962 = vadd.f32 %v5818, %v5946
        %v5963 = vadd.f32 %v5819, %v5947
        %v5964 = vadd.f32 %v5820, %v5948
        %v5965 = vadd.f32 %v5821, %v5949
        %v5966 = vadd.f32 %v5822, %v5950
        %v5967 = vadd.f32 %v5823, %v5951
        %v5968 = vadd.f32 %v5824, %v5952
        %v5969 = vadd.f32 %v5825, %v5953
        %v5970 = vadd.f32 %v5826, %v5954
        %5971 = vrot.lane.b32.xlu0 %v5163, 113
        %v5972 = vpop.permute.xlu0 %5971
        %5973 = vrot.lane.b32.xlu0 %v5164, 113
        %v5974 = vpop.permute.xlu0 %5973
        %5975 = vrot.lane.b32.xlu0 %v5165, 113
        %v5976 = vpop.permute.xlu0 %5975
        %5977 = vrot.lane.b32.xlu0 %v5166, 113
        %v5978 = vpop.permute.xlu0 %5977
        %5979 = vrot.lane.b32.xlu0 %v5167, 113
        %v5980 = vpop.permute.xlu0 %5979
        %5981 = vrot.lane.b32.xlu0 %v5168, 113
        %v5982 = vpop.permute.xlu0 %5981
        %5983 = vrot.lane.b32.xlu0 %v5169, 113
        %v5984 = vpop.permute.xlu0 %5983
        %5985 = vrot.lane.b32.xlu0 %v5170, 113
        %v5986 = vpop.permute.xlu0 %5985
        %5987 = vrot.lane.b32.xlu0 %v5171, 113
        %v5988 = vpop.permute.xlu0 %5987
        %5989 = vrot.lane.b32.xlu0 %v5172, 113
        %v5990 = vpop.permute.xlu0 %5989
        %5991 = vrot.lane.b32.xlu0 %v5173, 113
        %v5992 = vpop.permute.xlu0 %5991
        %5993 = vrot.lane.b32.xlu0 %v5174, 113
        %v5994 = vpop.permute.xlu0 %5993
        %5995 = vrot.lane.b32.xlu0 %v5175, 113
        %v5996 = vpop.permute.xlu0 %5995
        %5997 = vrot.lane.b32.xlu0 %v5176, 113
        %v5998 = vpop.permute.xlu0 %5997
        %5999 = vrot.lane.b32.xlu0 %v5177, 113
        %v6000 = vpop.permute.xlu0 %5999
        %6001 = vrot.lane.b32.xlu0 %v5178, 113
        %v6002 = vpop.permute.xlu0 %6001
        %v6003 = vsel %vm4008, %v5972, %v5974
        %v6004 = vsel %vm4008, %v5976, %v5978
        %v6005 = vsel %vm4008, %v5980, %v5982
        %v6006 = vsel %vm4008, %v5984, %v5986
        %v6007 = vsel %vm4008, %v5988, %v5990
        %v6008 = vsel %vm4008, %v5992, %v5994
        %v6009 = vsel %vm4008, %v5996, %v5998
        %v6010 = vsel %vm4008, %v6000, %v6002
        %v6027 = vsel %vm4008, %v5974, 0.0
        %v6028 = vsel %vm4008, %v5978, 0.0
        %v6029 = vsel %vm4008, %v5982, 0.0
        %v6030 = vsel %vm4008, %v5986, 0.0
        %v6031 = vsel %vm4008, %v5990, 0.0
        %v6032 = vsel %vm4008, %v5994, 0.0
        %v6033 = vsel %vm4008, %v5998, 0.0
        %v6034 = vsel %vm4008, %v6002, 0.0
        %v6035 = vsel %vm2540, %v6003, 0.0
        %v6036 = vsel %vm2541, %v6027, 0.0
        %v6037 = vsel %vm2540, %v6004, 0.0
        %v6038 = vsel %vm2541, %v6028, 0.0
        %v6039 = vsel %vm2540, %v6005, 0.0
        %v6040 = vsel %vm2541, %v6029, 0.0
        %v6041 = vsel %vm2540, %v6006, 0.0
        %v6042 = vsel %vm2541, %v6030, 0.0
        %v6043 = vsel %vm2540, %v6007, 0.0
        %v6044 = vsel %vm2541, %v6031, 0.0
        %v6045 = vsel %vm2540, %v6008, 0.0
        %v6046 = vsel %vm2541, %v6032, 0.0
        %v6047 = vsel %vm2540, %v6009, 0.0
        %v6048 = vsel %vm2541, %v6033, 0.0
        %v6049 = vsel %vm2540, %v6010, 0.0
        %v6050 = vsel %vm2541, %v6034, 0.0
        %6051 = vset.pattern.permute.xlu0 6
        %6052 = vperm.xlu0 %6051, %v5179
        %v6053 = vpop.permute.xlu0 %6052
        %6055 = vset.pattern.permute.xlu0 6
        %6056 = vperm.xlu0 %6055, %v5180
        %v6057 = vpop.permute.xlu0 %6056
        %6059 = vset.pattern.permute.xlu0 6
        %6060 = vperm.xlu0 %6059, %v5181
        %v6061 = vpop.permute.xlu0 %6060
        %6063 = vset.pattern.permute.xlu0 6
        %6064 = vperm.xlu0 %6063, %v5182
        %v6065 = vpop.permute.xlu0 %6064
        %6067 = vset.pattern.permute.xlu0 6
        %6068 = vperm.xlu0 %6067, %v5183
        %v6069 = vpop.permute.xlu0 %6068
        %6071 = vset.pattern.permute.xlu0 6
        %6072 = vperm.xlu0 %6071, %v5184
        %v6073 = vpop.permute.xlu0 %6072
        %6075 = vset.pattern.permute.xlu0 6
        %6076 = vperm.xlu0 %6075, %v5185
        %v6077 = vpop.permute.xlu0 %6076
        %6079 = vset.pattern.permute.xlu0 6
        %6080 = vperm.xlu0 %6079, %v5186
        %v6081 = vpop.permute.xlu0 %6080
        %v6083 = vmul.f32 %v6053, %v6035
        %v6084 = vmul.f32 %v6053, %v6036
        %v6085 = vmul.f32 %v6057, %v6037
        %v6086 = vmul.f32 %v6057, %v6038
        %v6087 = vmul.f32 %v6061, %v6039
        %v6088 = vmul.f32 %v6061, %v6040
        %v6089 = vmul.f32 %v6065, %v6041
        %v6090 = vmul.f32 %v6065, %v6042
        %v6091 = vmul.f32 %v6069, %v6043
        %v6092 = vmul.f32 %v6069, %v6044
        %v6093 = vmul.f32 %v6073, %v6045
        %v6094 = vmul.f32 %v6073, %v6046
        %v6095 = vmul.f32 %v6077, %v6047
        %v6096 = vmul.f32 %v6077, %v6048
        %v6097 = vmul.f32 %v6081, %v6049
        %v6098 = vmul.f32 %v6081, %v6050
        %v6099 = vadd.f32 %v5955, %v6083
        %v6100 = vadd.f32 %v5956, %v6084
        %v6101 = vadd.f32 %v5957, %v6085
        %v6102 = vadd.f32 %v5958, %v6086
        %v6103 = vadd.f32 %v5959, %v6087
        %v6104 = vadd.f32 %v5960, %v6088
        %v6105 = vadd.f32 %v5961, %v6089
        %v6106 = vadd.f32 %v5962, %v6090
        %v6107 = vadd.f32 %v5963, %v6091
        %v6108 = vadd.f32 %v5964, %v6092
        %v6109 = vadd.f32 %v5965, %v6093
        %v6110 = vadd.f32 %v5966, %v6094
        %v6111 = vadd.f32 %v5967, %v6095
        %v6112 = vadd.f32 %v5968, %v6096
        %v6113 = vadd.f32 %v5969, %v6097
        %v6114 = vadd.f32 %v5970, %v6098
        %6115 = vrot.lane.b32.xlu0 %v5163, 112
        %v6116 = vpop.permute.xlu0 %6115
        %6117 = vrot.lane.b32.xlu0 %v5164, 112
        %v6118 = vpop.permute.xlu0 %6117
        %6119 = vrot.lane.b32.xlu0 %v5165, 112
        %v6120 = vpop.permute.xlu0 %6119
        %6121 = vrot.lane.b32.xlu0 %v5166, 112
        %v6122 = vpop.permute.xlu0 %6121
        %6123 = vrot.lane.b32.xlu0 %v5167, 112
        %v6124 = vpop.permute.xlu0 %6123
        %6125 = vrot.lane.b32.xlu0 %v5168, 112
        %v6126 = vpop.permute.xlu0 %6125
        %6127 = vrot.lane.b32.xlu0 %v5169, 112
        %v6128 = vpop.permute.xlu0 %6127
        %6129 = vrot.lane.b32.xlu0 %v5170, 112
        %v6130 = vpop.permute.xlu0 %6129
        %6131 = vrot.lane.b32.xlu0 %v5171, 112
        %v6132 = vpop.permute.xlu0 %6131
        %6133 = vrot.lane.b32.xlu0 %v5172, 112
        %v6134 = vpop.permute.xlu0 %6133
        %6135 = vrot.lane.b32.xlu0 %v5173, 112
        %v6136 = vpop.permute.xlu0 %6135
        %6137 = vrot.lane.b32.xlu0 %v5174, 112
        %v6138 = vpop.permute.xlu0 %6137
        %6139 = vrot.lane.b32.xlu0 %v5175, 112
        %v6140 = vpop.permute.xlu0 %6139
        %6141 = vrot.lane.b32.xlu0 %v5176, 112
        %v6142 = vpop.permute.xlu0 %6141
        %6143 = vrot.lane.b32.xlu0 %v5177, 112
        %v6144 = vpop.permute.xlu0 %6143
        %6145 = vrot.lane.b32.xlu0 %v5178, 112
        %v6146 = vpop.permute.xlu0 %6145
        %v6147 = vsel %vm4297, %v6116, %v6118
        %v6148 = vsel %vm4297, %v6120, %v6122
        %v6149 = vsel %vm4297, %v6124, %v6126
        %v6150 = vsel %vm4297, %v6128, %v6130
        %v6151 = vsel %vm4297, %v6132, %v6134
        %v6152 = vsel %vm4297, %v6136, %v6138
        %v6153 = vsel %vm4297, %v6140, %v6142
        %v6154 = vsel %vm4297, %v6144, %v6146
        %v6171 = vsel %vm4297, %v6118, 0.0
        %v6172 = vsel %vm4297, %v6122, 0.0
        %v6173 = vsel %vm4297, %v6126, 0.0
        %v6174 = vsel %vm4297, %v6130, 0.0
        %v6175 = vsel %vm4297, %v6134, 0.0
        %v6176 = vsel %vm4297, %v6138, 0.0
        %v6177 = vsel %vm4297, %v6142, 0.0
        %v6178 = vsel %vm4297, %v6146, 0.0
        %6179 = vset.pattern.permute.xlu0 7
        %6180 = vperm.xlu0 %6179, %v5179
        %v6181 = vpop.permute.xlu0 %6180
        %6183 = vset.pattern.permute.xlu0 7
        %6184 = vperm.xlu0 %6183, %v5180
        %v6185 = vpop.permute.xlu0 %6184
        %6187 = vset.pattern.permute.xlu0 7
        %6188 = vperm.xlu0 %6187, %v5181
        %v6189 = vpop.permute.xlu0 %6188
        %6191 = vset.pattern.permute.xlu0 7
        %6192 = vperm.xlu0 %6191, %v5182
        %v6193 = vpop.permute.xlu0 %6192
        %6195 = vset.pattern.permute.xlu0 7
        %6196 = vperm.xlu0 %6195, %v5183
        %v6197 = vpop.permute.xlu0 %6196
        %6199 = vset.pattern.permute.xlu0 7
        %6200 = vperm.xlu0 %6199, %v5184
        %v6201 = vpop.permute.xlu0 %6200
        %6203 = vset.pattern.permute.xlu0 7
        %6204 = vperm.xlu0 %6203, %v5185
        %v6205 = vpop.permute.xlu0 %6204
        %6207 = vset.pattern.permute.xlu0 7
        %6208 = vperm.xlu0 %6207, %v5186
        %v6209 = vpop.permute.xlu0 %6208
        %v6211 = vmul.f32 %v6181, %v6147
        %v6212 = vmul.f32 %v6181, %v6171
        %v6213 = vmul.f32 %v6185, %v6148
        %v6214 = vmul.f32 %v6185, %v6172
        %v6215 = vmul.f32 %v6189, %v6149
        %v6216 = vmul.f32 %v6189, %v6173
        %v6217 = vmul.f32 %v6193, %v6150
        %v6218 = vmul.f32 %v6193, %v6174
        %v6219 = vmul.f32 %v6197, %v6151
        %v6220 = vmul.f32 %v6197, %v6175
        %v6221 = vmul.f32 %v6201, %v6152
        %v6222 = vmul.f32 %v6201, %v6176
        %v6223 = vmul.f32 %v6205, %v6153
        %v6224 = vmul.f32 %v6205, %v6177
        %v6225 = vmul.f32 %v6209, %v6154
        %v6226 = vmul.f32 %v6209, %v6178
        %v6227 = vadd.f32 %v6099, %v6211
        %v6228 = vadd.f32 %v6100, %v6212
        %v6229 = vadd.f32 %v6101, %v6213
        %v6230 = vadd.f32 %v6102, %v6214
        %v6231 = vadd.f32 %v6103, %v6215
        %v6232 = vadd.f32 %v6104, %v6216
        %v6233 = vadd.f32 %v6105, %v6217
        %v6234 = vadd.f32 %v6106, %v6218
        %v6235 = vadd.f32 %v6107, %v6219
        %v6236 = vadd.f32 %v6108, %v6220
        %v6237 = vadd.f32 %v6109, %v6221
        %v6238 = vadd.f32 %v6110, %v6222
        %v6239 = vadd.f32 %v6111, %v6223
        %v6240 = vadd.f32 %v6112, %v6224
        %v6241 = vadd.f32 %v6113, %v6225
        %v6242 = vadd.f32 %v6114, %v6226
        %6243 = vrot.lane.b32.xlu0 %v5163, 111
        %v6244 = vpop.permute.xlu0 %6243
        %6245 = vrot.lane.b32.xlu0 %v5164, 111
        %v6246 = vpop.permute.xlu0 %6245
        %6247 = vrot.lane.b32.xlu0 %v5165, 111
        %v6248 = vpop.permute.xlu0 %6247
        %6249 = vrot.lane.b32.xlu0 %v5166, 111
        %v6250 = vpop.permute.xlu0 %6249
        %6251 = vrot.lane.b32.xlu0 %v5167, 111
        %v6252 = vpop.permute.xlu0 %6251
        %6253 = vrot.lane.b32.xlu0 %v5168, 111
        %v6254 = vpop.permute.xlu0 %6253
        %6255 = vrot.lane.b32.xlu0 %v5169, 111
        %v6256 = vpop.permute.xlu0 %6255
        %6257 = vrot.lane.b32.xlu0 %v5170, 111
        %v6258 = vpop.permute.xlu0 %6257
        %6259 = vrot.lane.b32.xlu0 %v5171, 111
        %v6260 = vpop.permute.xlu0 %6259
        %6261 = vrot.lane.b32.xlu0 %v5172, 111
        %v6262 = vpop.permute.xlu0 %6261
        %6263 = vrot.lane.b32.xlu0 %v5173, 111
        %v6264 = vpop.permute.xlu0 %6263
        %6265 = vrot.lane.b32.xlu0 %v5174, 111
        %v6266 = vpop.permute.xlu0 %6265
        %6267 = vrot.lane.b32.xlu0 %v5175, 111
        %v6268 = vpop.permute.xlu0 %6267
        %6269 = vrot.lane.b32.xlu0 %v5176, 111
        %v6270 = vpop.permute.xlu0 %6269
        %6271 = vrot.lane.b32.xlu0 %v5177, 111
        %v6272 = vpop.permute.xlu0 %6271
        %6273 = vrot.lane.b32.xlu0 %v5178, 111
        %v6274 = vpop.permute.xlu0 %6273
        %v6275 = vsel %vm4554, %v6244, %v6246
        %v6276 = vsel %vm4554, %v6248, %v6250
        %v6277 = vsel %vm4554, %v6252, %v6254
        %v6278 = vsel %vm4554, %v6256, %v6258
        %v6279 = vsel %vm4554, %v6260, %v6262
        %v6280 = vsel %vm4554, %v6264, %v6266
        %v6281 = vsel %vm4554, %v6268, %v6270
        %v6282 = vsel %vm4554, %v6272, %v6274
        %v6299 = vsel %vm4554, %v6246, 0.0
        %v6300 = vsel %vm4554, %v6250, 0.0
        %v6301 = vsel %vm4554, %v6254, 0.0
        %v6302 = vsel %vm4554, %v6258, 0.0
        %v6303 = vsel %vm4554, %v6262, 0.0
        %v6304 = vsel %vm4554, %v6266, 0.0
        %v6305 = vsel %vm4554, %v6270, 0.0
        %v6306 = vsel %vm4554, %v6274, 0.0
        %v6307 = vsel %vm3076, %v6275, 0.0
        %v6308 = vsel %vm3077, %v6299, 0.0
        %v6309 = vsel %vm3076, %v6276, 0.0
        %v6310 = vsel %vm3077, %v6300, 0.0
        %v6311 = vsel %vm3076, %v6277, 0.0
        %v6312 = vsel %vm3077, %v6301, 0.0
        %v6313 = vsel %vm3076, %v6278, 0.0
        %v6314 = vsel %vm3077, %v6302, 0.0
        %v6315 = vsel %vm3076, %v6279, 0.0
        %v6316 = vsel %vm3077, %v6303, 0.0
        %v6317 = vsel %vm3076, %v6280, 0.0
        %v6318 = vsel %vm3077, %v6304, 0.0
        %v6319 = vsel %vm3076, %v6281, 0.0
        %v6320 = vsel %vm3077, %v6305, 0.0
        %v6321 = vsel %vm3076, %v6282, 0.0
        %v6322 = vsel %vm3077, %v6306, 0.0
        %6323 = vset.pattern.permute.xlu0 8
        %6324 = vperm.xlu0 %6323, %v5179
        %v6325 = vpop.permute.xlu0 %6324
        %6327 = vset.pattern.permute.xlu0 8
        %6328 = vperm.xlu0 %6327, %v5180
        %v6329 = vpop.permute.xlu0 %6328
        %6331 = vset.pattern.permute.xlu0 8
        %6332 = vperm.xlu0 %6331, %v5181
        %v6333 = vpop.permute.xlu0 %6332
        %6335 = vset.pattern.permute.xlu0 8
        %6336 = vperm.xlu0 %6335, %v5182
        %v6337 = vpop.permute.xlu0 %6336
        %6339 = vset.pattern.permute.xlu0 8
        %6340 = vperm.xlu0 %6339, %v5183
        %v6341 = vpop.permute.xlu0 %6340
        %6343 = vset.pattern.permute.xlu0 8
        %6344 = vperm.xlu0 %6343, %v5184
        %v6345 = vpop.permute.xlu0 %6344
        %6347 = vset.pattern.permute.xlu0 8
        %6348 = vperm.xlu0 %6347, %v5185
        %v6349 = vpop.permute.xlu0 %6348
        %6351 = vset.pattern.permute.xlu0 8
        %6352 = vperm.xlu0 %6351, %v5186
        %v6353 = vpop.permute.xlu0 %6352
        %v6355 = vmul.f32 %v6325, %v6307
        %v6356 = vmul.f32 %v6325, %v6308
        %v6357 = vmul.f32 %v6329, %v6309
        %v6358 = vmul.f32 %v6329, %v6310
        %v6359 = vmul.f32 %v6333, %v6311
        %v6360 = vmul.f32 %v6333, %v6312
        %v6361 = vmul.f32 %v6337, %v6313
        %v6362 = vmul.f32 %v6337, %v6314
        %v6363 = vmul.f32 %v6341, %v6315
        %v6364 = vmul.f32 %v6341, %v6316
        %v6365 = vmul.f32 %v6345, %v6317
        %v6366 = vmul.f32 %v6345, %v6318
        %v6367 = vmul.f32 %v6349, %v6319
        %v6368 = vmul.f32 %v6349, %v6320
        %v6369 = vmul.f32 %v6353, %v6321
        %v6370 = vmul.f32 %v6353, %v6322
        %v6371 = vadd.f32 %v6227, %v6355
        %v6372 = vadd.f32 %v6228, %v6356
        %v6373 = vadd.f32 %v6229, %v6357
        %v6374 = vadd.f32 %v6230, %v6358
        %v6375 = vadd.f32 %v6231, %v6359
        %v6376 = vadd.f32 %v6232, %v6360
        %v6377 = vadd.f32 %v6233, %v6361
        %v6378 = vadd.f32 %v6234, %v6362
        %v6379 = vadd.f32 %v6235, %v6363
        %v6380 = vadd.f32 %v6236, %v6364
        %v6381 = vadd.f32 %v6237, %v6365
        %v6382 = vadd.f32 %v6238, %v6366
        %v6383 = vadd.f32 %v6239, %v6367
        %v6384 = vadd.f32 %v6240, %v6368
        %v6385 = vadd.f32 %v6241, %v6369
        %v6386 = vadd.f32 %v6242, %v6370
        %6388 = vset.pattern.permute.xlu0 0
        %6389 = vperm.xlu0 %6388, %v5187
        %v6390 = vpop.permute.xlu0 %6389
        %6393 = vset.pattern.permute.xlu0 0
        %6394 = vperm.xlu0 %6393, %v5188
        %v6395 = vpop.permute.xlu0 %6394
        %6398 = vset.pattern.permute.xlu0 0
        %6399 = vperm.xlu0 %6398, %v5189
        %v6400 = vpop.permute.xlu0 %6399
        %6403 = vset.pattern.permute.xlu0 0
        %6404 = vperm.xlu0 %6403, %v5190
        %v6405 = vpop.permute.xlu0 %6404
        %6408 = vset.pattern.permute.xlu0 0
        %6409 = vperm.xlu0 %6408, %v5191
        %v6410 = vpop.permute.xlu0 %6409
        %6413 = vset.pattern.permute.xlu0 0
        %6414 = vperm.xlu0 %6413, %v5192
        %v6415 = vpop.permute.xlu0 %6414
        %6418 = vset.pattern.permute.xlu0 0
        %6419 = vperm.xlu0 %6418, %v5193
        %v6420 = vpop.permute.xlu0 %6419
        %6423 = vset.pattern.permute.xlu0 0
        %6424 = vperm.xlu0 %6423, %v5194
        %v6425 = vpop.permute.xlu0 %6424
        %v6427 = vadd.f32 %v6371, %v6390
        %v6428 = vadd.f32 %v6372, %v6390
        %v6429 = vadd.f32 %v6373, %v6395
        %v6430 = vadd.f32 %v6374, %v6395
        %v6431 = vadd.f32 %v6375, %v6400
        %v6432 = vadd.f32 %v6376, %v6400
        %v6433 = vadd.f32 %v6377, %v6405
        %v6434 = vadd.f32 %v6378, %v6405
        %v6435 = vadd.f32 %v6379, %v6410
        %v6436 = vadd.f32 %v6380, %v6410
        %v6437 = vadd.f32 %v6381, %v6415
        %v6438 = vadd.f32 %v6382, %v6415
        %v6439 = vadd.f32 %v6383, %v6420
        %v6440 = vadd.f32 %v6384, %v6420
        %v6441 = vadd.f32 %v6385, %v6425
        %v6442 = vadd.f32 %v6386, %v6425
        %6443 = vst [vmem:[%s369] sm:$0xff] %v6427
        %6444 = vst [vmem:[%s369 + $0x8] sm:$0xff] %v6428
        %6445 = vst [vmem:[%s369 + $0x10] sm:$0xff] %v6429
        %6446 = vst [vmem:[%s369 + $0x18] sm:$0xff] %v6430
        %6447 = vst [vmem:[%s369 + $0x20] sm:$0xff] %v6431
        %6448 = vst [vmem:[%s369 + $0x28] sm:$0xff] %v6432
        %6449 = vst [vmem:[%s369 + $0x30] sm:$0xff] %v6433
        %6450 = vst [vmem:[%s369 + $0x38] sm:$0xff] %v6434
        %6451 = vst [vmem:[%s369 + $0x40] sm:$0xff] %v6435
        %6452 = vst [vmem:[%s369 + $0x48] sm:$0xff] %v6436
        %6453 = vst [vmem:[%s369 + $0x50] sm:$0xff] %v6437
        %6454 = vst [vmem:[%s369 + $0x58] sm:$0xff] %v6438
        %6455 = vst [vmem:[%s369 + $0x60] sm:$0xff] %v6439
        %6456 = vst [vmem:[%s369 + $0x68] sm:$0xff] %v6440
        %6457 = vst [vmem:[%s369 + $0x70] sm:$0xff] %v6441
        %6458 = vst [vmem:[%s369 + $0x78] sm:$0xff] %v6442
        %s6459 = sand.u32 %s248, 1
        %s6460 = scalar_lea.sflag [#allocation4], %s6459
        %s6461 = sand.u32 %s248, 1
        %s6462 = smul.addr %s6461, 128
        %s6463 = scalar_lea.vmem [#allocation5], %s6462
        // Predicated region
        $region65: #{tpu_custom_call.1} parent=59 // pred_check
          %p6464 = pneg %p258
        $region66: #{tpu_custom_call.1} parent=59 // pred_check_branch
          %6466 = sbr.rel (%p6464) target = $region68
        $region67: #{tpu_custom_call.1} parent=59 // pred_region
          %6468 = vsyncadd %s6460, 0
          %s6469 = smul.addr %s25, 16
          %s6470 = smul.addr %s6469, 8
          %s6471 = scalar_lea.hbm %s10, %s6470
          %s6472 = sshll.u32 %s6463, 4
          %s6473 = int_to_ptr.vmem [resolvable:$true] %s6472
          %s6474 = sshll.u32 %s6471, 4
          %s6475 = int_to_ptr.hbm [resolvable:$true] %s6474
          %6480 = dma.vmem_to_hbm [thread:$0]  %s6473, 2048, %s6475, %s6460, 256, 256, 16
        $region68: #{tpu_custom_call.1} parent=59 // pred_fallthru
          _
      $region60: #{tpu_custom_call.1} parent=5 // pred_fallthru
        _
      %p6481 = scmp.le.s32.totalorder 2, %s20
      // Predicated region
      $region69: #{tpu_custom_call.1} parent=5 // pred_check
        %p6482 = pneg %p6481
      $region70: #{tpu_custom_call.1} parent=5 // pred_check_branch
        %6484 = sbr.rel (%p6482) target = $region72
      $region71: #{tpu_custom_call.1} parent=5 // pred_region
        %s6485 = ssub.s32 %s20, 2
        // Predicated region
        $region73: #{tpu_custom_call.1} parent=71 // pred_check
          %p6486 = pneg %p264
        $region74: #{tpu_custom_call.1} parent=71 // pred_check_branch
          %6488 = sbr.rel (%p6486) target = $region76
        $region75: #{tpu_custom_call.1} parent=71 // pred_region
          %s6489 = sand.u32 %s249, 1
          %s6490 = scalar_lea.sflag [#allocation4], %s6489
          %s6491 = sand.u32 %s249, 1
          %s6492 = smul.addr %s6491, 128
          %s6493 = scalar_lea.vmem [#allocation5], %s6492
          %6495 = dma.done %s6490, 2048
        $region76: #{tpu_custom_call.1} parent=71 // pred_fallthru
          _
      $region72: #{tpu_custom_call.1} parent=5 // pred_fallthru
        _
    $region6: #{tpu_custom_call.1} parent=1 // loop_footer
      %s24 = sadd.s32 1, %s20
    $region7: #{tpu_custom_call.1} parent=1 // loop_footer_branch
      %19 = sbr.rel target = $region3
    $region8: #{tpu_custom_call.1} parent=1 // loop_exit
      _
    %6496 = vsyncpa [#allocation3], 1
    %s6497 = scalar_lea.sflag [#allocation3], 1
    %6498 = vsyncpa %s6497, 1
    %6499 = vsyncpa [#allocation4], 1
    %s6500 = scalar_lea.sflag [#allocation4], 1
    %6501 = vsyncpa %s6500, 1

</llo_original>
